<compile_context>
chip_gen: v7x
topology: tpu7x:2x2x1
jax: 0.10.0
libtpu: 0.0.40
codegen_flags: <defaults>
</compile_context>

<pallas_src>
import functools
import math

import jax
import jax.numpy as jnp
from jax.experimental import pallas as pl
from jax.experimental.pallas import tpu as pltpu


def actor_kernel(x_ref, w1_ref, b1_ref, w2_ref, b2_ref, w3_ref, b3_ref,
                 w4_ref, b4_ref, out_ref):
    """One batch tile: y = tanh(relu(relu(relu(x@W1+b1)@W2+b2)@W3+b3)@W4+b4).

    Weights may already be bf16 (prepared outside the kernel); biases and all
    accumulation / epilogue math stay f32.  Output is written unpadded
    (last dim == action_size)."""
    cd = w1_ref.dtype  # MXU operand dtype (f32 or bf16), chosen at prep time
    # dense_1 + relu
    h = jnp.dot(x_ref[...].astype(cd), w1_ref[...],
                preferred_element_type=jnp.float32)
    h = jnp.maximum(h + b1_ref[...], 0.0)
    # dense_2 + relu
    h = jnp.dot(h.astype(cd), w2_ref[...], preferred_element_type=jnp.float32)
    h = jnp.maximum(h + b2_ref[...], 0.0)
    # dense_3 + relu
    h = jnp.dot(h.astype(cd), w3_ref[...], preferred_element_type=jnp.float32)
    h = jnp.maximum(h + b3_ref[...], 0.0)
    # dense_4 + tanh
    h = jnp.dot(h.astype(cd), w4_ref[...], preferred_element_type=jnp.float32)
    out_ref[...] = jnp.tanh(h + b4_ref[...]).astype(out_ref.dtype)


def prepare_params(params, use_bf16=True):
    """One-time parameter prep, hoisted out of the per-call jit.

    Optional bf16 cast for the matmul operands (MXU is bf16-native on
    v5e/v6e/v7x); biases stay f32 for the VPU epilogue."""
    wd = jnp.bfloat16 if use_bf16 else jnp.float32
    return tuple(
        jnp.asarray(a, d) for a, d in (
            (params["w1"], wd), (params["b1"], jnp.float32),
            (params["w2"], wd), (params["b2"], jnp.float32),
            (params["w3"], wd), (params["b3"], jnp.float32),
            (params["w4"], wd), (params["b4"], jnp.float32),
        ))


def _pick_tile(batch, tm):
    """Batch-tile size: avoid padding when possible, keep the grid even-ish."""
    tm = max(8, (tm // 8) * 8)
    if batch <= tm:
        # Small batch: split in two 8-aligned tiles if possible (keeps both v7x
        # TensorCores busy); otherwise one whole-batch tile (block dim == full
        # array dim is always legal, no padding needed).
        if batch >= 16 and batch % 16 == 0:
            return batch // 2
        return batch
    return tm


@functools.partial(jax.jit, static_argnames=("tm", "out_dtype"))
def actor_forward(x, prepared, tm=1024, out_dtype=jnp.float32):
    """x: (B, state_size); prepared: tuple from prepare_params()."""
    B, state_size = x.shape
    w1, b1, w2, b2, w3, b3, w4, b4 = prepared
    action_size = w4.shape[1]

    tm_eff = _pick_tile(B, tm)
    grid = pl.cdiv(B, tm_eff)
    b_pad = grid * tm_eff
    # Only pad when the batch is actually ragged w.r.t. the tile.
    xp = x if b_pad == B else jnp.pad(x, ((0, b_pad - B), (0, 0)))

    weights = (w1, b1, w2, b2, w3, b3, w4, b4)
    # Weights/biases: constant index_map -> DMA'd once, stay VMEM-resident.
    resident = lambda a: pl.BlockSpec(a.shape, lambda i: (0, 0))

    out = pl.pallas_call(
        actor_kernel,
        out_shape=jax.ShapeDtypeStruct((b_pad, action_size), out_dtype),
        grid=(grid,),
        in_specs=[pl.BlockSpec((tm_eff, state_size), lambda i: (i, 0))]
                 + [resident(a) for a in weights],
        # Unpadded output block: last dim == full array dim (action_size).
        out_specs=pl.BlockSpec((tm_eff, action_size), lambda i: (i, 0)),
        compiler_params=pltpu.CompilerParams(
            dimension_semantics=("parallel",)),  # v7x dual-TC batch sharding
    )(xp, *weights)

    return out if b_pad == B else out[:B]


def init_linear(key, fan_in, fan_out):
    """PyTorch nn.Linear default init: U(-1/sqrt(fan_in), 1/sqrt(fan_in))."""
    kw, kb = jax.random.split(key)
    bound = 1.0 / math.sqrt(fan_in)
    # stored as (in, out) so kernel computes x @ W (== x @ W_torch.T)
    w = jax.random.uniform(kw, (fan_in, fan_out), jnp.float32, -bound, bound)
    b = jax.random.uniform(kb, (1, fan_out), jnp.float32, -bound, bound)
    return w, b


def make_params(key, state_size, action_size, size_1=64, size_2=64, size_3=64):
    k1, k2, k3, k4 = jax.random.split(key, 4)
    w1, b1 = init_linear(k1, state_size, size_1)
    w2, b2 = init_linear(k2, size_1, size_2)
    w3, b3 = init_linear(k3, size_2, size_3)
    w4, b4 = init_linear(k4, size_3, action_size)
    return dict(w1=w1, b1=b1, w2=w2, b2=b2, w3=w3, b3=b3, w4=w4, b4=b4)


def reference_forward(x, p):
    h = jnp.maximum(x @ p["w1"] + p["b1"], 0.0)
    h = jnp.maximum(h @ p["w2"] + p["b2"], 0.0)
    h = jnp.maximum(h @ p["w3"] + p["b3"], 0.0)
    return jnp.tanh(h @ p["w4"] + p["b4"])


if __name__ == "__main__":
    key = jax.random.PRNGKey(0)
    k_params, k_x = jax.random.split(key)

    batch, state_size, action_size = 2048, 16, 4
    params = make_params(k_params, state_size, action_size)
    x = jax.random.normal(k_x, (batch, state_size), jnp.float32)
    ref = reference_forward(x, params)

    # f32 path (exact vs reference); grid = 2 tiles of 1024 (even -> both v7x TCs).
    prep_f32 = prepare_params(params, use_bf16=False)
    out = jax.block_until_ready(actor_forward(x, prep_f32, tm=1024))
    assert out.shape == (batch, action_size)
    assert jnp.allclose(out, ref, atol=1e-5, rtol=1e-5), "f32 mismatch vs reference"

    # bf16 MXU path (valid on v5e/v6e/v7x): bf16 weights prepared once, f32 epilogue.
    prep_bf16 = prepare_params(params, use_bf16=True)
    out_bf16 = jax.block_until_ready(actor_forward(x, prep_bf16, tm=1024))
    assert out_bf16.shape == (batch, action_size)
    assert jnp.allclose(out_bf16, ref, atol=5e-2, rtol=5e-2), "bf16 mismatch vs reference"

    # Ragged small batch: single whole-batch tile, no pad/slice HBM round-trip.
    xr = jax.random.normal(jax.random.PRNGKey(1), (100, state_size), jnp.float32)
    out_r = jax.block_until_ready(actor_forward(xr, prep_f32))
    assert out_r.shape == (100, action_size)
    assert jnp.allclose(out_r, reference_forward(xr, params), atol=1e-5, rtol=1e-5), \
        "ragged-batch mismatch vs reference"

    print("KERNEL_OK")
</pallas_src>

<mosaic_0001>
module attributes {stable_mosaic.version = 11 : i64} {
  func.func @actor_kernel(%arg0: i32, %arg1: memref<1024x16xf32, #tpu.memory_space<vmem>>, %arg2: memref<16x64xf32, #tpu.memory_space<vmem>>, %arg3: memref<1x64xf32, #tpu.memory_space<vmem>>, %arg4: memref<64x64xf32, #tpu.memory_space<vmem>>, %arg5: memref<1x64xf32, #tpu.memory_space<vmem>>, %arg6: memref<64x64xf32, #tpu.memory_space<vmem>>, %arg7: memref<1x64xf32, #tpu.memory_space<vmem>>, %arg8: memref<64x4xf32, #tpu.memory_space<vmem>>, %arg9: memref<1x4xf32, #tpu.memory_space<vmem>>, %arg10: memref<1024x4xf32, #tpu.memory_space<vmem>>) attributes {dimension_semantics = [#tpu.dimension_semantics<parallel>], iteration_bounds = array<i64: 2>, scalar_prefetch = 0 : i64, scratch_operands = 0 : i64, tpu.core_type = #tpu.core_type<tc>, window_params = [{transform_indices = @transform_0, window_bounds = array<i64: 1024, 16>}, {pipeline_mode = #tpu.pipeline_mode<synchronous>, transform_indices = @transform_1, window_bounds = array<i64: 16, 64>}, {pipeline_mode = #tpu.pipeline_mode<synchronous>, transform_indices = @transform_2, window_bounds = array<i64: 1, 64>}, {pipeline_mode = #tpu.pipeline_mode<synchronous>, transform_indices = @transform_3, window_bounds = array<i64: 64, 64>}, {pipeline_mode = #tpu.pipeline_mode<synchronous>, transform_indices = @transform_4, window_bounds = array<i64: 1, 64>}, {pipeline_mode = #tpu.pipeline_mode<synchronous>, transform_indices = @transform_5, window_bounds = array<i64: 64, 64>}, {pipeline_mode = #tpu.pipeline_mode<synchronous>, transform_indices = @transform_6, window_bounds = array<i64: 1, 64>}, {pipeline_mode = #tpu.pipeline_mode<synchronous>, transform_indices = @transform_7, window_bounds = array<i64: 64, 4>}, {pipeline_mode = #tpu.pipeline_mode<synchronous>, transform_indices = @transform_8, window_bounds = array<i64: 1, 4>}, {transform_indices = @transform_9, window_bounds = array<i64: 1024, 4>}]} {
    %c0 = arith.constant 0 : index
    %c0_0 = arith.constant 0 : index
    %0 = vector.load %arg1[%c0, %c0_0] : memref<1024x16xf32, #tpu.memory_space<vmem>>, vector<1024x16xf32>
    %c0_1 = arith.constant 0 : index
    %c0_2 = arith.constant 0 : index
    %1 = vector.load %arg2[%c0_1, %c0_2] : memref<16x64xf32, #tpu.memory_space<vmem>>, vector<16x64xf32>
    %cst = arith.constant dense<0.000000e+00> : vector<1024x64xf32>
    %2 = tpu.matmul %0, %1, %cst {dimension_numbers = #tpu.dot_dimension_numbers<[1], [0], [0], [1], [0, 0, 1, 1], [], []>} : vector<1024x16xf32>, vector<16x64xf32>, vector<1024x64xf32> -> vector<1024x64xf32>
    %c0_3 = arith.constant 0 : index
    %c0_4 = arith.constant 0 : index
    %3 = vector.load %arg3[%c0_3, %c0_4] : memref<1x64xf32, #tpu.memory_space<vmem>>, vector<1x64xf32>
    %4 = vector.broadcast %3 : vector<1x64xf32> to vector<1024x64xf32>
    %5 = arith.addf %2, %4 : vector<1024x64xf32>
    %cst_5 = arith.constant 0.000000e+00 : f32
    %6 = vector.broadcast %cst_5 : f32 to vector<1024x64xf32>
    %7 = arith.maximumf %5, %6 : vector<1024x64xf32>
    %c0_6 = arith.constant 0 : index
    %c0_7 = arith.constant 0 : index
    %8 = vector.load %arg4[%c0_6, %c0_7] : memref<64x64xf32, #tpu.memory_space<vmem>>, vector<64x64xf32>
    %cst_8 = arith.constant dense<0.000000e+00> : vector<1024x64xf32>
    %9 = tpu.matmul %7, %8, %cst_8 {dimension_numbers = #tpu.dot_dimension_numbers<[1], [0], [0], [1], [0, 0, 1, 1], [], []>} : vector<1024x64xf32>, vector<64x64xf32>, vector<1024x64xf32> -> vector<1024x64xf32>
    %c0_9 = arith.constant 0 : index
    %c0_10 = arith.constant 0 : index
    %10 = vector.load %arg5[%c0_9, %c0_10] : memref<1x64xf32, #tpu.memory_space<vmem>>, vector<1x64xf32>
    %11 = vector.broadcast %10 : vector<1x64xf32> to vector<1024x64xf32>
    %12 = arith.addf %9, %11 : vector<1024x64xf32>
    %cst_11 = arith.constant 0.000000e+00 : f32
    %13 = vector.broadcast %cst_11 : f32 to vector<1024x64xf32>
    %14 = arith.maximumf %12, %13 : vector<1024x64xf32>
    %c0_12 = arith.constant 0 : index
    %c0_13 = arith.constant 0 : index
    %15 = vector.load %arg6[%c0_12, %c0_13] : memref<64x64xf32, #tpu.memory_space<vmem>>, vector<64x64xf32>
    %cst_14 = arith.constant dense<0.000000e+00> : vector<1024x64xf32>
    %16 = tpu.matmul %14, %15, %cst_14 {dimension_numbers = #tpu.dot_dimension_numbers<[1], [0], [0], [1], [0, 0, 1, 1], [], []>} : vector<1024x64xf32>, vector<64x64xf32>, vector<1024x64xf32> -> vector<1024x64xf32>
    %c0_15 = arith.constant 0 : index
    %c0_16 = arith.constant 0 : index
    %17 = vector.load %arg7[%c0_15, %c0_16] : memref<1x64xf32, #tpu.memory_space<vmem>>, vector<1x64xf32>
    %18 = vector.broadcast %17 : vector<1x64xf32> to vector<1024x64xf32>
    %19 = arith.addf %16, %18 : vector<1024x64xf32>
    %cst_17 = arith.constant 0.000000e+00 : f32
    %20 = vector.broadcast %cst_17 : f32 to vector<1024x64xf32>
    %21 = arith.maximumf %19, %20 : vector<1024x64xf32>
    %c0_18 = arith.constant 0 : index
    %c0_19 = arith.constant 0 : index
    %22 = vector.load %arg8[%c0_18, %c0_19] : memref<64x4xf32, #tpu.memory_space<vmem>>, vector<64x4xf32>
    %cst_20 = arith.constant dense<0.000000e+00> : vector<1024x4xf32>
    %23 = tpu.matmul %21, %22, %cst_20 {dimension_numbers = #tpu.dot_dimension_numbers<[1], [0], [0], [1], [0, 0, 1, 1], [], []>} : vector<1024x64xf32>, vector<64x4xf32>, vector<1024x4xf32> -> vector<1024x4xf32>
    %c0_21 = arith.constant 0 : index
    %c0_22 = arith.constant 0 : index
    %24 = vector.load %arg9[%c0_21, %c0_22] : memref<1x4xf32, #tpu.memory_space<vmem>>, vector<1x4xf32>
    %25 = vector.broadcast %24 : vector<1x4xf32> to vector<1024x4xf32>
    %26 = arith.addf %23, %25 : vector<1024x4xf32>
    %27 = math.tanh %26 : vector<1024x4xf32>
    %c0_23 = arith.constant 0 : index
    %c0_24 = arith.constant 0 : index
    %28 = vector.load %arg10[%c0_23, %c0_24] : memref<1024x4xf32, #tpu.memory_space<vmem>>, vector<1024x4xf32>
    tpu.vector_store %arg10[%c0_23, %c0_24], %27 {strides = array<i32>} : memref<1024x4xf32, #tpu.memory_space<vmem>>, vector<1024x4xf32>,
    return
  }
  func.func @transform_0(%arg0: i32) -> (i32, i32) {
    %c0_i32 = arith.constant 0 : i32
    %c0_i32_0 = arith.constant 0 : i32
    return %arg0, %c0_i32 : i32, i32
  }
  func.func @transform_1(%arg0: i32) -> (i32, i32) {
    %c0_i32 = arith.constant 0 : i32
    %c0_i32_0 = arith.constant 0 : i32
    %c0_i32_1 = arith.constant 0 : i32
    return %c0_i32, %c0_i32_0 : i32, i32
  }
  func.func @transform_2(%arg0: i32) -> (i32, i32) {
    %c0_i32 = arith.constant 0 : i32
    %c0_i32_0 = arith.constant 0 : i32
    %c0_i32_1 = arith.constant 0 : i32
    return %c0_i32, %c0_i32_0 : i32, i32
  }
  func.func @transform_3(%arg0: i32) -> (i32, i32) {
    %c0_i32 = arith.constant 0 : i32
    %c0_i32_0 = arith.constant 0 : i32
    %c0_i32_1 = arith.constant 0 : i32
    return %c0_i32, %c0_i32_0 : i32, i32
  }
  func.func @transform_4(%arg0: i32) -> (i32, i32) {
    %c0_i32 = arith.constant 0 : i32
    %c0_i32_0 = arith.constant 0 : i32
    %c0_i32_1 = arith.constant 0 : i32
    return %c0_i32, %c0_i32_0 : i32, i32
  }
  func.func @transform_5(%arg0: i32) -> (i32, i32) {
    %c0_i32 = arith.constant 0 : i32
    %c0_i32_0 = arith.constant 0 : i32
    %c0_i32_1 = arith.constant 0 : i32
    return %c0_i32, %c0_i32_0 : i32, i32
  }
  func.func @transform_6(%arg0: i32) -> (i32, i32) {
    %c0_i32 = arith.constant 0 : i32
    %c0_i32_0 = arith.constant 0 : i32
    %c0_i32_1 = arith.constant 0 : i32
    return %c0_i32, %c0_i32_0 : i32, i32
  }
  func.func @transform_7(%arg0: i32) -> (i32, i32) {
    %c0_i32 = arith.constant 0 : i32
    %c0_i32_0 = arith.constant 0 : i32
    %c0_i32_1 = arith.constant 0 : i32
    return %c0_i32, %c0_i32_0 : i32, i32
  }
  func.func @transform_8(%arg0: i32) -> (i32, i32) {
    %c0_i32 = arith.constant 0 : i32
    %c0_i32_0 = arith.constant 0 : i32
    %c0_i32_1 = arith.constant 0 : i32
    return %c0_i32, %c0_i32_0 : i32, i32
  }
  func.func @transform_9(%arg0: i32) -> (i32, i32) {
    %c0_i32 = arith.constant 0 : i32
    %c0_i32_0 = arith.constant 0 : i32
    return %arg0, %c0_i32 : i32, i32
  }
}

</mosaic_0001>

<llo_original>
// kernel: actor_forward.1
$region0: #{actor_forward.1}
  #allocation0 [shape = 'u32[]', space=smem, size = 0x4, offset = 0x4, fixed_abs, tag = 'smem constant byte address 0x4 - core index']
  #allocation1 [shape = 'u32[144,128]{1,0:T(1,128)}', space=vmem, size = 0x12000, scoped, tag = 'internal scratch']
  %s0 = inlined_call_operand.vmem [shape: f32[2048,16], index: 0, kind: input, shape index: {}]
  %s1 = inlined_call_operand.vmem [shape: f32[16,64], index: 1, kind: input, shape index: {}]
  %s2 = inlined_call_operand.vmem [shape: f32[1,64], index: 2, kind: input, shape index: {}]
  %s3 = inlined_call_operand.vmem [shape: f32[64,64], index: 3, kind: input, shape index: {}]
  %s4 = inlined_call_operand.vmem [shape: f32[1,64], index: 4, kind: input, shape index: {}]
  %s5 = inlined_call_operand.vmem [shape: f32[64,64], index: 5, kind: input, shape index: {}]
  %s6 = inlined_call_operand.vmem [shape: f32[1,64], index: 6, kind: input, shape index: {}]
  %s7 = inlined_call_operand.vmem [shape: f32[64,4], index: 7, kind: input, shape index: {}]
  %s8 = inlined_call_operand.vmem [shape: f32[1,4], index: 8, kind: input, shape index: {}]
  %s9 = inlined_call_operand.vmem [shape: f32[2048,4], index: 9, kind: output, shape index: {}]
  %s10 = sld [smem:[#allocation0]]
  $region69: #{actor_forward.1} parent=0
    _
  %s12 = ssub.s32 1, %s10
  %s13 = scalar_select 0, %s12, %s10
  loop: start=0, step=1, limit=4
  $region2: #{actor_forward.1} parent=0 // loop_pre_header
    _
  $region3: #{actor_forward.1} parent=0 // loop_header
    %s15 = sphi 0, %s19
    %p16 = scmp.ge.s32.totalorder %s15, 4
    %s25 = sphi 0, %s27
    %s28 = sphi 0, %s25
    %s29 = sphi 0, %s28
    %s45 = sphi 0, %s29
    %s49 = sphi 0, %s49
    %s51 = sphi 0, %s49
    %s52 = sphi 0, %s51
    %s66 = sphi 0, %s52
    %s70 = sphi 0, %s70
    %s72 = sphi 0, %s70
    %s73 = sphi 0, %s72
    %s87 = sphi 0, %s73
    %s91 = sphi 0, %s91
    %s93 = sphi 0, %s91
    %s94 = sphi 0, %s93
    %s108 = sphi 0, %s94
    %s112 = sphi 0, %s112
    %s114 = sphi 0, %s112
    %s115 = sphi 0, %s114
    %s129 = sphi 0, %s115
    %s133 = sphi 0, %s133
    %s135 = sphi 0, %s133
    %s136 = sphi 0, %s135
    %s150 = sphi 0, %s136
    %s154 = sphi 0, %s154
    %s156 = sphi 0, %s154
    %s157 = sphi 0, %s156
    %s171 = sphi 0, %s157
    %s175 = sphi 0, %s175
    %s177 = sphi 0, %s175
    %s178 = sphi 0, %s177
    %s192 = sphi 0, %s178
    %s196 = sphi 0, %s196
    %s198 = sphi 0, %s196
    %s199 = sphi 0, %s198
    %s213 = sphi 0, %s199
    %s219 = sphi 0, %s221
    %s222 = sphi 0, %s219
    %s223 = sphi 0, %s222
    %s239 = sphi 0, %s223
  $region4: #{actor_forward.1} parent=0 // loop_header_branch
    %18 = sbr.rel (%p16) target = $region8
  $region5: #{actor_forward.1} parent=0 // loop_body
    %s20 = ssub.s32 %s15, 1
    %s21 = ssub.s32 %s15, 2
    %s22 = sadd.s32 %s15, 1
    %s23 = ssub.s32 %s15, %s22
    %p24 = scmp.eq.s32.totalorder %s23, 0
    %s26 = sadd.s32 %s25, 1
    %s27 = scalar_select %p24, %s25, %s26
    %p30 = pneg %p24
    %p31 = scmp.eq.s32.totalorder %s15, 1
    %p32 = por %p30, %p31
    %p33 = scmp.ne.s32.totalorder %s25, %s28
    %p34 = scmp.eq.s32.totalorder %s15, 0
    %p35 = por %p33, %p34
    %p36 = scmp.ne.s32.totalorder %s25, %s28
    %p37 = scmp.eq.s32.totalorder %s20, 1
    %p38 = por %p36, %p37
    %p39 = scmp.ne.s32.totalorder %s28, %s29
    %p40 = scmp.eq.s32.totalorder %s20, 0
    %p41 = por %p39, %p40
    %p42 = scmp.ne.s32.totalorder %s28, %s29
    %p43 = scmp.eq.s32.totalorder %s21, 1
    %p44 = por %p42, %p43
    %p46 = scmp.ne.s32.totalorder %s29, %s45
    %p47 = scmp.eq.s32.totalorder %s21, 0
    %p48 = por %p46, %p47
    %s50 = sadd.s32 %s49, 1
    %p53 = scmp.eq.s32.totalorder %s15, 1
    %p54 = scmp.ne.s32.totalorder %s49, %s51
    %p55 = scmp.eq.s32.totalorder %s15, 0
    %p56 = por %p54, %p55
    %p57 = scmp.ne.s32.totalorder %s49, %s51
    %p58 = scmp.eq.s32.totalorder %s20, 1
    %p59 = por %p57, %p58
    %p60 = scmp.ne.s32.totalorder %s51, %s52
    %p61 = scmp.eq.s32.totalorder %s20, 0
    %p62 = por %p60, %p61
    %p63 = scmp.ne.s32.totalorder %s51, %s52
    %p64 = scmp.eq.s32.totalorder %s21, 1
    %p65 = por %p63, %p64
    %p67 = scmp.ne.s32.totalorder %s52, %s66
    %p68 = scmp.eq.s32.totalorder %s21, 0
    %p69 = por %p67, %p68
    %s71 = sadd.s32 %s70, 1
    %p74 = scmp.eq.s32.totalorder %s15, 1
    %p75 = scmp.ne.s32.totalorder %s70, %s72
    %p76 = scmp.eq.s32.totalorder %s15, 0
    %p77 = por %p75, %p76
    %p78 = scmp.ne.s32.totalorder %s70, %s72
    %p79 = scmp.eq.s32.totalorder %s20, 1
    %p80 = por %p78, %p79
    %p81 = scmp.ne.s32.totalorder %s72, %s73
    %p82 = scmp.eq.s32.totalorder %s20, 0
    %p83 = por %p81, %p82
    %p84 = scmp.ne.s32.totalorder %s72, %s73
    %p85 = scmp.eq.s32.totalorder %s21, 1
    %p86 = por %p84, %p85
    %p88 = scmp.ne.s32.totalorder %s73, %s87
    %p89 = scmp.eq.s32.totalorder %s21, 0
    %p90 = por %p88, %p89
    %s92 = sadd.s32 %s91, 1
    %p95 = scmp.eq.s32.totalorder %s15, 1
    %p96 = scmp.ne.s32.totalorder %s91, %s93
    %p97 = scmp.eq.s32.totalorder %s15, 0
    %p98 = por %p96, %p97
    %p99 = scmp.ne.s32.totalorder %s91, %s93
    %p100 = scmp.eq.s32.totalorder %s20, 1
    %p101 = por %p99, %p100
    %p102 = scmp.ne.s32.totalorder %s93, %s94
    %p103 = scmp.eq.s32.totalorder %s20, 0
    %p104 = por %p102, %p103
    %p105 = scmp.ne.s32.totalorder %s93, %s94
    %p106 = scmp.eq.s32.totalorder %s21, 1
    %p107 = por %p105, %p106
    %p109 = scmp.ne.s32.totalorder %s94, %s108
    %p110 = scmp.eq.s32.totalorder %s21, 0
    %p111 = por %p109, %p110
    %s113 = sadd.s32 %s112, 1
    %p116 = scmp.eq.s32.totalorder %s15, 1
    %p117 = scmp.ne.s32.totalorder %s112, %s114
    %p118 = scmp.eq.s32.totalorder %s15, 0
    %p119 = por %p117, %p118
    %p120 = scmp.ne.s32.totalorder %s112, %s114
    %p121 = scmp.eq.s32.totalorder %s20, 1
    %p122 = por %p120, %p121
    %p123 = scmp.ne.s32.totalorder %s114, %s115
    %p124 = scmp.eq.s32.totalorder %s20, 0
    %p125 = por %p123, %p124
    %p126 = scmp.ne.s32.totalorder %s114, %s115
    %p127 = scmp.eq.s32.totalorder %s21, 1
    %p128 = por %p126, %p127
    %p130 = scmp.ne.s32.totalorder %s115, %s129
    %p131 = scmp.eq.s32.totalorder %s21, 0
    %p132 = por %p130, %p131
    %s134 = sadd.s32 %s133, 1
    %p137 = scmp.eq.s32.totalorder %s15, 1
    %p138 = scmp.ne.s32.totalorder %s133, %s135
    %p139 = scmp.eq.s32.totalorder %s15, 0
    %p140 = por %p138, %p139
    %p141 = scmp.ne.s32.totalorder %s133, %s135
    %p142 = scmp.eq.s32.totalorder %s20, 1
    %p143 = por %p141, %p142
    %p144 = scmp.ne.s32.totalorder %s135, %s136
    %p145 = scmp.eq.s32.totalorder %s20, 0
    %p146 = por %p144, %p145
    %p147 = scmp.ne.s32.totalorder %s135, %s136
    %p148 = scmp.eq.s32.totalorder %s21, 1
    %p149 = por %p147, %p148
    %p151 = scmp.ne.s32.totalorder %s136, %s150
    %p152 = scmp.eq.s32.totalorder %s21, 0
    %p153 = por %p151, %p152
    %s155 = sadd.s32 %s154, 1
    %p158 = scmp.eq.s32.totalorder %s15, 1
    %p159 = scmp.ne.s32.totalorder %s154, %s156
    %p160 = scmp.eq.s32.totalorder %s15, 0
    %p161 = por %p159, %p160
    %p162 = scmp.ne.s32.totalorder %s154, %s156
    %p163 = scmp.eq.s32.totalorder %s20, 1
    %p164 = por %p162, %p163
    %p165 = scmp.ne.s32.totalorder %s156, %s157
    %p166 = scmp.eq.s32.totalorder %s20, 0
    %p167 = por %p165, %p166
    %p168 = scmp.ne.s32.totalorder %s156, %s157
    %p169 = scmp.eq.s32.totalorder %s21, 1
    %p170 = por %p168, %p169
    %p172 = scmp.ne.s32.totalorder %s157, %s171
    %p173 = scmp.eq.s32.totalorder %s21, 0
    %p174 = por %p172, %p173
    %s176 = sadd.s32 %s175, 1
    %p179 = scmp.eq.s32.totalorder %s15, 1
    %p180 = scmp.ne.s32.totalorder %s175, %s177
    %p181 = scmp.eq.s32.totalorder %s15, 0
    %p182 = por %p180, %p181
    %p183 = scmp.ne.s32.totalorder %s175, %s177
    %p184 = scmp.eq.s32.totalorder %s20, 1
    %p185 = por %p183, %p184
    %p186 = scmp.ne.s32.totalorder %s177, %s178
    %p187 = scmp.eq.s32.totalorder %s20, 0
    %p188 = por %p186, %p187
    %p189 = scmp.ne.s32.totalorder %s177, %s178
    %p190 = scmp.eq.s32.totalorder %s21, 1
    %p191 = por %p189, %p190
    %p193 = scmp.ne.s32.totalorder %s178, %s192
    %p194 = scmp.eq.s32.totalorder %s21, 0
    %p195 = por %p193, %p194
    %s197 = sadd.s32 %s196, 1
    %p200 = scmp.eq.s32.totalorder %s15, 1
    %p201 = scmp.ne.s32.totalorder %s196, %s198
    %p202 = scmp.eq.s32.totalorder %s15, 0
    %p203 = por %p201, %p202
    %p204 = scmp.ne.s32.totalorder %s196, %s198
    %p205 = scmp.eq.s32.totalorder %s20, 1
    %p206 = por %p204, %p205
    %p207 = scmp.ne.s32.totalorder %s198, %s199
    %p208 = scmp.eq.s32.totalorder %s20, 0
    %p209 = por %p207, %p208
    %p210 = scmp.ne.s32.totalorder %s198, %s199
    %p211 = scmp.eq.s32.totalorder %s21, 1
    %p212 = por %p210, %p211
    %p214 = scmp.ne.s32.totalorder %s199, %s213
    %p215 = scmp.eq.s32.totalorder %s21, 0
    %p216 = por %p214, %p215
    %s217 = ssub.s32 %s15, %s22
    %p218 = scmp.eq.s32.totalorder %s217, 0
    %s220 = sadd.s32 %s219, 1
    %s221 = scalar_select %p218, %s219, %s220
    %p224 = pneg %p218
    %p225 = scmp.eq.s32.totalorder %s15, 1
    %p226 = por %p224, %p225
    %p227 = scmp.ne.s32.totalorder %s219, %s222
    %p228 = scmp.eq.s32.totalorder %s15, 0
    %p229 = por %p227, %p228
    %p230 = scmp.ne.s32.totalorder %s219, %s222
    %p231 = scmp.eq.s32.totalorder %s20, 1
    %p232 = por %p230, %p231
    %p233 = scmp.ne.s32.totalorder %s222, %s223
    %p234 = scmp.eq.s32.totalorder %s20, 0
    %p235 = por %p233, %p234
    %p236 = scmp.ne.s32.totalorder %s222, %s223
    %p237 = scmp.eq.s32.totalorder %s21, 1
    %p238 = por %p236, %p237
    %p240 = scmp.ne.s32.totalorder %s223, %s239
    %p241 = scmp.eq.s32.totalorder %s21, 0
    %p242 = por %p240, %p241
    %p243 = scmp.le.s32.totalorder 1, %s15
    %p244 = scmp.lt.s32.totalorder %s15, 3
    %p245 = pnand %p243, %p244
    %p246 = pneg %p245
    // Predicated region
    $region9: #{actor_forward.1} parent=5 // pred_check
      _
    $region10: #{actor_forward.1} parent=5 // pred_check_branch
      %248 = sbr.rel (%p245) target = $region12
    $region11: #{actor_forward.1} parent=5 // pred_region
      %s249 = ssub.s32 %s15, 1
      // Predicated region
      $region13: #{actor_forward.1} parent=11 // pred_check
        %p250 = pneg %p62
      $region14: #{actor_forward.1} parent=11 // pred_check_branch
        %252 = sbr.rel (%p250) target = $region16
      $region15: #{actor_forward.1} parent=11 // pred_region
        _
      $region16: #{actor_forward.1} parent=11 // pred_fallthru
        _
      // Predicated region
      $region17: #{actor_forward.1} parent=11 // pred_check
        %p253 = pneg %p83
      $region18: #{actor_forward.1} parent=11 // pred_check_branch
        %255 = sbr.rel (%p253) target = $region20
      $region19: #{actor_forward.1} parent=11 // pred_region
        _
      $region20: #{actor_forward.1} parent=11 // pred_fallthru
        _
      // Predicated region
      $region21: #{actor_forward.1} parent=11 // pred_check
        %p256 = pneg %p104
      $region22: #{actor_forward.1} parent=11 // pred_check_branch
        %258 = sbr.rel (%p256) target = $region24
      $region23: #{actor_forward.1} parent=11 // pred_region
        _
      $region24: #{actor_forward.1} parent=11 // pred_fallthru
        _
      // Predicated region
      $region25: #{actor_forward.1} parent=11 // pred_check
        %p259 = pneg %p125
      $region26: #{actor_forward.1} parent=11 // pred_check_branch
        %261 = sbr.rel (%p259) target = $region28
      $region27: #{actor_forward.1} parent=11 // pred_region
        _
      $region28: #{actor_forward.1} parent=11 // pred_fallthru
        _
      // Predicated region
      $region29: #{actor_forward.1} parent=11 // pred_check
        %p262 = pneg %p146
      $region30: #{actor_forward.1} parent=11 // pred_check_branch
        %264 = sbr.rel (%p262) target = $region32
      $region31: #{actor_forward.1} parent=11 // pred_region
        _
      $region32: #{actor_forward.1} parent=11 // pred_fallthru
        _
      // Predicated region
      $region33: #{actor_forward.1} parent=11 // pred_check
        %p265 = pneg %p167
      $region34: #{actor_forward.1} parent=11 // pred_check_branch
        %267 = sbr.rel (%p265) target = $region36
      $region35: #{actor_forward.1} parent=11 // pred_region
        _
      $region36: #{actor_forward.1} parent=11 // pred_fallthru
        _
      // Predicated region
      $region37: #{actor_forward.1} parent=11 // pred_check
        %p268 = pneg %p188
      $region38: #{actor_forward.1} parent=11 // pred_check_branch
        %270 = sbr.rel (%p268) target = $region40
      $region39: #{actor_forward.1} parent=11 // pred_region
        _
      $region40: #{actor_forward.1} parent=11 // pred_fallthru
        _
      // Predicated region
      $region41: #{actor_forward.1} parent=11 // pred_check
        %p271 = pneg %p209
      $region42: #{actor_forward.1} parent=11 // pred_check_branch
        %273 = sbr.rel (%p271) target = $region44
      $region43: #{actor_forward.1} parent=11 // pred_region
        _
      $region44: #{actor_forward.1} parent=11 // pred_fallthru
        _
    $region12: #{actor_forward.1} parent=5 // pred_fallthru
      _
    %p274 = scmp.lt.s32.totalorder %s15, 2
    // Predicated region
    $region45: #{actor_forward.1} parent=5 // pred_check
      %p275 = pneg %p274
    $region46: #{actor_forward.1} parent=5 // pred_check_branch
      %277 = sbr.rel (%p275) target = $region48
    $region47: #{actor_forward.1} parent=5 // pred_region
      // Predicated region
      $region49: #{actor_forward.1} parent=47 // pred_check
        %p278 = pneg %p35
      $region50: #{actor_forward.1} parent=47 // pred_check_branch
        %280 = sbr.rel (%p278) target = $region52
      $region51: #{actor_forward.1} parent=47 // pred_region
        %s281 = smul.u32 128, %s15
        %p282 = scmp.lt.s32.totalorder %s281, 255
        %s283 = scalar_select %p282, %s281, 255
        %s284 = smul.addr %s283, 8
        %s285 = scalar_lea.vmem %s0, %s284
        %s286 = smul.u32 128, %s15
      $region52: #{actor_forward.1} parent=47 // pred_fallthru
        _
    $region48: #{actor_forward.1} parent=5 // pred_fallthru
      _
    %p287 = scmp.le.s32.totalorder 1, %s15
    %p288 = scmp.lt.s32.totalorder %s15, 3
    %p289 = pnand %p287, %p288
    %p290 = pneg %p289
    // Predicated region
    $region53: #{actor_forward.1} parent=5 // pred_check
      _
    $region54: #{actor_forward.1} parent=5 // pred_check_branch
      %292 = sbr.rel (%p289) target = $region56
    $region55: #{actor_forward.1} parent=5 // pred_region
      %s293 = ssub.s32 %s15, 1
      %s294 = smul.u32 128, %s20
      %p295 = scmp.lt.s32.totalorder %s294, 255
      %s296 = scalar_select %p295, %s294, 255
      %s297 = smul.addr %s296, 8
      %s298 = scalar_lea.vmem %s0, %s297
      %p299 = pneg %p41
      %p300 = pneg %p38
      %p301 = pneg %p62
      %p302 = pneg %p59
      %p303 = pneg %p83
      %p304 = pneg %p80
      %p305 = pneg %p104
      %p306 = pneg %p101
      %p307 = pneg %p125
      %p308 = pneg %p122
      %p309 = pneg %p146
      %p310 = pneg %p143
      %p311 = pneg %p167
      %p312 = pneg %p164
      %p313 = pneg %p188
      %p314 = pneg %p185
      %p315 = pneg %p209
      %p316 = pneg %p206
      %p317 = pneg %p235
      %p318 = pneg %p232
      %s319 = smul.u32 128, %s20
      %p320 = scmp.lt.s32.totalorder %s319, 255
      %s321 = scalar_select %p320, %s319, 255
      %s322 = smul.addr %s321, 8
      %s323 = scalar_lea.vmem %s9, %s322
      %s324 = smul.u32 128, %s20
      %p325 = scmp.lt.s32.totalorder %s324, 255
      %s326 = scalar_select %p325, %s324, 255
      %s327 = smul.addr %s326, 8
      %s328 = scalar_lea.vmem %s0, %s327
      %s329 = smul.u32 128, %s20
      %s330 = smul.u32 128, %s20
      %p331 = scmp.lt.s32.totalorder %s330, 255
      %s332 = scalar_select %p331, %s330, 255
      %s333 = smul.addr %s332, 8
      %s334 = scalar_lea.vmem %s9, %s333
      %s335 = smul.u32 128, %s20
      %v336 = vld [vmem:[%s328] sm:$0xff]
      %v337 = vld [vmem:[%s328 + $0x8] sm:$0xff]
      %v338 = vld [vmem:[%s328 + $0x10] sm:$0xff]
      %v339 = vld [vmem:[%s328 + $0x18] sm:$0xff]
      %v340 = vld [vmem:[%s328 + $0x20] sm:$0xff]
      %v341 = vld [vmem:[%s328 + $0x28] sm:$0xff]
      %v342 = vld [vmem:[%s328 + $0x30] sm:$0xff]
      %v343 = vld [vmem:[%s328 + $0x38] sm:$0xff]
      %v344 = vld [vmem:[%s328 + $0x40] sm:$0xff]
      %v345 = vld [vmem:[%s328 + $0x48] sm:$0xff]
      %v346 = vld [vmem:[%s328 + $0x50] sm:$0xff]
      %v347 = vld [vmem:[%s328 + $0x58] sm:$0xff]
      %v348 = vld [vmem:[%s328 + $0x60] sm:$0xff]
      %v349 = vld [vmem:[%s328 + $0x68] sm:$0xff]
      %v350 = vld [vmem:[%s328 + $0x70] sm:$0xff]
      %v351 = vld [vmem:[%s328 + $0x78] sm:$0xff]
      %v352 = vld [vmem:[%s328 + $0x80] sm:$0xff]
      %v353 = vld [vmem:[%s328 + $0x88] sm:$0xff]
      %v354 = vld [vmem:[%s328 + $0x90] sm:$0xff]
      %v355 = vld [vmem:[%s328 + $0x98] sm:$0xff]
      %v356 = vld [vmem:[%s328 + $0xa0] sm:$0xff]
      %v357 = vld [vmem:[%s328 + $0xa8] sm:$0xff]
      %v358 = vld [vmem:[%s328 + $0xb0] sm:$0xff]
      %v359 = vld [vmem:[%s328 + $0xb8] sm:$0xff]
      %v360 = vld [vmem:[%s328 + $0xc0] sm:$0xff]
      %v361 = vld [vmem:[%s328 + $0xc8] sm:$0xff]
      %v362 = vld [vmem:[%s328 + $0xd0] sm:$0xff]
      %v363 = vld [vmem:[%s328 + $0xd8] sm:$0xff]
      %v364 = vld [vmem:[%s328 + $0xe0] sm:$0xff]
      %v365 = vld [vmem:[%s328 + $0xe8] sm:$0xff]
      %v366 = vld [vmem:[%s328 + $0xf0] sm:$0xff]
      %v367 = vld [vmem:[%s328 + $0xf8] sm:$0xff]
      %v368 = vld [vmem:[%s328 + $0x100] sm:$0xff]
      %v369 = vld [vmem:[%s328 + $0x108] sm:$0xff]
      %v370 = vld [vmem:[%s328 + $0x110] sm:$0xff]
      %v371 = vld [vmem:[%s328 + $0x118] sm:$0xff]
      %v372 = vld [vmem:[%s328 + $0x120] sm:$0xff]
      %v373 = vld [vmem:[%s328 + $0x128] sm:$0xff]
      %v374 = vld [vmem:[%s328 + $0x130] sm:$0xff]
      %v375 = vld [vmem:[%s328 + $0x138] sm:$0xff]
      %v376 = vld [vmem:[%s328 + $0x140] sm:$0xff]
      %v377 = vld [vmem:[%s328 + $0x148] sm:$0xff]
      %v378 = vld [vmem:[%s328 + $0x150] sm:$0xff]
      %v379 = vld [vmem:[%s328 + $0x158] sm:$0xff]
      %v380 = vld [vmem:[%s328 + $0x160] sm:$0xff]
      %v381 = vld [vmem:[%s328 + $0x168] sm:$0xff]
      %v382 = vld [vmem:[%s328 + $0x170] sm:$0xff]
      %v383 = vld [vmem:[%s328 + $0x178] sm:$0xff]
      %v384 = vld [vmem:[%s328 + $0x180] sm:$0xff]
      %v385 = vld [vmem:[%s328 + $0x188] sm:$0xff]
      %v386 = vld [vmem:[%s328 + $0x190] sm:$0xff]
      %v387 = vld [vmem:[%s328 + $0x198] sm:$0xff]
      %v388 = vld [vmem:[%s328 + $0x1a0] sm:$0xff]
      %v389 = vld [vmem:[%s328 + $0x1a8] sm:$0xff]
      %v390 = vld [vmem:[%s328 + $0x1b0] sm:$0xff]
      %v391 = vld [vmem:[%s328 + $0x1b8] sm:$0xff]
      %v392 = vld [vmem:[%s328 + $0x1c0] sm:$0xff]
      %v393 = vld [vmem:[%s328 + $0x1c8] sm:$0xff]
      %v394 = vld [vmem:[%s328 + $0x1d0] sm:$0xff]
      %v395 = vld [vmem:[%s328 + $0x1d8] sm:$0xff]
      %v396 = vld [vmem:[%s328 + $0x1e0] sm:$0xff]
      %v397 = vld [vmem:[%s328 + $0x1e8] sm:$0xff]
      %v398 = vld [vmem:[%s328 + $0x1f0] sm:$0xff]
      %v399 = vld [vmem:[%s328 + $0x1f8] sm:$0xff]
      %v400 = vld [vmem:[%s328 + $0x200] sm:$0xff]
      %v401 = vld [vmem:[%s328 + $0x208] sm:$0xff]
      %v402 = vld [vmem:[%s328 + $0x210] sm:$0xff]
      %v403 = vld [vmem:[%s328 + $0x218] sm:$0xff]
      %v404 = vld [vmem:[%s328 + $0x220] sm:$0xff]
      %v405 = vld [vmem:[%s328 + $0x228] sm:$0xff]
      %v406 = vld [vmem:[%s328 + $0x230] sm:$0xff]
      %v407 = vld [vmem:[%s328 + $0x238] sm:$0xff]
      %v408 = vld [vmem:[%s328 + $0x240] sm:$0xff]
      %v409 = vld [vmem:[%s328 + $0x248] sm:$0xff]
      %v410 = vld [vmem:[%s328 + $0x250] sm:$0xff]
      %v411 = vld [vmem:[%s328 + $0x258] sm:$0xff]
      %v412 = vld [vmem:[%s328 + $0x260] sm:$0xff]
      %v413 = vld [vmem:[%s328 + $0x268] sm:$0xff]
      %v414 = vld [vmem:[%s328 + $0x270] sm:$0xff]
      %v415 = vld [vmem:[%s328 + $0x278] sm:$0xff]
      %v416 = vld [vmem:[%s328 + $0x280] sm:$0xff]
      %v417 = vld [vmem:[%s328 + $0x288] sm:$0xff]
      %v418 = vld [vmem:[%s328 + $0x290] sm:$0xff]
      %v419 = vld [vmem:[%s328 + $0x298] sm:$0xff]
      %v420 = vld [vmem:[%s328 + $0x2a0] sm:$0xff]
      %v421 = vld [vmem:[%s328 + $0x2a8] sm:$0xff]
      %v422 = vld [vmem:[%s328 + $0x2b0] sm:$0xff]
      %v423 = vld [vmem:[%s328 + $0x2b8] sm:$0xff]
      %v424 = vld [vmem:[%s328 + $0x2c0] sm:$0xff]
      %v425 = vld [vmem:[%s328 + $0x2c8] sm:$0xff]
      %v426 = vld [vmem:[%s328 + $0x2d0] sm:$0xff]
      %v427 = vld [vmem:[%s328 + $0x2d8] sm:$0xff]
      %v428 = vld [vmem:[%s328 + $0x2e0] sm:$0xff]
      %v429 = vld [vmem:[%s328 + $0x2e8] sm:$0xff]
      %v430 = vld [vmem:[%s328 + $0x2f0] sm:$0xff]
      %v431 = vld [vmem:[%s328 + $0x2f8] sm:$0xff]
      %v432 = vld [vmem:[%s328 + $0x300] sm:$0xff]
      %v433 = vld [vmem:[%s328 + $0x308] sm:$0xff]
      %v434 = vld [vmem:[%s328 + $0x310] sm:$0xff]
      %v435 = vld [vmem:[%s328 + $0x318] sm:$0xff]
      %v436 = vld [vmem:[%s328 + $0x320] sm:$0xff]
      %v437 = vld [vmem:[%s328 + $0x328] sm:$0xff]
      %v438 = vld [vmem:[%s328 + $0x330] sm:$0xff]
      %v439 = vld [vmem:[%s328 + $0x338] sm:$0xff]
      %v440 = vld [vmem:[%s328 + $0x340] sm:$0xff]
      %v441 = vld [vmem:[%s328 + $0x348] sm:$0xff]
      %v442 = vld [vmem:[%s328 + $0x350] sm:$0xff]
      %v443 = vld [vmem:[%s328 + $0x358] sm:$0xff]
      %v444 = vld [vmem:[%s328 + $0x360] sm:$0xff]
      %v445 = vld [vmem:[%s328 + $0x368] sm:$0xff]
      %v446 = vld [vmem:[%s328 + $0x370] sm:$0xff]
      %v447 = vld [vmem:[%s328 + $0x378] sm:$0xff]
      %v448 = vld [vmem:[%s328 + $0x380] sm:$0xff]
      %v449 = vld [vmem:[%s328 + $0x388] sm:$0xff]
      %v450 = vld [vmem:[%s328 + $0x390] sm:$0xff]
      %v451 = vld [vmem:[%s328 + $0x398] sm:$0xff]
      %v452 = vld [vmem:[%s328 + $0x3a0] sm:$0xff]
      %v453 = vld [vmem:[%s328 + $0x3a8] sm:$0xff]
      %v454 = vld [vmem:[%s328 + $0x3b0] sm:$0xff]
      %v455 = vld [vmem:[%s328 + $0x3b8] sm:$0xff]
      %v456 = vld [vmem:[%s328 + $0x3c0] sm:$0xff]
      %v457 = vld [vmem:[%s328 + $0x3c8] sm:$0xff]
      %v458 = vld [vmem:[%s328 + $0x3d0] sm:$0xff]
      %v459 = vld [vmem:[%s328 + $0x3d8] sm:$0xff]
      %v460 = vld [vmem:[%s328 + $0x3e0] sm:$0xff]
      %v461 = vld [vmem:[%s328 + $0x3e8] sm:$0xff]
      %v462 = vld [vmem:[%s328 + $0x3f0] sm:$0xff]
      %v463 = vld [vmem:[%s328 + $0x3f8] sm:$0xff]
      %v464 = vld [vmem:[%s1] sm:$0xff]
      %v465 = vld [vmem:[%s1 + $0x8] sm:$0xff]
      %v466 = vld [vmem:[%s2] sm:$0x1]
      %v468 = vlaneseq
      %v469 = vshrl.u32 %v468, 7
      %v470 = vsub.s32 0, %v469
      %v471 = vrot.slane %v466, %v470
      %vm473 = vcmask 130048
      %v475 = vsel %vm473, %v336, 0
      %v478 = vsel %vm473, %v337, 0
      %v481 = vsel %vm473, %v338, 0
      %v484 = vsel %vm473, %v339, 0
      %v487 = vsel %vm473, %v340, 0
      %v490 = vsel %vm473, %v341, 0
      %v493 = vsel %vm473, %v342, 0
      %v496 = vsel %vm473, %v343, 0
      %v499 = vsel %vm473, %v344, 0
      %v502 = vsel %vm473, %v345, 0
      %v505 = vsel %vm473, %v346, 0
      %v508 = vsel %vm473, %v347, 0
      %v511 = vsel %vm473, %v348, 0
      %v514 = vsel %vm473, %v349, 0
      %v517 = vsel %vm473, %v350, 0
      %v520 = vsel %vm473, %v351, 0
      %v523 = vsel %vm473, %v352, 0
      %v526 = vsel %vm473, %v353, 0
      %v529 = vsel %vm473, %v354, 0
      %v532 = vsel %vm473, %v355, 0
      %v535 = vsel %vm473, %v356, 0
      %v538 = vsel %vm473, %v357, 0
      %v541 = vsel %vm473, %v358, 0
      %v544 = vsel %vm473, %v359, 0
      %v547 = vsel %vm473, %v360, 0
      %v550 = vsel %vm473, %v361, 0
      %v553 = vsel %vm473, %v362, 0
      %v556 = vsel %vm473, %v363, 0
      %v559 = vsel %vm473, %v364, 0
      %v562 = vsel %vm473, %v365, 0
      %v565 = vsel %vm473, %v366, 0
      %v568 = vsel %vm473, %v367, 0
      %v571 = vsel %vm473, %v368, 0
      %v574 = vsel %vm473, %v369, 0
      %v577 = vsel %vm473, %v370, 0
      %v580 = vsel %vm473, %v371, 0
      %v583 = vsel %vm473, %v372, 0
      %v586 = vsel %vm473, %v373, 0
      %v589 = vsel %vm473, %v374, 0
      %v592 = vsel %vm473, %v375, 0
      %v595 = vsel %vm473, %v376, 0
      %v598 = vsel %vm473, %v377, 0
      %v601 = vsel %vm473, %v378, 0
      %v604 = vsel %vm473, %v379, 0
      %v607 = vsel %vm473, %v380, 0
      %v610 = vsel %vm473, %v381, 0
      %v613 = vsel %vm473, %v382, 0
      %v616 = vsel %vm473, %v383, 0
      %v619 = vsel %vm473, %v384, 0
      %v622 = vsel %vm473, %v385, 0
      %v625 = vsel %vm473, %v386, 0
      %v628 = vsel %vm473, %v387, 0
      %v631 = vsel %vm473, %v388, 0
      %v634 = vsel %vm473, %v389, 0
      %v637 = vsel %vm473, %v390, 0
      %v640 = vsel %vm473, %v391, 0
      %v643 = vsel %vm473, %v392, 0
      %v646 = vsel %vm473, %v393, 0
      %v649 = vsel %vm473, %v394, 0
      %v652 = vsel %vm473, %v395, 0
      %v655 = vsel %vm473, %v396, 0
      %v658 = vsel %vm473, %v397, 0
      %v661 = vsel %vm473, %v398, 0
      %v664 = vsel %vm473, %v399, 0
      %v667 = vsel %vm473, %v400, 0
      %v670 = vsel %vm473, %v401, 0
      %v673 = vsel %vm473, %v402, 0
      %v676 = vsel %vm473, %v403, 0
      %v679 = vsel %vm473, %v404, 0
      %v682 = vsel %vm473, %v405, 0
      %v685 = vsel %vm473, %v406, 0
      %v688 = vsel %vm473, %v407, 0
      %v691 = vsel %vm473, %v408, 0
      %v694 = vsel %vm473, %v409, 0
      %v697 = vsel %vm473, %v410, 0
      %v700 = vsel %vm473, %v411, 0
      %v703 = vsel %vm473, %v412, 0
      %v706 = vsel %vm473, %v413, 0
      %v709 = vsel %vm473, %v414, 0
      %v712 = vsel %vm473, %v415, 0
      %v715 = vsel %vm473, %v416, 0
      %v718 = vsel %vm473, %v417, 0
      %v721 = vsel %vm473, %v418, 0
      %v724 = vsel %vm473, %v419, 0
      %v727 = vsel %vm473, %v420, 0
      %v730 = vsel %vm473, %v421, 0
      %v733 = vsel %vm473, %v422, 0
      %v736 = vsel %vm473, %v423, 0
      %v739 = vsel %vm473, %v424, 0
      %v742 = vsel %vm473, %v425, 0
      %v745 = vsel %vm473, %v426, 0
      %v748 = vsel %vm473, %v427, 0
      %v751 = vsel %vm473, %v428, 0
      %v754 = vsel %vm473, %v429, 0
      %v757 = vsel %vm473, %v430, 0
      %v760 = vsel %vm473, %v431, 0
      %v763 = vsel %vm473, %v432, 0
      %v766 = vsel %vm473, %v433, 0
      %v769 = vsel %vm473, %v434, 0
      %v772 = vsel %vm473, %v435, 0
      %v775 = vsel %vm473, %v436, 0
      %v778 = vsel %vm473, %v437, 0
      %v781 = vsel %vm473, %v438, 0
      %v784 = vsel %vm473, %v439, 0
      %v787 = vsel %vm473, %v440, 0
      %v790 = vsel %vm473, %v441, 0
      %v793 = vsel %vm473, %v442, 0
      %v796 = vsel %vm473, %v443, 0
      %v799 = vsel %vm473, %v444, 0
      %v802 = vsel %vm473, %v445, 0
      %v805 = vsel %vm473, %v446, 0
      %v808 = vsel %vm473, %v447, 0
      %v811 = vsel %vm473, %v448, 0
      %v814 = vsel %vm473, %v449, 0
      %v817 = vsel %vm473, %v450, 0
      %v820 = vsel %vm473, %v451, 0
      %v823 = vsel %vm473, %v452, 0
      %v826 = vsel %vm473, %v453, 0
      %v829 = vsel %vm473, %v454, 0
      %v832 = vsel %vm473, %v455, 0
      %v835 = vsel %vm473, %v456, 0
      %v838 = vsel %vm473, %v457, 0
      %v841 = vsel %vm473, %v458, 0
      %v844 = vsel %vm473, %v459, 0
      %v847 = vsel %vm473, %v460, 0
      %v850 = vsel %vm473, %v461, 0
      %v853 = vsel %vm473, %v462, 0
      %v856 = vsel %vm473, %v463, 0
      %858 = vmatprep.subr.mxu0 0.0
      %859 = vmatpush1.msra.mxu0 %v464
      %860 = vmatprep.subr.mxu0 0.0
      %861 = vmatpush1.msra.mxu0 %v465
      %862 = vmatprep.subr.mxu0 0.0
      %863 = vmatpush1.msra.mxu0 0.0
      %864 = vmatprep.subr.mxu0 0.0
      %865 = vmatpush1.msra.mxu0 0.0
      %866 = vmatprep.subr.mxu0 0.0
      %867 = vmatpush1.msra.mxu0 0.0
      %868 = vmatprep.subr.mxu0 0.0
      %869 = vmatpush1.msra.mxu0 0.0
      %870 = vmatprep.subr.mxu0 0.0
      %871 = vmatpush1.msra.mxu0 0.0
      %872 = vmatprep.subr.mxu0 0.0
      %873 = vmatpush1.msra.mxu0 0.0
      %874 = vmatprep.subr.mxu0 0.0
      %875 = vmatpush1.msra.mxu0 0.0
      %876 = vmatprep.subr.mxu0 0.0
      %877 = vmatpush1.msra.mxu0 0.0
      %878 = vmatprep.subr.mxu0 0.0
      %879 = vmatpush1.msra.mxu0 0.0
      %880 = vmatprep.subr.mxu0 0.0
      %881 = vmatpush1.msra.mxu0 0.0
      %882 = vmatprep.subr.mxu0 0.0
      %883 = vmatpush1.msra.mxu0 0.0
      %884 = vmatprep.subr.mxu0 0.0
      %885 = vmatpush1.msra.mxu0 0.0
      %886 = vmatprep.subr.mxu0 0.0
      %887 = vmatpush1.msra.mxu0 0.0
      %888 = vmatprep.subr.mxu0 0.0
      %889 = vmatpush1.msra.mxu0 0.0
      %890 = vmatprep.subr.mxu0 0.0
      %891 = vmatpush1.msra.mxu0 0.0
      %892 = vmatprep.subr.mxu0 0.0
      %893 = vmatpush1.msra.mxu0 0.0
      %894 = vmatprep.subr.mxu0 0.0
      %895 = vmatpush1.msra.mxu0 0.0
      %896 = vmatprep.subr.mxu0 0.0
      %897 = vmatpush1.msra.mxu0 0.0
      %898 = vmatprep.subr.mxu0 0.0
      %899 = vmatpush1.msra.mxu0 0.0
      %900 = vmatprep.subr.mxu0 0.0
      %901 = vmatpush1.msra.mxu0 0.0
      %902 = vmatprep.subr.mxu0 0.0
      %903 = vmatpush1.msra.mxu0 0.0
      %904 = vmatprep.subr.mxu0 0.0
      %905 = vmatpush1.msra.mxu0 0.0
      %906 = vmatprep.subr.mxu0 0.0
      %907 = vmatpush1.msra.mxu0 0.0
      %908 = vmatprep.subr.mxu0 0.0
      %909 = vmatpush1.msra.mxu0 0.0
      %910 = vmatprep.subr.mxu0 0.0
      %911 = vmatpush1.msra.mxu0 0.0
      %912 = vmatprep.subr.mxu0 0.0
      %913 = vmatpush1.msra.mxu0 0.0
      %914 = vmatprep.subr.mxu0 0.0
      %915 = vmatpush1.msra.mxu0 0.0
      %916 = vmatprep.subr.mxu0 0.0
      %917 = vmatpush1.msra.mxu0 0.0
      %918 = vmatprep.subr.mxu0 0.0
      %919 = vmatpush1.msra.mxu0 0.0
      %920 = vmatprep.subr.mxu0 0.0
      %921 = vmatpush1.msra.mxu0 0.0
      %922 = vmatprep.mubr.f32.mxu0 0.0
      %923 = vmatmul.mubr.f32.gmra.mrb[0].mxu0 %v475
      %v924 = vpop.f32.mrb[0].mxu0
      %v925 = vadd.f32 %v471, %v924
      %v926 = vpop.f32.mrb[0].mxu0
      %927 = vmatprep.mubr.f32.mxu0 0.0
      %928 = vmatmul.mubr.f32.gmra.mrb[0].mxu0 %v478
      %v929 = vpop.f32.mrb[0].mxu0
      %v930 = vadd.f32 %v471, %v929
      %v931 = vpop.f32.mrb[0].mxu0
      %932 = vmatprep.mubr.f32.mxu0 0.0
      %933 = vmatmul.mubr.f32.gmra.mrb[0].mxu0 %v481
      %v934 = vpop.f32.mrb[0].mxu0
      %v935 = vadd.f32 %v471, %v934
      %v936 = vpop.f32.mrb[0].mxu0
      %937 = vmatprep.mubr.f32.mxu0 0.0
      %938 = vmatmul.mubr.f32.gmra.mrb[0].mxu0 %v484
      %v939 = vpop.f32.mrb[0].mxu0
      %v940 = vadd.f32 %v471, %v939
      %v941 = vpop.f32.mrb[0].mxu0
      %942 = vmatprep.mubr.f32.mxu0 0.0
      %943 = vmatmul.mubr.f32.gmra.mrb[0].mxu0 %v487
      %v944 = vpop.f32.mrb[0].mxu0
      %v945 = vadd.f32 %v471, %v944
      %v946 = vpop.f32.mrb[0].mxu0
      %947 = vmatprep.mubr.f32.mxu0 0.0
      %948 = vmatmul.mubr.f32.gmra.mrb[0].mxu0 %v490
      %v949 = vpop.f32.mrb[0].mxu0
      %v950 = vadd.f32 %v471, %v949
      %v951 = vpop.f32.mrb[0].mxu0
      %952 = vmatprep.mubr.f32.mxu0 0.0
      %953 = vmatmul.mubr.f32.gmra.mrb[0].mxu0 %v493
      %v954 = vpop.f32.mrb[0].mxu0
      %v955 = vadd.f32 %v471, %v954
      %v956 = vpop.f32.mrb[0].mxu0
      %957 = vmatprep.mubr.f32.mxu0 0.0
      %958 = vmatmul.mubr.f32.gmra.mrb[0].mxu0 %v496
      %v959 = vpop.f32.mrb[0].mxu0
      %v960 = vadd.f32 %v471, %v959
      %v961 = vpop.f32.mrb[0].mxu0
      %962 = vmatprep.mubr.f32.mxu0 0.0
      %963 = vmatmul.mubr.f32.gmra.mrb[0].mxu0 %v499
      %v964 = vpop.f32.mrb[0].mxu0
      %v965 = vadd.f32 %v471, %v964
      %v966 = vpop.f32.mrb[0].mxu0
      %967 = vmatprep.mubr.f32.mxu0 0.0
      %968 = vmatmul.mubr.f32.gmra.mrb[0].mxu0 %v502
      %v969 = vpop.f32.mrb[0].mxu0
      %v970 = vadd.f32 %v471, %v969
      %v971 = vpop.f32.mrb[0].mxu0
      %972 = vmatprep.mubr.f32.mxu0 0.0
      %973 = vmatmul.mubr.f32.gmra.mrb[0].mxu0 %v505
      %v974 = vpop.f32.mrb[0].mxu0
      %v975 = vadd.f32 %v471, %v974
      %v976 = vpop.f32.mrb[0].mxu0
      %977 = vmatprep.mubr.f32.mxu0 0.0
      %978 = vmatmul.mubr.f32.gmra.mrb[0].mxu0 %v508
      %v979 = vpop.f32.mrb[0].mxu0
      %v980 = vadd.f32 %v471, %v979
      %v981 = vpop.f32.mrb[0].mxu0
      %982 = vmatprep.mubr.f32.mxu0 0.0
      %983 = vmatmul.mubr.f32.gmra.mrb[0].mxu0 %v511
      %v984 = vpop.f32.mrb[0].mxu0
      %v985 = vadd.f32 %v471, %v984
      %v986 = vpop.f32.mrb[0].mxu0
      %987 = vmatprep.mubr.f32.mxu0 0.0
      %988 = vmatmul.mubr.f32.gmra.mrb[0].mxu0 %v514
      %v989 = vpop.f32.mrb[0].mxu0
      %v990 = vadd.f32 %v471, %v989
      %v991 = vpop.f32.mrb[0].mxu0
      %992 = vmatprep.mubr.f32.mxu0 0.0
      %993 = vmatmul.mubr.f32.gmra.mrb[0].mxu0 %v517
      %v994 = vpop.f32.mrb[0].mxu0
      %v995 = vadd.f32 %v471, %v994
      %v996 = vpop.f32.mrb[0].mxu0
      %997 = vmatprep.mubr.f32.mxu0 0.0
      %998 = vmatmul.mubr.f32.gmra.mrb[0].mxu0 %v520
      %v999 = vpop.f32.mrb[0].mxu0
      %v1000 = vadd.f32 %v471, %v999
      %v1001 = vpop.f32.mrb[0].mxu0
      %1002 = vmatprep.mubr.f32.mxu0 0.0
      %1003 = vmatmul.mubr.f32.gmra.mrb[0].mxu0 %v523
      %v1004 = vpop.f32.mrb[0].mxu0
      %v1005 = vadd.f32 %v471, %v1004
      %v1006 = vpop.f32.mrb[0].mxu0
      %1007 = vmatprep.mubr.f32.mxu0 0.0
      %1008 = vmatmul.mubr.f32.gmra.mrb[0].mxu0 %v526
      %v1009 = vpop.f32.mrb[0].mxu0
      %v1010 = vadd.f32 %v471, %v1009
      %v1011 = vpop.f32.mrb[0].mxu0
      %1012 = vmatprep.mubr.f32.mxu0 0.0
      %1013 = vmatmul.mubr.f32.gmra.mrb[0].mxu0 %v529
      %v1014 = vpop.f32.mrb[0].mxu0
      %v1015 = vadd.f32 %v471, %v1014
      %v1016 = vpop.f32.mrb[0].mxu0
      %1017 = vmatprep.mubr.f32.mxu0 0.0
      %1018 = vmatmul.mubr.f32.gmra.mrb[0].mxu0 %v532
      %v1019 = vpop.f32.mrb[0].mxu0
      %v1020 = vadd.f32 %v471, %v1019
      %v1021 = vpop.f32.mrb[0].mxu0
      %1022 = vmatprep.mubr.f32.mxu0 0.0
      %1023 = vmatmul.mubr.f32.gmra.mrb[0].mxu0 %v535
      %v1024 = vpop.f32.mrb[0].mxu0
      %v1025 = vadd.f32 %v471, %v1024
      %v1026 = vpop.f32.mrb[0].mxu0
      %1027 = vmatprep.mubr.f32.mxu0 0.0
      %1028 = vmatmul.mubr.f32.gmra.mrb[0].mxu0 %v538
      %v1029 = vpop.f32.mrb[0].mxu0
      %v1030 = vadd.f32 %v471, %v1029
      %v1031 = vpop.f32.mrb[0].mxu0
      %1032 = vmatprep.mubr.f32.mxu0 0.0
      %1033 = vmatmul.mubr.f32.gmra.mrb[0].mxu0 %v541
      %v1034 = vpop.f32.mrb[0].mxu0
      %v1035 = vadd.f32 %v471, %v1034
      %v1036 = vpop.f32.mrb[0].mxu0
      %1037 = vmatprep.mubr.f32.mxu0 0.0
      %1038 = vmatmul.mubr.f32.gmra.mrb[0].mxu0 %v544
      %v1039 = vpop.f32.mrb[0].mxu0
      %v1040 = vadd.f32 %v471, %v1039
      %v1041 = vpop.f32.mrb[0].mxu0
      %1042 = vmatprep.mubr.f32.mxu0 0.0
      %1043 = vmatmul.mubr.f32.gmra.mrb[0].mxu0 %v547
      %v1044 = vpop.f32.mrb[0].mxu0
      %v1045 = vadd.f32 %v471, %v1044
      %v1046 = vpop.f32.mrb[0].mxu0
      %1047 = vmatprep.mubr.f32.mxu0 0.0
      %1048 = vmatmul.mubr.f32.gmra.mrb[0].mxu0 %v550
      %v1049 = vpop.f32.mrb[0].mxu0
      %v1050 = vadd.f32 %v471, %v1049
      %v1051 = vpop.f32.mrb[0].mxu0
      %1052 = vmatprep.mubr.f32.mxu0 0.0
      %1053 = vmatmul.mubr.f32.gmra.mrb[0].mxu0 %v553
      %v1054 = vpop.f32.mrb[0].mxu0
      %v1055 = vadd.f32 %v471, %v1054
      %v1056 = vpop.f32.mrb[0].mxu0
      %1057 = vmatprep.mubr.f32.mxu0 0.0
      %1058 = vmatmul.mubr.f32.gmra.mrb[0].mxu0 %v556
      %v1059 = vpop.f32.mrb[0].mxu0
      %v1060 = vadd.f32 %v471, %v1059
      %v1061 = vpop.f32.mrb[0].mxu0
      %1062 = vmatprep.mubr.f32.mxu0 0.0
      %1063 = vmatmul.mubr.f32.gmra.mrb[0].mxu0 %v559
      %v1064 = vpop.f32.mrb[0].mxu0
      %v1065 = vadd.f32 %v471, %v1064
      %v1066 = vpop.f32.mrb[0].mxu0
      %1067 = vmatprep.mubr.f32.mxu0 0.0
      %1068 = vmatmul.mubr.f32.gmra.mrb[0].mxu0 %v562
      %v1069 = vpop.f32.mrb[0].mxu0
      %v1070 = vadd.f32 %v471, %v1069
      %v1071 = vpop.f32.mrb[0].mxu0
      %1072 = vmatprep.mubr.f32.mxu0 0.0
      %1073 = vmatmul.mubr.f32.gmra.mrb[0].mxu0 %v565
      %v1074 = vpop.f32.mrb[0].mxu0
      %v1075 = vadd.f32 %v471, %v1074
      %v1076 = vpop.f32.mrb[0].mxu0
      %1077 = vmatprep.mubr.f32.mxu0 0.0
      %1078 = vmatmul.mubr.f32.gmra.mrb[0].mxu0 %v568
      %v1079 = vpop.f32.mrb[0].mxu0
      %v1080 = vadd.f32 %v471, %v1079
      %v1081 = vpop.f32.mrb[0].mxu0
      %1082 = vmatprep.mubr.f32.mxu0 0.0
      %1083 = vmatmul.mubr.f32.gmra.mrb[0].mxu0 %v571
      %v1084 = vpop.f32.mrb[0].mxu0
      %v1085 = vadd.f32 %v471, %v1084
      %v1086 = vpop.f32.mrb[0].mxu0
      %1087 = vmatprep.mubr.f32.mxu0 0.0
      %1088 = vmatmul.mubr.f32.gmra.mrb[0].mxu0 %v574
      %v1089 = vpop.f32.mrb[0].mxu0
      %v1090 = vadd.f32 %v471, %v1089
      %v1091 = vpop.f32.mrb[0].mxu0
      %1092 = vmatprep.mubr.f32.mxu0 0.0
      %1093 = vmatmul.mubr.f32.gmra.mrb[0].mxu0 %v577
      %v1094 = vpop.f32.mrb[0].mxu0
      %v1095 = vadd.f32 %v471, %v1094
      %v1096 = vpop.f32.mrb[0].mxu0
      %1097 = vmatprep.mubr.f32.mxu0 0.0
      %1098 = vmatmul.mubr.f32.gmra.mrb[0].mxu0 %v580
      %v1099 = vpop.f32.mrb[0].mxu0
      %v1100 = vadd.f32 %v471, %v1099
      %v1101 = vpop.f32.mrb[0].mxu0
      %1102 = vmatprep.mubr.f32.mxu0 0.0
      %1103 = vmatmul.mubr.f32.gmra.mrb[0].mxu0 %v583
      %v1104 = vpop.f32.mrb[0].mxu0
      %v1105 = vadd.f32 %v471, %v1104
      %v1106 = vpop.f32.mrb[0].mxu0
      %1107 = vmatprep.mubr.f32.mxu0 0.0
      %1108 = vmatmul.mubr.f32.gmra.mrb[0].mxu0 %v586
      %v1109 = vpop.f32.mrb[0].mxu0
      %v1110 = vadd.f32 %v471, %v1109
      %v1111 = vpop.f32.mrb[0].mxu0
      %1112 = vmatprep.mubr.f32.mxu0 0.0
      %1113 = vmatmul.mubr.f32.gmra.mrb[0].mxu0 %v589
      %v1114 = vpop.f32.mrb[0].mxu0
      %v1115 = vadd.f32 %v471, %v1114
      %v1116 = vpop.f32.mrb[0].mxu0
      %1117 = vmatprep.mubr.f32.mxu0 0.0
      %1118 = vmatmul.mubr.f32.gmra.mrb[0].mxu0 %v592
      %v1119 = vpop.f32.mrb[0].mxu0
      %v1120 = vadd.f32 %v471, %v1119
      %v1121 = vpop.f32.mrb[0].mxu0
      %1122 = vmatprep.mubr.f32.mxu0 0.0
      %1123 = vmatmul.mubr.f32.gmra.mrb[0].mxu0 %v595
      %v1124 = vpop.f32.mrb[0].mxu0
      %v1125 = vadd.f32 %v471, %v1124
      %v1126 = vpop.f32.mrb[0].mxu0
      %1127 = vmatprep.mubr.f32.mxu0 0.0
      %1128 = vmatmul.mubr.f32.gmra.mrb[0].mxu0 %v598
      %v1129 = vpop.f32.mrb[0].mxu0
      %v1130 = vadd.f32 %v471, %v1129
      %v1131 = vpop.f32.mrb[0].mxu0
      %1132 = vmatprep.mubr.f32.mxu0 0.0
      %1133 = vmatmul.mubr.f32.gmra.mrb[0].mxu0 %v601
      %v1134 = vpop.f32.mrb[0].mxu0
      %v1135 = vadd.f32 %v471, %v1134
      %v1136 = vpop.f32.mrb[0].mxu0
      %1137 = vmatprep.mubr.f32.mxu0 0.0
      %1138 = vmatmul.mubr.f32.gmra.mrb[0].mxu0 %v604
      %v1139 = vpop.f32.mrb[0].mxu0
      %v1140 = vadd.f32 %v471, %v1139
      %v1141 = vpop.f32.mrb[0].mxu0
      %1142 = vmatprep.mubr.f32.mxu0 0.0
      %1143 = vmatmul.mubr.f32.gmra.mrb[0].mxu0 %v607
      %v1144 = vpop.f32.mrb[0].mxu0
      %v1145 = vadd.f32 %v471, %v1144
      %v1146 = vpop.f32.mrb[0].mxu0
      %1147 = vmatprep.mubr.f32.mxu0 0.0
      %1148 = vmatmul.mubr.f32.gmra.mrb[0].mxu0 %v610
      %v1149 = vpop.f32.mrb[0].mxu0
      %v1150 = vadd.f32 %v471, %v1149
      %v1151 = vpop.f32.mrb[0].mxu0
      %1152 = vmatprep.mubr.f32.mxu0 0.0
      %1153 = vmatmul.mubr.f32.gmra.mrb[0].mxu0 %v613
      %v1154 = vpop.f32.mrb[0].mxu0
      %v1155 = vadd.f32 %v471, %v1154
      %v1156 = vpop.f32.mrb[0].mxu0
      %1157 = vmatprep.mubr.f32.mxu0 0.0
      %1158 = vmatmul.mubr.f32.gmra.mrb[0].mxu0 %v616
      %v1159 = vpop.f32.mrb[0].mxu0
      %v1160 = vadd.f32 %v471, %v1159
      %v1161 = vpop.f32.mrb[0].mxu0
      %1162 = vmatprep.mubr.f32.mxu0 0.0
      %1163 = vmatmul.mubr.f32.gmra.mrb[0].mxu0 %v619
      %v1164 = vpop.f32.mrb[0].mxu0
      %v1165 = vadd.f32 %v471, %v1164
      %v1166 = vpop.f32.mrb[0].mxu0
      %1167 = vmatprep.mubr.f32.mxu0 0.0
      %1168 = vmatmul.mubr.f32.gmra.mrb[0].mxu0 %v622
      %v1169 = vpop.f32.mrb[0].mxu0
      %v1170 = vadd.f32 %v471, %v1169
      %v1171 = vpop.f32.mrb[0].mxu0
      %1172 = vmatprep.mubr.f32.mxu0 0.0
      %1173 = vmatmul.mubr.f32.gmra.mrb[0].mxu0 %v625
      %v1174 = vpop.f32.mrb[0].mxu0
      %v1175 = vadd.f32 %v471, %v1174
      %v1176 = vpop.f32.mrb[0].mxu0
      %1177 = vmatprep.mubr.f32.mxu0 0.0
      %1178 = vmatmul.mubr.f32.gmra.mrb[0].mxu0 %v628
      %v1179 = vpop.f32.mrb[0].mxu0
      %v1180 = vadd.f32 %v471, %v1179
      %v1181 = vpop.f32.mrb[0].mxu0
      %1182 = vmatprep.mubr.f32.mxu0 0.0
      %1183 = vmatmul.mubr.f32.gmra.mrb[0].mxu0 %v631
      %v1184 = vpop.f32.mrb[0].mxu0
      %v1185 = vadd.f32 %v471, %v1184
      %v1186 = vpop.f32.mrb[0].mxu0
      %1187 = vmatprep.mubr.f32.mxu0 0.0
      %1188 = vmatmul.mubr.f32.gmra.mrb[0].mxu0 %v634
      %v1189 = vpop.f32.mrb[0].mxu0
      %v1190 = vadd.f32 %v471, %v1189
      %v1191 = vpop.f32.mrb[0].mxu0
      %1192 = vmatprep.mubr.f32.mxu0 0.0
      %1193 = vmatmul.mubr.f32.gmra.mrb[0].mxu0 %v637
      %v1194 = vpop.f32.mrb[0].mxu0
      %v1195 = vadd.f32 %v471, %v1194
      %v1196 = vpop.f32.mrb[0].mxu0
      %1197 = vmatprep.mubr.f32.mxu0 0.0
      %1198 = vmatmul.mubr.f32.gmra.mrb[0].mxu0 %v640
      %v1199 = vpop.f32.mrb[0].mxu0
      %v1200 = vadd.f32 %v471, %v1199
      %v1201 = vpop.f32.mrb[0].mxu0
      %1202 = vmatprep.mubr.f32.mxu0 0.0
      %1203 = vmatmul.mubr.f32.gmra.mrb[0].mxu0 %v643
      %v1204 = vpop.f32.mrb[0].mxu0
      %v1205 = vadd.f32 %v471, %v1204
      %v1206 = vpop.f32.mrb[0].mxu0
      %1207 = vmatprep.mubr.f32.mxu0 0.0
      %1208 = vmatmul.mubr.f32.gmra.mrb[0].mxu0 %v646
      %v1209 = vpop.f32.mrb[0].mxu0
      %v1210 = vadd.f32 %v471, %v1209
      %v1211 = vpop.f32.mrb[0].mxu0
      %1212 = vmatprep.mubr.f32.mxu0 0.0
      %1213 = vmatmul.mubr.f32.gmra.mrb[0].mxu0 %v649
      %v1214 = vpop.f32.mrb[0].mxu0
      %v1215 = vadd.f32 %v471, %v1214
      %v1216 = vpop.f32.mrb[0].mxu0
      %1217 = vmatprep.mubr.f32.mxu0 0.0
      %1218 = vmatmul.mubr.f32.gmra.mrb[0].mxu0 %v652
      %v1219 = vpop.f32.mrb[0].mxu0
      %v1220 = vadd.f32 %v471, %v1219
      %v1221 = vpop.f32.mrb[0].mxu0
      %1222 = vmatprep.mubr.f32.mxu0 0.0
      %1223 = vmatmul.mubr.f32.gmra.mrb[0].mxu0 %v655
      %v1224 = vpop.f32.mrb[0].mxu0
      %v1225 = vadd.f32 %v471, %v1224
      %v1226 = vpop.f32.mrb[0].mxu0
      %1227 = vmatprep.mubr.f32.mxu0 0.0
      %1228 = vmatmul.mubr.f32.gmra.mrb[0].mxu0 %v658
      %v1229 = vpop.f32.mrb[0].mxu0
      %v1230 = vadd.f32 %v471, %v1229
      %v1231 = vpop.f32.mrb[0].mxu0
      %1232 = vmatprep.mubr.f32.mxu0 0.0
      %1233 = vmatmul.mubr.f32.gmra.mrb[0].mxu0 %v661
      %v1234 = vpop.f32.mrb[0].mxu0
      %v1235 = vadd.f32 %v471, %v1234
      %v1236 = vpop.f32.mrb[0].mxu0
      %1237 = vmatprep.mubr.f32.mxu0 0.0
      %1238 = vmatmul.mubr.f32.gmra.mrb[0].mxu0 %v664
      %v1239 = vpop.f32.mrb[0].mxu0
      %v1240 = vadd.f32 %v471, %v1239
      %v1241 = vpop.f32.mrb[0].mxu0
      %1242 = vmatprep.mubr.f32.mxu0 0.0
      %1243 = vmatmul.mubr.f32.gmra.mrb[0].mxu0 %v667
      %v1244 = vpop.f32.mrb[0].mxu0
      %v1245 = vadd.f32 %v471, %v1244
      %v1246 = vpop.f32.mrb[0].mxu0
      %1247 = vmatprep.mubr.f32.mxu0 0.0
      %1248 = vmatmul.mubr.f32.gmra.mrb[0].mxu0 %v670
      %v1249 = vpop.f32.mrb[0].mxu0
      %v1250 = vadd.f32 %v471, %v1249
      %v1251 = vpop.f32.mrb[0].mxu0
      %1252 = vmatprep.mubr.f32.mxu0 0.0
      %1253 = vmatmul.mubr.f32.gmra.mrb[0].mxu0 %v673
      %v1254 = vpop.f32.mrb[0].mxu0
      %v1255 = vadd.f32 %v471, %v1254
      %v1256 = vpop.f32.mrb[0].mxu0
      %1257 = vmatprep.mubr.f32.mxu0 0.0
      %1258 = vmatmul.mubr.f32.gmra.mrb[0].mxu0 %v676
      %v1259 = vpop.f32.mrb[0].mxu0
      %v1260 = vadd.f32 %v471, %v1259
      %v1261 = vpop.f32.mrb[0].mxu0
      %1262 = vmatprep.mubr.f32.mxu0 0.0
      %1263 = vmatmul.mubr.f32.gmra.mrb[0].mxu0 %v679
      %v1264 = vpop.f32.mrb[0].mxu0
      %v1265 = vadd.f32 %v471, %v1264
      %v1266 = vpop.f32.mrb[0].mxu0
      %1267 = vmatprep.mubr.f32.mxu0 0.0
      %1268 = vmatmul.mubr.f32.gmra.mrb[0].mxu0 %v682
      %v1269 = vpop.f32.mrb[0].mxu0
      %v1270 = vadd.f32 %v471, %v1269
      %v1271 = vpop.f32.mrb[0].mxu0
      %1272 = vmatprep.mubr.f32.mxu0 0.0
      %1273 = vmatmul.mubr.f32.gmra.mrb[0].mxu0 %v685
      %v1274 = vpop.f32.mrb[0].mxu0
      %v1275 = vadd.f32 %v471, %v1274
      %v1276 = vpop.f32.mrb[0].mxu0
      %1277 = vmatprep.mubr.f32.mxu0 0.0
      %1278 = vmatmul.mubr.f32.gmra.mrb[0].mxu0 %v688
      %v1279 = vpop.f32.mrb[0].mxu0
      %v1280 = vadd.f32 %v471, %v1279
      %v1281 = vpop.f32.mrb[0].mxu0
      %1282 = vmatprep.mubr.f32.mxu0 0.0
      %1283 = vmatmul.mubr.f32.gmra.mrb[0].mxu0 %v691
      %v1284 = vpop.f32.mrb[0].mxu0
      %v1285 = vadd.f32 %v471, %v1284
      %v1286 = vpop.f32.mrb[0].mxu0
      %1287 = vmatprep.mubr.f32.mxu0 0.0
      %1288 = vmatmul.mubr.f32.gmra.mrb[0].mxu0 %v694
      %v1289 = vpop.f32.mrb[0].mxu0
      %v1290 = vadd.f32 %v471, %v1289
      %v1291 = vpop.f32.mrb[0].mxu0
      %1292 = vmatprep.mubr.f32.mxu0 0.0
      %1293 = vmatmul.mubr.f32.gmra.mrb[0].mxu0 %v697
      %v1294 = vpop.f32.mrb[0].mxu0
      %v1295 = vadd.f32 %v471, %v1294
      %v1296 = vpop.f32.mrb[0].mxu0
      %1297 = vmatprep.mubr.f32.mxu0 0.0
      %1298 = vmatmul.mubr.f32.gmra.mrb[0].mxu0 %v700
      %v1299 = vpop.f32.mrb[0].mxu0
      %v1300 = vadd.f32 %v471, %v1299
      %v1301 = vpop.f32.mrb[0].mxu0
      %1302 = vmatprep.mubr.f32.mxu0 0.0
      %1303 = vmatmul.mubr.f32.gmra.mrb[0].mxu0 %v703
      %v1304 = vpop.f32.mrb[0].mxu0
      %v1305 = vadd.f32 %v471, %v1304
      %v1306 = vpop.f32.mrb[0].mxu0
      %1307 = vmatprep.mubr.f32.mxu0 0.0
      %1308 = vmatmul.mubr.f32.gmra.mrb[0].mxu0 %v706
      %v1309 = vpop.f32.mrb[0].mxu0
      %v1310 = vadd.f32 %v471, %v1309
      %v1311 = vpop.f32.mrb[0].mxu0
      %1312 = vmatprep.mubr.f32.mxu0 0.0
      %1313 = vmatmul.mubr.f32.gmra.mrb[0].mxu0 %v709
      %v1314 = vpop.f32.mrb[0].mxu0
      %v1315 = vadd.f32 %v471, %v1314
      %v1316 = vpop.f32.mrb[0].mxu0
      %1317 = vmatprep.mubr.f32.mxu0 0.0
      %1318 = vmatmul.mubr.f32.gmra.mrb[0].mxu0 %v712
      %v1319 = vpop.f32.mrb[0].mxu0
      %v1320 = vadd.f32 %v471, %v1319
      %v1321 = vpop.f32.mrb[0].mxu0
      %1322 = vmatprep.mubr.f32.mxu0 0.0
      %1323 = vmatmul.mubr.f32.gmra.mrb[0].mxu0 %v715
      %v1324 = vpop.f32.mrb[0].mxu0
      %v1325 = vadd.f32 %v471, %v1324
      %v1326 = vpop.f32.mrb[0].mxu0
      %1327 = vmatprep.mubr.f32.mxu0 0.0
      %1328 = vmatmul.mubr.f32.gmra.mrb[0].mxu0 %v718
      %v1329 = vpop.f32.mrb[0].mxu0
      %v1330 = vadd.f32 %v471, %v1329
      %v1331 = vpop.f32.mrb[0].mxu0
      %1332 = vmatprep.mubr.f32.mxu0 0.0
      %1333 = vmatmul.mubr.f32.gmra.mrb[0].mxu0 %v721
      %v1334 = vpop.f32.mrb[0].mxu0
      %v1335 = vadd.f32 %v471, %v1334
      %v1336 = vpop.f32.mrb[0].mxu0
      %1337 = vmatprep.mubr.f32.mxu0 0.0
      %1338 = vmatmul.mubr.f32.gmra.mrb[0].mxu0 %v724
      %v1339 = vpop.f32.mrb[0].mxu0
      %v1340 = vadd.f32 %v471, %v1339
      %v1341 = vpop.f32.mrb[0].mxu0
      %1342 = vmatprep.mubr.f32.mxu0 0.0
      %1343 = vmatmul.mubr.f32.gmra.mrb[0].mxu0 %v727
      %v1344 = vpop.f32.mrb[0].mxu0
      %v1345 = vadd.f32 %v471, %v1344
      %v1346 = vpop.f32.mrb[0].mxu0
      %1347 = vmatprep.mubr.f32.mxu0 0.0
      %1348 = vmatmul.mubr.f32.gmra.mrb[0].mxu0 %v730
      %v1349 = vpop.f32.mrb[0].mxu0
      %v1350 = vadd.f32 %v471, %v1349
      %v1351 = vpop.f32.mrb[0].mxu0
      %1352 = vmatprep.mubr.f32.mxu0 0.0
      %1353 = vmatmul.mubr.f32.gmra.mrb[0].mxu0 %v733
      %v1354 = vpop.f32.mrb[0].mxu0
      %v1355 = vadd.f32 %v471, %v1354
      %v1356 = vpop.f32.mrb[0].mxu0
      %1357 = vmatprep.mubr.f32.mxu0 0.0
      %1358 = vmatmul.mubr.f32.gmra.mrb[0].mxu0 %v736
      %v1359 = vpop.f32.mrb[0].mxu0
      %v1360 = vadd.f32 %v471, %v1359
      %v1361 = vpop.f32.mrb[0].mxu0
      %1362 = vmatprep.mubr.f32.mxu0 0.0
      %1363 = vmatmul.mubr.f32.gmra.mrb[0].mxu0 %v739
      %v1364 = vpop.f32.mrb[0].mxu0
      %v1365 = vadd.f32 %v471, %v1364
      %v1366 = vpop.f32.mrb[0].mxu0
      %1367 = vmatprep.mubr.f32.mxu0 0.0
      %1368 = vmatmul.mubr.f32.gmra.mrb[0].mxu0 %v742
      %v1369 = vpop.f32.mrb[0].mxu0
      %v1370 = vadd.f32 %v471, %v1369
      %v1371 = vpop.f32.mrb[0].mxu0
      %1372 = vmatprep.mubr.f32.mxu0 0.0
      %1373 = vmatmul.mubr.f32.gmra.mrb[0].mxu0 %v745
      %v1374 = vpop.f32.mrb[0].mxu0
      %v1375 = vadd.f32 %v471, %v1374
      %v1376 = vpop.f32.mrb[0].mxu0
      %1377 = vmatprep.mubr.f32.mxu0 0.0
      %1378 = vmatmul.mubr.f32.gmra.mrb[0].mxu0 %v748
      %v1379 = vpop.f32.mrb[0].mxu0
      %v1380 = vadd.f32 %v471, %v1379
      %v1381 = vpop.f32.mrb[0].mxu0
      %1382 = vmatprep.mubr.f32.mxu0 0.0
      %1383 = vmatmul.mubr.f32.gmra.mrb[0].mxu0 %v751
      %v1384 = vpop.f32.mrb[0].mxu0
      %v1385 = vadd.f32 %v471, %v1384
      %v1386 = vpop.f32.mrb[0].mxu0
      %1387 = vmatprep.mubr.f32.mxu0 0.0
      %1388 = vmatmul.mubr.f32.gmra.mrb[0].mxu0 %v754
      %v1389 = vpop.f32.mrb[0].mxu0
      %v1390 = vadd.f32 %v471, %v1389
      %v1391 = vpop.f32.mrb[0].mxu0
      %1392 = vmatprep.mubr.f32.mxu0 0.0
      %1393 = vmatmul.mubr.f32.gmra.mrb[0].mxu0 %v757
      %v1394 = vpop.f32.mrb[0].mxu0
      %v1395 = vadd.f32 %v471, %v1394
      %v1396 = vpop.f32.mrb[0].mxu0
      %1397 = vmatprep.mubr.f32.mxu0 0.0
      %1398 = vmatmul.mubr.f32.gmra.mrb[0].mxu0 %v760
      %v1399 = vpop.f32.mrb[0].mxu0
      %v1400 = vadd.f32 %v471, %v1399
      %v1401 = vpop.f32.mrb[0].mxu0
      %1402 = vmatprep.mubr.f32.mxu0 0.0
      %1403 = vmatmul.mubr.f32.gmra.mrb[0].mxu0 %v763
      %v1404 = vpop.f32.mrb[0].mxu0
      %v1405 = vadd.f32 %v471, %v1404
      %v1406 = vpop.f32.mrb[0].mxu0
      %1407 = vmatprep.mubr.f32.mxu0 0.0
      %1408 = vmatmul.mubr.f32.gmra.mrb[0].mxu0 %v766
      %v1409 = vpop.f32.mrb[0].mxu0
      %v1410 = vadd.f32 %v471, %v1409
      %v1411 = vpop.f32.mrb[0].mxu0
      %1412 = vmatprep.mubr.f32.mxu0 0.0
      %1413 = vmatmul.mubr.f32.gmra.mrb[0].mxu0 %v769
      %v1414 = vpop.f32.mrb[0].mxu0
      %v1415 = vadd.f32 %v471, %v1414
      %v1416 = vpop.f32.mrb[0].mxu0
      %1417 = vmatprep.mubr.f32.mxu0 0.0
      %1418 = vmatmul.mubr.f32.gmra.mrb[0].mxu0 %v772
      %v1419 = vpop.f32.mrb[0].mxu0
      %v1420 = vadd.f32 %v471, %v1419
      %v1421 = vpop.f32.mrb[0].mxu0
      %1422 = vmatprep.mubr.f32.mxu0 0.0
      %1423 = vmatmul.mubr.f32.gmra.mrb[0].mxu0 %v775
      %v1424 = vpop.f32.mrb[0].mxu0
      %v1425 = vadd.f32 %v471, %v1424
      %v1426 = vpop.f32.mrb[0].mxu0
      %1427 = vmatprep.mubr.f32.mxu0 0.0
      %1428 = vmatmul.mubr.f32.gmra.mrb[0].mxu0 %v778
      %v1429 = vpop.f32.mrb[0].mxu0
      %v1430 = vadd.f32 %v471, %v1429
      %v1431 = vpop.f32.mrb[0].mxu0
      %1432 = vmatprep.mubr.f32.mxu0 0.0
      %1433 = vmatmul.mubr.f32.gmra.mrb[0].mxu0 %v781
      %v1434 = vpop.f32.mrb[0].mxu0
      %v1435 = vadd.f32 %v471, %v1434
      %v1436 = vpop.f32.mrb[0].mxu0
      %1437 = vmatprep.mubr.f32.mxu0 0.0
      %1438 = vmatmul.mubr.f32.gmra.mrb[0].mxu0 %v784
      %v1439 = vpop.f32.mrb[0].mxu0
      %v1440 = vadd.f32 %v471, %v1439
      %v1441 = vpop.f32.mrb[0].mxu0
      %1442 = vmatprep.mubr.f32.mxu0 0.0
      %1443 = vmatmul.mubr.f32.gmra.mrb[0].mxu0 %v787
      %v1444 = vpop.f32.mrb[0].mxu0
      %v1445 = vadd.f32 %v471, %v1444
      %v1446 = vpop.f32.mrb[0].mxu0
      %1447 = vmatprep.mubr.f32.mxu0 0.0
      %1448 = vmatmul.mubr.f32.gmra.mrb[0].mxu0 %v790
      %v1449 = vpop.f32.mrb[0].mxu0
      %v1450 = vadd.f32 %v471, %v1449
      %v1451 = vpop.f32.mrb[0].mxu0
      %1452 = vmatprep.mubr.f32.mxu0 0.0
      %1453 = vmatmul.mubr.f32.gmra.mrb[0].mxu0 %v793
      %v1454 = vpop.f32.mrb[0].mxu0
      %v1455 = vadd.f32 %v471, %v1454
      %v1456 = vpop.f32.mrb[0].mxu0
      %1457 = vmatprep.mubr.f32.mxu0 0.0
      %1458 = vmatmul.mubr.f32.gmra.mrb[0].mxu0 %v796
      %v1459 = vpop.f32.mrb[0].mxu0
      %v1460 = vadd.f32 %v471, %v1459
      %v1461 = vpop.f32.mrb[0].mxu0
      %1462 = vmatprep.mubr.f32.mxu0 0.0
      %1463 = vmatmul.mubr.f32.gmra.mrb[0].mxu0 %v799
      %v1464 = vpop.f32.mrb[0].mxu0
      %v1465 = vadd.f32 %v471, %v1464
      %v1466 = vpop.f32.mrb[0].mxu0
      %1467 = vmatprep.mubr.f32.mxu0 0.0
      %1468 = vmatmul.mubr.f32.gmra.mrb[0].mxu0 %v802
      %v1469 = vpop.f32.mrb[0].mxu0
      %v1470 = vadd.f32 %v471, %v1469
      %v1471 = vpop.f32.mrb[0].mxu0
      %1472 = vmatprep.mubr.f32.mxu0 0.0
      %1473 = vmatmul.mubr.f32.gmra.mrb[0].mxu0 %v805
      %v1474 = vpop.f32.mrb[0].mxu0
      %v1475 = vadd.f32 %v471, %v1474
      %v1476 = vpop.f32.mrb[0].mxu0
      %1477 = vmatprep.mubr.f32.mxu0 0.0
      %1478 = vmatmul.mubr.f32.gmra.mrb[0].mxu0 %v808
      %v1479 = vpop.f32.mrb[0].mxu0
      %v1480 = vadd.f32 %v471, %v1479
      %v1481 = vpop.f32.mrb[0].mxu0
      %1482 = vmatprep.mubr.f32.mxu0 0.0
      %1483 = vmatmul.mubr.f32.gmra.mrb[0].mxu0 %v811
      %v1484 = vpop.f32.mrb[0].mxu0
      %v1485 = vadd.f32 %v471, %v1484
      %v1486 = vpop.f32.mrb[0].mxu0
      %1487 = vmatprep.mubr.f32.mxu0 0.0
      %1488 = vmatmul.mubr.f32.gmra.mrb[0].mxu0 %v814
      %v1489 = vpop.f32.mrb[0].mxu0
      %v1490 = vadd.f32 %v471, %v1489
      %v1491 = vpop.f32.mrb[0].mxu0
      %1492 = vmatprep.mubr.f32.mxu0 0.0
      %1493 = vmatmul.mubr.f32.gmra.mrb[0].mxu0 %v817
      %v1494 = vpop.f32.mrb[0].mxu0
      %v1495 = vadd.f32 %v471, %v1494
      %v1496 = vpop.f32.mrb[0].mxu0
      %1497 = vmatprep.mubr.f32.mxu0 0.0
      %1498 = vmatmul.mubr.f32.gmra.mrb[0].mxu0 %v820
      %v1499 = vpop.f32.mrb[0].mxu0
      %v1500 = vadd.f32 %v471, %v1499
      %v1501 = vpop.f32.mrb[0].mxu0
      %1502 = vmatprep.mubr.f32.mxu0 0.0
      %1503 = vmatmul.mubr.f32.gmra.mrb[0].mxu0 %v823
      %v1504 = vpop.f32.mrb[0].mxu0
      %v1505 = vadd.f32 %v471, %v1504
      %v1506 = vpop.f32.mrb[0].mxu0
      %1507 = vmatprep.mubr.f32.mxu0 0.0
      %1508 = vmatmul.mubr.f32.gmra.mrb[0].mxu0 %v826
      %v1509 = vpop.f32.mrb[0].mxu0
      %v1510 = vadd.f32 %v471, %v1509
      %v1511 = vpop.f32.mrb[0].mxu0
      %1512 = vmatprep.mubr.f32.mxu0 0.0
      %1513 = vmatmul.mubr.f32.gmra.mrb[0].mxu0 %v829
      %v1514 = vpop.f32.mrb[0].mxu0
      %v1515 = vadd.f32 %v471, %v1514
      %v1516 = vpop.f32.mrb[0].mxu0
      %1517 = vmatprep.mubr.f32.mxu0 0.0
      %1518 = vmatmul.mubr.f32.gmra.mrb[0].mxu0 %v832
      %v1519 = vpop.f32.mrb[0].mxu0
      %v1520 = vadd.f32 %v471, %v1519
      %v1521 = vpop.f32.mrb[0].mxu0
      %1522 = vmatprep.mubr.f32.mxu0 0.0
      %1523 = vmatmul.mubr.f32.gmra.mrb[0].mxu0 %v835
      %v1524 = vpop.f32.mrb[0].mxu0
      %v1525 = vadd.f32 %v471, %v1524
      %v1526 = vpop.f32.mrb[0].mxu0
      %1527 = vmatprep.mubr.f32.mxu0 0.0
      %1528 = vmatmul.mubr.f32.gmra.mrb[0].mxu0 %v838
      %v1529 = vpop.f32.mrb[0].mxu0
      %v1530 = vadd.f32 %v471, %v1529
      %v1531 = vpop.f32.mrb[0].mxu0
      %1532 = vmatprep.mubr.f32.mxu0 0.0
      %1533 = vmatmul.mubr.f32.gmra.mrb[0].mxu0 %v841
      %v1534 = vpop.f32.mrb[0].mxu0
      %v1535 = vadd.f32 %v471, %v1534
      %v1536 = vpop.f32.mrb[0].mxu0
      %1537 = vmatprep.mubr.f32.mxu0 0.0
      %1538 = vmatmul.mubr.f32.gmra.mrb[0].mxu0 %v844
      %v1539 = vpop.f32.mrb[0].mxu0
      %v1540 = vadd.f32 %v471, %v1539
      %v1541 = vpop.f32.mrb[0].mxu0
      %1542 = vmatprep.mubr.f32.mxu0 0.0
      %1543 = vmatmul.mubr.f32.gmra.mrb[0].mxu0 %v847
      %v1544 = vpop.f32.mrb[0].mxu0
      %v1545 = vadd.f32 %v471, %v1544
      %v1546 = vpop.f32.mrb[0].mxu0
      %1547 = vmatprep.mubr.f32.mxu0 0.0
      %1548 = vmatmul.mubr.f32.gmra.mrb[0].mxu0 %v850
      %v1549 = vpop.f32.mrb[0].mxu0
      %v1550 = vadd.f32 %v471, %v1549
      %v1551 = vpop.f32.mrb[0].mxu0
      %1552 = vmatprep.mubr.f32.mxu0 0.0
      %1553 = vmatmul.mubr.f32.gmra.mrb[0].mxu0 %v853
      %v1554 = vpop.f32.mrb[0].mxu0
      %v1555 = vadd.f32 %v471, %v1554
      %v1556 = vpop.f32.mrb[0].mxu0
      %1557 = vmatprep.mubr.f32.mxu0 0.0
      %1558 = vmatmul.mubr.f32.gmra.mrb[0].mxu0 %v856
      %v1559 = vpop.f32.mrb[0].mxu0
      %v1560 = vadd.f32 %v471, %v1559
      %v1561 = vpop.f32.mrb[0].mxu0
      %1562 = vdwg.mxu0
      %v1563 = vmax.f32 %v925, 0.0
      %v1564 = vmax.f32 %v930, 0.0
      %v1565 = vmax.f32 %v935, 0.0
      %v1566 = vmax.f32 %v940, 0.0
      %v1567 = vmax.f32 %v945, 0.0
      %v1568 = vmax.f32 %v950, 0.0
      %v1569 = vmax.f32 %v955, 0.0
      %v1570 = vmax.f32 %v960, 0.0
      %v1571 = vmax.f32 %v965, 0.0
      %v1572 = vmax.f32 %v970, 0.0
      %v1573 = vmax.f32 %v975, 0.0
      %v1574 = vmax.f32 %v980, 0.0
      %v1575 = vmax.f32 %v985, 0.0
      %v1576 = vmax.f32 %v990, 0.0
      %v1577 = vmax.f32 %v995, 0.0
      %v1578 = vmax.f32 %v1000, 0.0
      %v1579 = vmax.f32 %v1005, 0.0
      %v1580 = vmax.f32 %v1010, 0.0
      %v1581 = vmax.f32 %v1015, 0.0
      %v1582 = vmax.f32 %v1020, 0.0
      %v1583 = vmax.f32 %v1025, 0.0
      %v1584 = vmax.f32 %v1030, 0.0
      %v1585 = vmax.f32 %v1035, 0.0
      %v1586 = vmax.f32 %v1040, 0.0
      %v1587 = vmax.f32 %v1045, 0.0
      %v1588 = vmax.f32 %v1050, 0.0
      %v1589 = vmax.f32 %v1055, 0.0
      %v1590 = vmax.f32 %v1060, 0.0
      %v1591 = vmax.f32 %v1065, 0.0
      %v1592 = vmax.f32 %v1070, 0.0
      %v1593 = vmax.f32 %v1075, 0.0
      %v1594 = vmax.f32 %v1080, 0.0
      %v1595 = vmax.f32 %v1085, 0.0
      %v1596 = vmax.f32 %v1090, 0.0
      %v1597 = vmax.f32 %v1095, 0.0
      %v1598 = vmax.f32 %v1100, 0.0
      %v1599 = vmax.f32 %v1105, 0.0
      %v1600 = vmax.f32 %v1110, 0.0
      %v1601 = vmax.f32 %v1115, 0.0
      %v1602 = vmax.f32 %v1120, 0.0
      %v1603 = vmax.f32 %v1125, 0.0
      %v1604 = vmax.f32 %v1130, 0.0
      %v1605 = vmax.f32 %v1135, 0.0
      %v1606 = vmax.f32 %v1140, 0.0
      %v1607 = vmax.f32 %v1145, 0.0
      %v1608 = vmax.f32 %v1150, 0.0
      %v1609 = vmax.f32 %v1155, 0.0
      %v1610 = vmax.f32 %v1160, 0.0
      %v1611 = vmax.f32 %v1165, 0.0
      %v1612 = vmax.f32 %v1170, 0.0
      %v1613 = vmax.f32 %v1175, 0.0
      %v1614 = vmax.f32 %v1180, 0.0
      %v1615 = vmax.f32 %v1185, 0.0
      %v1616 = vmax.f32 %v1190, 0.0
      %v1617 = vmax.f32 %v1195, 0.0
      %v1618 = vmax.f32 %v1200, 0.0
      %v1619 = vmax.f32 %v1205, 0.0
      %v1620 = vmax.f32 %v1210, 0.0
      %v1621 = vmax.f32 %v1215, 0.0
      %v1622 = vmax.f32 %v1220, 0.0
      %v1623 = vmax.f32 %v1225, 0.0
      %v1624 = vmax.f32 %v1230, 0.0
      %v1625 = vmax.f32 %v1235, 0.0
      %v1626 = vmax.f32 %v1240, 0.0
      %v1627 = vmax.f32 %v1245, 0.0
      %v1628 = vmax.f32 %v1250, 0.0
      %v1629 = vmax.f32 %v1255, 0.0
      %v1630 = vmax.f32 %v1260, 0.0
      %v1631 = vmax.f32 %v1265, 0.0
      %v1632 = vmax.f32 %v1270, 0.0
      %v1633 = vmax.f32 %v1275, 0.0
      %v1634 = vmax.f32 %v1280, 0.0
      %v1635 = vmax.f32 %v1285, 0.0
      %v1636 = vmax.f32 %v1290, 0.0
      %v1637 = vmax.f32 %v1295, 0.0
      %v1638 = vmax.f32 %v1300, 0.0
      %v1639 = vmax.f32 %v1305, 0.0
      %v1640 = vmax.f32 %v1310, 0.0
      %v1641 = vmax.f32 %v1315, 0.0
      %v1642 = vmax.f32 %v1320, 0.0
      %v1643 = vmax.f32 %v1325, 0.0
      %v1644 = vmax.f32 %v1330, 0.0
      %v1645 = vmax.f32 %v1335, 0.0
      %v1646 = vmax.f32 %v1340, 0.0
      %v1647 = vmax.f32 %v1345, 0.0
      %v1648 = vmax.f32 %v1350, 0.0
      %v1649 = vmax.f32 %v1355, 0.0
      %v1650 = vmax.f32 %v1360, 0.0
      %v1651 = vmax.f32 %v1365, 0.0
      %v1652 = vmax.f32 %v1370, 0.0
      %v1653 = vmax.f32 %v1375, 0.0
      %v1654 = vmax.f32 %v1380, 0.0
      %v1655 = vmax.f32 %v1385, 0.0
      %v1656 = vmax.f32 %v1390, 0.0
      %v1657 = vmax.f32 %v1395, 0.0
      %v1658 = vmax.f32 %v1400, 0.0
      %v1659 = vmax.f32 %v1405, 0.0
      %v1660 = vmax.f32 %v1410, 0.0
      %v1661 = vmax.f32 %v1415, 0.0
      %v1662 = vmax.f32 %v1420, 0.0
      %v1663 = vmax.f32 %v1425, 0.0
      %v1664 = vmax.f32 %v1430, 0.0
      %v1665 = vmax.f32 %v1435, 0.0
      %v1666 = vmax.f32 %v1440, 0.0
      %v1667 = vmax.f32 %v1445, 0.0
      %v1668 = vmax.f32 %v1450, 0.0
      %v1669 = vmax.f32 %v1455, 0.0
      %v1670 = vmax.f32 %v1460, 0.0
      %v1671 = vmax.f32 %v1465, 0.0
      %v1672 = vmax.f32 %v1470, 0.0
      %v1673 = vmax.f32 %v1475, 0.0
      %v1674 = vmax.f32 %v1480, 0.0
      %v1675 = vmax.f32 %v1485, 0.0
      %v1676 = vmax.f32 %v1490, 0.0
      %v1677 = vmax.f32 %v1495, 0.0
      %v1678 = vmax.f32 %v1500, 0.0
      %v1679 = vmax.f32 %v1505, 0.0
      %v1680 = vmax.f32 %v1510, 0.0
      %v1681 = vmax.f32 %v1515, 0.0
      %v1682 = vmax.f32 %v1520, 0.0
      %v1683 = vmax.f32 %v1525, 0.0
      %v1684 = vmax.f32 %v1530, 0.0
      %v1685 = vmax.f32 %v1535, 0.0
      %v1686 = vmax.f32 %v1540, 0.0
      %v1687 = vmax.f32 %v1545, 0.0
      %v1688 = vmax.f32 %v1550, 0.0
      %v1689 = vmax.f32 %v1555, 0.0
      %v1690 = vmax.f32 %v1560, 0.0
      %v1691 = vld [vmem:[%s3] sm:$0xff]
      %v1692 = vld [vmem:[%s3 + $0x8] sm:$0xff]
      %v1693 = vld [vmem:[%s3 + $0x10] sm:$0xff]
      %v1694 = vld [vmem:[%s3 + $0x18] sm:$0xff]
      %v1695 = vld [vmem:[%s3 + $0x20] sm:$0xff]
      %v1696 = vld [vmem:[%s3 + $0x28] sm:$0xff]
      %v1697 = vld [vmem:[%s3 + $0x30] sm:$0xff]
      %v1698 = vld [vmem:[%s3 + $0x38] sm:$0xff]
      %v1699 = vld [vmem:[%s4] sm:$0x1]
      %v1701 = vlaneseq
      %v1702 = vshrl.u32 %v1701, 7
      %v1703 = vsub.s32 0, %v1702
      %v1704 = vrot.slane %v1699, %v1703
      %vm1706 = vcmask 523264
      %v1708 = vsel %vm1706, %v1563, 0
      %v1711 = vsel %vm1706, %v1564, 0
      %v1714 = vsel %vm1706, %v1565, 0
      %v1717 = vsel %vm1706, %v1566, 0
      %v1720 = vsel %vm1706, %v1567, 0
      %v1723 = vsel %vm1706, %v1568, 0
      %v1726 = vsel %vm1706, %v1569, 0
      %v1729 = vsel %vm1706, %v1570, 0
      %v1732 = vsel %vm1706, %v1571, 0
      %v1735 = vsel %vm1706, %v1572, 0
      %v1738 = vsel %vm1706, %v1573, 0
      %v1741 = vsel %vm1706, %v1574, 0
      %v1744 = vsel %vm1706, %v1575, 0
      %v1747 = vsel %vm1706, %v1576, 0
      %v1750 = vsel %vm1706, %v1577, 0
      %v1753 = vsel %vm1706, %v1578, 0
      %v1756 = vsel %vm1706, %v1579, 0
      %v1759 = vsel %vm1706, %v1580, 0
      %v1762 = vsel %vm1706, %v1581, 0
      %v1765 = vsel %vm1706, %v1582, 0
      %v1768 = vsel %vm1706, %v1583, 0
      %v1771 = vsel %vm1706, %v1584, 0
      %v1774 = vsel %vm1706, %v1585, 0
      %v1777 = vsel %vm1706, %v1586, 0
      %v1780 = vsel %vm1706, %v1587, 0
      %v1783 = vsel %vm1706, %v1588, 0
      %v1786 = vsel %vm1706, %v1589, 0
      %v1789 = vsel %vm1706, %v1590, 0
      %v1792 = vsel %vm1706, %v1591, 0
      %v1795 = vsel %vm1706, %v1592, 0
      %v1798 = vsel %vm1706, %v1593, 0
      %v1801 = vsel %vm1706, %v1594, 0
      %v1804 = vsel %vm1706, %v1595, 0
      %v1807 = vsel %vm1706, %v1596, 0
      %v1810 = vsel %vm1706, %v1597, 0
      %v1813 = vsel %vm1706, %v1598, 0
      %v1816 = vsel %vm1706, %v1599, 0
      %v1819 = vsel %vm1706, %v1600, 0
      %v1822 = vsel %vm1706, %v1601, 0
      %v1825 = vsel %vm1706, %v1602, 0
      %v1828 = vsel %vm1706, %v1603, 0
      %v1831 = vsel %vm1706, %v1604, 0
      %v1834 = vsel %vm1706, %v1605, 0
      %v1837 = vsel %vm1706, %v1606, 0
      %v1840 = vsel %vm1706, %v1607, 0
      %v1843 = vsel %vm1706, %v1608, 0
      %v1846 = vsel %vm1706, %v1609, 0
      %v1849 = vsel %vm1706, %v1610, 0
      %v1852 = vsel %vm1706, %v1611, 0
      %v1855 = vsel %vm1706, %v1612, 0
      %v1858 = vsel %vm1706, %v1613, 0
      %v1861 = vsel %vm1706, %v1614, 0
      %v1864 = vsel %vm1706, %v1615, 0
      %v1867 = vsel %vm1706, %v1616, 0
      %v1870 = vsel %vm1706, %v1617, 0
      %v1873 = vsel %vm1706, %v1618, 0
      %v1876 = vsel %vm1706, %v1619, 0
      %v1879 = vsel %vm1706, %v1620, 0
      %v1882 = vsel %vm1706, %v1621, 0
      %v1885 = vsel %vm1706, %v1622, 0
      %v1888 = vsel %vm1706, %v1623, 0
      %v1891 = vsel %vm1706, %v1624, 0
      %v1894 = vsel %vm1706, %v1625, 0
      %v1897 = vsel %vm1706, %v1626, 0
      %v1900 = vsel %vm1706, %v1627, 0
      %v1903 = vsel %vm1706, %v1628, 0
      %v1906 = vsel %vm1706, %v1629, 0
      %v1909 = vsel %vm1706, %v1630, 0
      %v1912 = vsel %vm1706, %v1631, 0
      %v1915 = vsel %vm1706, %v1632, 0
      %v1918 = vsel %vm1706, %v1633, 0
      %v1921 = vsel %vm1706, %v1634, 0
      %v1924 = vsel %vm1706, %v1635, 0
      %v1927 = vsel %vm1706, %v1636, 0
      %v1930 = vsel %vm1706, %v1637, 0
      %v1933 = vsel %vm1706, %v1638, 0
      %v1936 = vsel %vm1706, %v1639, 0
      %v1939 = vsel %vm1706, %v1640, 0
      %v1942 = vsel %vm1706, %v1641, 0
      %v1945 = vsel %vm1706, %v1642, 0
      %v1948 = vsel %vm1706, %v1643, 0
      %v1951 = vsel %vm1706, %v1644, 0
      %v1954 = vsel %vm1706, %v1645, 0
      %v1957 = vsel %vm1706, %v1646, 0
      %v1960 = vsel %vm1706, %v1647, 0
      %v1963 = vsel %vm1706, %v1648, 0
      %v1966 = vsel %vm1706, %v1649, 0
      %v1969 = vsel %vm1706, %v1650, 0
      %v1972 = vsel %vm1706, %v1651, 0
      %v1975 = vsel %vm1706, %v1652, 0
      %v1978 = vsel %vm1706, %v1653, 0
      %v1981 = vsel %vm1706, %v1654, 0
      %v1984 = vsel %vm1706, %v1655, 0
      %v1987 = vsel %vm1706, %v1656, 0
      %v1990 = vsel %vm1706, %v1657, 0
      %v1993 = vsel %vm1706, %v1658, 0
      %v1996 = vsel %vm1706, %v1659, 0
      %v1999 = vsel %vm1706, %v1660, 0
      %v2002 = vsel %vm1706, %v1661, 0
      %v2005 = vsel %vm1706, %v1662, 0
      %v2008 = vsel %vm1706, %v1663, 0
      %v2011 = vsel %vm1706, %v1664, 0
      %v2014 = vsel %vm1706, %v1665, 0
      %v2017 = vsel %vm1706, %v1666, 0
      %v2020 = vsel %vm1706, %v1667, 0
      %v2023 = vsel %vm1706, %v1668, 0
      %v2026 = vsel %vm1706, %v1669, 0
      %v2029 = vsel %vm1706, %v1670, 0
      %v2032 = vsel %vm1706, %v1671, 0
      %v2035 = vsel %vm1706, %v1672, 0
      %v2038 = vsel %vm1706, %v1673, 0
      %v2041 = vsel %vm1706, %v1674, 0
      %v2044 = vsel %vm1706, %v1675, 0
      %v2047 = vsel %vm1706, %v1676, 0
      %v2050 = vsel %vm1706, %v1677, 0
      %v2053 = vsel %vm1706, %v1678, 0
      %v2056 = vsel %vm1706, %v1679, 0
      %v2059 = vsel %vm1706, %v1680, 0
      %v2062 = vsel %vm1706, %v1681, 0
      %v2065 = vsel %vm1706, %v1682, 0
      %v2068 = vsel %vm1706, %v1683, 0
      %v2071 = vsel %vm1706, %v1684, 0
      %v2074 = vsel %vm1706, %v1685, 0
      %v2077 = vsel %vm1706, %v1686, 0
      %v2080 = vsel %vm1706, %v1687, 0
      %v2083 = vsel %vm1706, %v1688, 0
      %v2086 = vsel %vm1706, %v1689, 0
      %v2089 = vsel %vm1706, %v1690, 0
      %2091 = vmatprep.subr.mxu0 0.0
      %2092 = vmatpush1.msra.mxu0 %v1691
      %2093 = vmatprep.subr.mxu0 0.0
      %2094 = vmatpush1.msra.mxu0 %v1692
      %2095 = vmatprep.subr.mxu0 0.0
      %2096 = vmatpush1.msra.mxu0 %v1693
      %2097 = vmatprep.subr.mxu0 0.0
      %2098 = vmatpush1.msra.mxu0 %v1694
      %2099 = vmatprep.subr.mxu0 0.0
      %2100 = vmatpush1.msra.mxu0 %v1695
      %2101 = vmatprep.subr.mxu0 0.0
      %2102 = vmatpush1.msra.mxu0 %v1696
      %2103 = vmatprep.subr.mxu0 0.0
      %2104 = vmatpush1.msra.mxu0 %v1697
      %2105 = vmatprep.subr.mxu0 0.0
      %2106 = vmatpush1.msra.mxu0 %v1698
      %2107 = vmatprep.subr.mxu0 0.0
      %2108 = vmatpush1.msra.mxu0 0.0
      %2109 = vmatprep.subr.mxu0 0.0
      %2110 = vmatpush1.msra.mxu0 0.0
      %2111 = vmatprep.subr.mxu0 0.0
      %2112 = vmatpush1.msra.mxu0 0.0
      %2113 = vmatprep.subr.mxu0 0.0
      %2114 = vmatpush1.msra.mxu0 0.0
      %2115 = vmatprep.subr.mxu0 0.0
      %2116 = vmatpush1.msra.mxu0 0.0
      %2117 = vmatprep.subr.mxu0 0.0
      %2118 = vmatpush1.msra.mxu0 0.0
      %2119 = vmatprep.subr.mxu0 0.0
      %2120 = vmatpush1.msra.mxu0 0.0
      %2121 = vmatprep.subr.mxu0 0.0
      %2122 = vmatpush1.msra.mxu0 0.0
      %2123 = vmatprep.subr.mxu0 0.0
      %2124 = vmatpush1.msra.mxu0 0.0
      %2125 = vmatprep.subr.mxu0 0.0
      %2126 = vmatpush1.msra.mxu0 0.0
      %2127 = vmatprep.subr.mxu0 0.0
      %2128 = vmatpush1.msra.mxu0 0.0
      %2129 = vmatprep.subr.mxu0 0.0
      %2130 = vmatpush1.msra.mxu0 0.0
      %2131 = vmatprep.subr.mxu0 0.0
      %2132 = vmatpush1.msra.mxu0 0.0
      %2133 = vmatprep.subr.mxu0 0.0
      %2134 = vmatpush1.msra.mxu0 0.0
      %2135 = vmatprep.subr.mxu0 0.0
      %2136 = vmatpush1.msra.mxu0 0.0
      %2137 = vmatprep.subr.mxu0 0.0
      %2138 = vmatpush1.msra.mxu0 0.0
      %2139 = vmatprep.subr.mxu0 0.0
      %2140 = vmatpush1.msra.mxu0 0.0
      %2141 = vmatprep.subr.mxu0 0.0
      %2142 = vmatpush1.msra.mxu0 0.0
      %2143 = vmatprep.subr.mxu0 0.0
      %2144 = vmatpush1.msra.mxu0 0.0
      %2145 = vmatprep.subr.mxu0 0.0
      %2146 = vmatpush1.msra.mxu0 0.0
      %2147 = vmatprep.subr.mxu0 0.0
      %2148 = vmatpush1.msra.mxu0 0.0
      %2149 = vmatprep.subr.mxu0 0.0
      %2150 = vmatpush1.msra.mxu0 0.0
      %2151 = vmatprep.subr.mxu0 0.0
      %2152 = vmatpush1.msra.mxu0 0.0
      %2153 = vmatprep.subr.mxu0 0.0
      %2154 = vmatpush1.msra.mxu0 0.0
      %2155 = vmatprep.mubr.f32.mxu0 0.0
      %2156 = vmatmul.mubr.f32.gmra.mrb[0].mxu0 %v1708
      %v2157 = vpop.f32.mrb[0].mxu0
      %v2158 = vadd.f32 %v1704, %v2157
      %v2159 = vpop.f32.mrb[0].mxu0
      %2160 = vmatprep.mubr.f32.mxu0 0.0
      %2161 = vmatmul.mubr.f32.gmra.mrb[0].mxu0 %v1711
      %v2162 = vpop.f32.mrb[0].mxu0
      %v2163 = vadd.f32 %v1704, %v2162
      %v2164 = vpop.f32.mrb[0].mxu0
      %2165 = vmatprep.mubr.f32.mxu0 0.0
      %2166 = vmatmul.mubr.f32.gmra.mrb[0].mxu0 %v1714
      %v2167 = vpop.f32.mrb[0].mxu0
      %v2168 = vadd.f32 %v1704, %v2167
      %v2169 = vpop.f32.mrb[0].mxu0
      %2170 = vmatprep.mubr.f32.mxu0 0.0
      %2171 = vmatmul.mubr.f32.gmra.mrb[0].mxu0 %v1717
      %v2172 = vpop.f32.mrb[0].mxu0
      %v2173 = vadd.f32 %v1704, %v2172
      %v2174 = vpop.f32.mrb[0].mxu0
      %2175 = vmatprep.mubr.f32.mxu0 0.0
      %2176 = vmatmul.mubr.f32.gmra.mrb[0].mxu0 %v1720
      %v2177 = vpop.f32.mrb[0].mxu0
      %v2178 = vadd.f32 %v1704, %v2177
      %v2179 = vpop.f32.mrb[0].mxu0
      %2180 = vmatprep.mubr.f32.mxu0 0.0
      %2181 = vmatmul.mubr.f32.gmra.mrb[0].mxu0 %v1723
      %v2182 = vpop.f32.mrb[0].mxu0
      %v2183 = vadd.f32 %v1704, %v2182
      %v2184 = vpop.f32.mrb[0].mxu0
      %2185 = vmatprep.mubr.f32.mxu0 0.0
      %2186 = vmatmul.mubr.f32.gmra.mrb[0].mxu0 %v1726
      %v2187 = vpop.f32.mrb[0].mxu0
      %v2188 = vadd.f32 %v1704, %v2187
      %v2189 = vpop.f32.mrb[0].mxu0
      %2190 = vmatprep.mubr.f32.mxu0 0.0
      %2191 = vmatmul.mubr.f32.gmra.mrb[0].mxu0 %v1729
      %v2192 = vpop.f32.mrb[0].mxu0
      %v2193 = vadd.f32 %v1704, %v2192
      %v2194 = vpop.f32.mrb[0].mxu0
      %2195 = vmatprep.mubr.f32.mxu0 0.0
      %2196 = vmatmul.mubr.f32.gmra.mrb[0].mxu0 %v1732
      %v2197 = vpop.f32.mrb[0].mxu0
      %v2198 = vadd.f32 %v1704, %v2197
      %v2199 = vpop.f32.mrb[0].mxu0
      %2200 = vmatprep.mubr.f32.mxu0 0.0
      %2201 = vmatmul.mubr.f32.gmra.mrb[0].mxu0 %v1735
      %v2202 = vpop.f32.mrb[0].mxu0
      %v2203 = vadd.f32 %v1704, %v2202
      %v2204 = vpop.f32.mrb[0].mxu0
      %2205 = vmatprep.mubr.f32.mxu0 0.0
      %2206 = vmatmul.mubr.f32.gmra.mrb[0].mxu0 %v1738
      %v2207 = vpop.f32.mrb[0].mxu0
      %v2208 = vadd.f32 %v1704, %v2207
      %v2209 = vpop.f32.mrb[0].mxu0
      %2210 = vmatprep.mubr.f32.mxu0 0.0
      %2211 = vmatmul.mubr.f32.gmra.mrb[0].mxu0 %v1741
      %v2212 = vpop.f32.mrb[0].mxu0
      %v2213 = vadd.f32 %v1704, %v2212
      %v2214 = vpop.f32.mrb[0].mxu0
      %2215 = vmatprep.mubr.f32.mxu0 0.0
      %2216 = vmatmul.mubr.f32.gmra.mrb[0].mxu0 %v1744
      %v2217 = vpop.f32.mrb[0].mxu0
      %v2218 = vadd.f32 %v1704, %v2217
      %v2219 = vpop.f32.mrb[0].mxu0
      %2220 = vmatprep.mubr.f32.mxu0 0.0
      %2221 = vmatmul.mubr.f32.gmra.mrb[0].mxu0 %v1747
      %v2222 = vpop.f32.mrb[0].mxu0
      %v2223 = vadd.f32 %v1704, %v2222
      %v2224 = vpop.f32.mrb[0].mxu0
      %2225 = vmatprep.mubr.f32.mxu0 0.0
      %2226 = vmatmul.mubr.f32.gmra.mrb[0].mxu0 %v1750
      %v2227 = vpop.f32.mrb[0].mxu0
      %v2228 = vadd.f32 %v1704, %v2227
      %v2229 = vpop.f32.mrb[0].mxu0
      %2230 = vmatprep.mubr.f32.mxu0 0.0
      %2231 = vmatmul.mubr.f32.gmra.mrb[0].mxu0 %v1753
      %v2232 = vpop.f32.mrb[0].mxu0
      %v2233 = vadd.f32 %v1704, %v2232
      %v2234 = vpop.f32.mrb[0].mxu0
      %2235 = vmatprep.mubr.f32.mxu0 0.0
      %2236 = vmatmul.mubr.f32.gmra.mrb[0].mxu0 %v1756
      %v2237 = vpop.f32.mrb[0].mxu0
      %v2238 = vadd.f32 %v1704, %v2237
      %v2239 = vpop.f32.mrb[0].mxu0
      %2240 = vmatprep.mubr.f32.mxu0 0.0
      %2241 = vmatmul.mubr.f32.gmra.mrb[0].mxu0 %v1759
      %v2242 = vpop.f32.mrb[0].mxu0
      %v2243 = vadd.f32 %v1704, %v2242
      %v2244 = vpop.f32.mrb[0].mxu0
      %2245 = vmatprep.mubr.f32.mxu0 0.0
      %2246 = vmatmul.mubr.f32.gmra.mrb[0].mxu0 %v1762
      %v2247 = vpop.f32.mrb[0].mxu0
      %v2248 = vadd.f32 %v1704, %v2247
      %v2249 = vpop.f32.mrb[0].mxu0
      %2250 = vmatprep.mubr.f32.mxu0 0.0
      %2251 = vmatmul.mubr.f32.gmra.mrb[0].mxu0 %v1765
      %v2252 = vpop.f32.mrb[0].mxu0
      %v2253 = vadd.f32 %v1704, %v2252
      %v2254 = vpop.f32.mrb[0].mxu0
      %2255 = vmatprep.mubr.f32.mxu0 0.0
      %2256 = vmatmul.mubr.f32.gmra.mrb[0].mxu0 %v1768
      %v2257 = vpop.f32.mrb[0].mxu0
      %v2258 = vadd.f32 %v1704, %v2257
      %v2259 = vpop.f32.mrb[0].mxu0
      %2260 = vmatprep.mubr.f32.mxu0 0.0
      %2261 = vmatmul.mubr.f32.gmra.mrb[0].mxu0 %v1771
      %v2262 = vpop.f32.mrb[0].mxu0
      %v2263 = vadd.f32 %v1704, %v2262
      %v2264 = vpop.f32.mrb[0].mxu0
      %2265 = vmatprep.mubr.f32.mxu0 0.0
      %2266 = vmatmul.mubr.f32.gmra.mrb[0].mxu0 %v1774
      %v2267 = vpop.f32.mrb[0].mxu0
      %v2268 = vadd.f32 %v1704, %v2267
      %v2269 = vpop.f32.mrb[0].mxu0
      %2270 = vmatprep.mubr.f32.mxu0 0.0
      %2271 = vmatmul.mubr.f32.gmra.mrb[0].mxu0 %v1777
      %v2272 = vpop.f32.mrb[0].mxu0
      %v2273 = vadd.f32 %v1704, %v2272
      %v2274 = vpop.f32.mrb[0].mxu0
      %2275 = vmatprep.mubr.f32.mxu0 0.0
      %2276 = vmatmul.mubr.f32.gmra.mrb[0].mxu0 %v1780
      %v2277 = vpop.f32.mrb[0].mxu0
      %v2278 = vadd.f32 %v1704, %v2277
      %v2279 = vpop.f32.mrb[0].mxu0
      %2280 = vmatprep.mubr.f32.mxu0 0.0
      %2281 = vmatmul.mubr.f32.gmra.mrb[0].mxu0 %v1783
      %v2282 = vpop.f32.mrb[0].mxu0
      %v2283 = vadd.f32 %v1704, %v2282
      %v2284 = vpop.f32.mrb[0].mxu0
      %2285 = vmatprep.mubr.f32.mxu0 0.0
      %2286 = vmatmul.mubr.f32.gmra.mrb[0].mxu0 %v1786
      %v2287 = vpop.f32.mrb[0].mxu0
      %v2288 = vadd.f32 %v1704, %v2287
      %v2289 = vpop.f32.mrb[0].mxu0
      %2290 = vmatprep.mubr.f32.mxu0 0.0
      %2291 = vmatmul.mubr.f32.gmra.mrb[0].mxu0 %v1789
      %v2292 = vpop.f32.mrb[0].mxu0
      %v2293 = vadd.f32 %v1704, %v2292
      %v2294 = vpop.f32.mrb[0].mxu0
      %2295 = vmatprep.mubr.f32.mxu0 0.0
      %2296 = vmatmul.mubr.f32.gmra.mrb[0].mxu0 %v1792
      %v2297 = vpop.f32.mrb[0].mxu0
      %v2298 = vadd.f32 %v1704, %v2297
      %v2299 = vpop.f32.mrb[0].mxu0
      %2300 = vmatprep.mubr.f32.mxu0 0.0
      %2301 = vmatmul.mubr.f32.gmra.mrb[0].mxu0 %v1795
      %v2302 = vpop.f32.mrb[0].mxu0
      %v2303 = vadd.f32 %v1704, %v2302
      %v2304 = vpop.f32.mrb[0].mxu0
      %2305 = vmatprep.mubr.f32.mxu0 0.0
      %2306 = vmatmul.mubr.f32.gmra.mrb[0].mxu0 %v1798
      %v2307 = vpop.f32.mrb[0].mxu0
      %v2308 = vadd.f32 %v1704, %v2307
      %v2309 = vpop.f32.mrb[0].mxu0
      %2310 = vmatprep.mubr.f32.mxu0 0.0
      %2311 = vmatmul.mubr.f32.gmra.mrb[0].mxu0 %v1801
      %v2312 = vpop.f32.mrb[0].mxu0
      %v2313 = vadd.f32 %v1704, %v2312
      %v2314 = vpop.f32.mrb[0].mxu0
      %2315 = vmatprep.mubr.f32.mxu0 0.0
      %2316 = vmatmul.mubr.f32.gmra.mrb[0].mxu0 %v1804
      %v2317 = vpop.f32.mrb[0].mxu0
      %v2318 = vadd.f32 %v1704, %v2317
      %v2319 = vpop.f32.mrb[0].mxu0
      %2320 = vmatprep.mubr.f32.mxu0 0.0
      %2321 = vmatmul.mubr.f32.gmra.mrb[0].mxu0 %v1807
      %v2322 = vpop.f32.mrb[0].mxu0
      %v2323 = vadd.f32 %v1704, %v2322
      %v2324 = vpop.f32.mrb[0].mxu0
      %2325 = vmatprep.mubr.f32.mxu0 0.0
      %2326 = vmatmul.mubr.f32.gmra.mrb[0].mxu0 %v1810
      %v2327 = vpop.f32.mrb[0].mxu0
      %v2328 = vadd.f32 %v1704, %v2327
      %v2329 = vpop.f32.mrb[0].mxu0
      %2330 = vmatprep.mubr.f32.mxu0 0.0
      %2331 = vmatmul.mubr.f32.gmra.mrb[0].mxu0 %v1813
      %v2332 = vpop.f32.mrb[0].mxu0
      %v2333 = vadd.f32 %v1704, %v2332
      %v2334 = vpop.f32.mrb[0].mxu0
      %2335 = vmatprep.mubr.f32.mxu0 0.0
      %2336 = vmatmul.mubr.f32.gmra.mrb[0].mxu0 %v1816
      %v2337 = vpop.f32.mrb[0].mxu0
      %v2338 = vadd.f32 %v1704, %v2337
      %v2339 = vpop.f32.mrb[0].mxu0
      %2340 = vmatprep.mubr.f32.mxu0 0.0
      %2341 = vmatmul.mubr.f32.gmra.mrb[0].mxu0 %v1819
      %v2342 = vpop.f32.mrb[0].mxu0
      %v2343 = vadd.f32 %v1704, %v2342
      %v2344 = vpop.f32.mrb[0].mxu0
      %2345 = vmatprep.mubr.f32.mxu0 0.0
      %2346 = vmatmul.mubr.f32.gmra.mrb[0].mxu0 %v1822
      %v2347 = vpop.f32.mrb[0].mxu0
      %v2348 = vadd.f32 %v1704, %v2347
      %v2349 = vpop.f32.mrb[0].mxu0
      %2350 = vmatprep.mubr.f32.mxu0 0.0
      %2351 = vmatmul.mubr.f32.gmra.mrb[0].mxu0 %v1825
      %v2352 = vpop.f32.mrb[0].mxu0
      %v2353 = vadd.f32 %v1704, %v2352
      %v2354 = vpop.f32.mrb[0].mxu0
      %2355 = vmatprep.mubr.f32.mxu0 0.0
      %2356 = vmatmul.mubr.f32.gmra.mrb[0].mxu0 %v1828
      %v2357 = vpop.f32.mrb[0].mxu0
      %v2358 = vadd.f32 %v1704, %v2357
      %v2359 = vpop.f32.mrb[0].mxu0
      %2360 = vmatprep.mubr.f32.mxu0 0.0
      %2361 = vmatmul.mubr.f32.gmra.mrb[0].mxu0 %v1831
      %v2362 = vpop.f32.mrb[0].mxu0
      %v2363 = vadd.f32 %v1704, %v2362
      %v2364 = vpop.f32.mrb[0].mxu0
      %2365 = vmatprep.mubr.f32.mxu0 0.0
      %2366 = vmatmul.mubr.f32.gmra.mrb[0].mxu0 %v1834
      %v2367 = vpop.f32.mrb[0].mxu0
      %v2368 = vadd.f32 %v1704, %v2367
      %v2369 = vpop.f32.mrb[0].mxu0
      %2370 = vmatprep.mubr.f32.mxu0 0.0
      %2371 = vmatmul.mubr.f32.gmra.mrb[0].mxu0 %v1837
      %v2372 = vpop.f32.mrb[0].mxu0
      %v2373 = vadd.f32 %v1704, %v2372
      %v2374 = vpop.f32.mrb[0].mxu0
      %2375 = vmatprep.mubr.f32.mxu0 0.0
      %2376 = vmatmul.mubr.f32.gmra.mrb[0].mxu0 %v1840
      %v2377 = vpop.f32.mrb[0].mxu0
      %v2378 = vadd.f32 %v1704, %v2377
      %v2379 = vpop.f32.mrb[0].mxu0
      %2380 = vmatprep.mubr.f32.mxu0 0.0
      %2381 = vmatmul.mubr.f32.gmra.mrb[0].mxu0 %v1843
      %v2382 = vpop.f32.mrb[0].mxu0
      %v2383 = vadd.f32 %v1704, %v2382
      %v2384 = vpop.f32.mrb[0].mxu0
      %2385 = vmatprep.mubr.f32.mxu0 0.0
      %2386 = vmatmul.mubr.f32.gmra.mrb[0].mxu0 %v1846
      %v2387 = vpop.f32.mrb[0].mxu0
      %v2388 = vadd.f32 %v1704, %v2387
      %v2389 = vpop.f32.mrb[0].mxu0
      %2390 = vmatprep.mubr.f32.mxu0 0.0
      %2391 = vmatmul.mubr.f32.gmra.mrb[0].mxu0 %v1849
      %v2392 = vpop.f32.mrb[0].mxu0
      %v2393 = vadd.f32 %v1704, %v2392
      %v2394 = vpop.f32.mrb[0].mxu0
      %2395 = vmatprep.mubr.f32.mxu0 0.0
      %2396 = vmatmul.mubr.f32.gmra.mrb[0].mxu0 %v1852
      %v2397 = vpop.f32.mrb[0].mxu0
      %v2398 = vadd.f32 %v1704, %v2397
      %v2399 = vpop.f32.mrb[0].mxu0
      %2400 = vmatprep.mubr.f32.mxu0 0.0
      %2401 = vmatmul.mubr.f32.gmra.mrb[0].mxu0 %v1855
      %v2402 = vpop.f32.mrb[0].mxu0
      %v2403 = vadd.f32 %v1704, %v2402
      %v2404 = vpop.f32.mrb[0].mxu0
      %2405 = vmatprep.mubr.f32.mxu0 0.0
      %2406 = vmatmul.mubr.f32.gmra.mrb[0].mxu0 %v1858
      %v2407 = vpop.f32.mrb[0].mxu0
      %v2408 = vadd.f32 %v1704, %v2407
      %v2409 = vpop.f32.mrb[0].mxu0
      %2410 = vmatprep.mubr.f32.mxu0 0.0
      %2411 = vmatmul.mubr.f32.gmra.mrb[0].mxu0 %v1861
      %v2412 = vpop.f32.mrb[0].mxu0
      %v2413 = vadd.f32 %v1704, %v2412
      %v2414 = vpop.f32.mrb[0].mxu0
      %2415 = vmatprep.mubr.f32.mxu0 0.0
      %2416 = vmatmul.mubr.f32.gmra.mrb[0].mxu0 %v1864
      %v2417 = vpop.f32.mrb[0].mxu0
      %v2418 = vadd.f32 %v1704, %v2417
      %v2419 = vpop.f32.mrb[0].mxu0
      %2420 = vmatprep.mubr.f32.mxu0 0.0
      %2421 = vmatmul.mubr.f32.gmra.mrb[0].mxu0 %v1867
      %v2422 = vpop.f32.mrb[0].mxu0
      %v2423 = vadd.f32 %v1704, %v2422
      %v2424 = vpop.f32.mrb[0].mxu0
      %2425 = vmatprep.mubr.f32.mxu0 0.0
      %2426 = vmatmul.mubr.f32.gmra.mrb[0].mxu0 %v1870
      %v2427 = vpop.f32.mrb[0].mxu0
      %v2428 = vadd.f32 %v1704, %v2427
      %v2429 = vpop.f32.mrb[0].mxu0
      %2430 = vmatprep.mubr.f32.mxu0 0.0
      %2431 = vmatmul.mubr.f32.gmra.mrb[0].mxu0 %v1873
      %v2432 = vpop.f32.mrb[0].mxu0
      %v2433 = vadd.f32 %v1704, %v2432
      %v2434 = vpop.f32.mrb[0].mxu0
      %2435 = vmatprep.mubr.f32.mxu0 0.0
      %2436 = vmatmul.mubr.f32.gmra.mrb[0].mxu0 %v1876
      %v2437 = vpop.f32.mrb[0].mxu0
      %v2438 = vadd.f32 %v1704, %v2437
      %v2439 = vpop.f32.mrb[0].mxu0
      %2440 = vmatprep.mubr.f32.mxu0 0.0
      %2441 = vmatmul.mubr.f32.gmra.mrb[0].mxu0 %v1879
      %v2442 = vpop.f32.mrb[0].mxu0
      %v2443 = vadd.f32 %v1704, %v2442
      %v2444 = vpop.f32.mrb[0].mxu0
      %2445 = vmatprep.mubr.f32.mxu0 0.0
      %2446 = vmatmul.mubr.f32.gmra.mrb[0].mxu0 %v1882
      %v2447 = vpop.f32.mrb[0].mxu0
      %v2448 = vadd.f32 %v1704, %v2447
      %v2449 = vpop.f32.mrb[0].mxu0
      %2450 = vmatprep.mubr.f32.mxu0 0.0
      %2451 = vmatmul.mubr.f32.gmra.mrb[0].mxu0 %v1885
      %v2452 = vpop.f32.mrb[0].mxu0
      %v2453 = vadd.f32 %v1704, %v2452
      %v2454 = vpop.f32.mrb[0].mxu0
      %2455 = vmatprep.mubr.f32.mxu0 0.0
      %2456 = vmatmul.mubr.f32.gmra.mrb[0].mxu0 %v1888
      %v2457 = vpop.f32.mrb[0].mxu0
      %v2458 = vadd.f32 %v1704, %v2457
      %v2459 = vpop.f32.mrb[0].mxu0
      %2460 = vmatprep.mubr.f32.mxu0 0.0
      %2461 = vmatmul.mubr.f32.gmra.mrb[0].mxu0 %v1891
      %v2462 = vpop.f32.mrb[0].mxu0
      %v2463 = vadd.f32 %v1704, %v2462
      %v2464 = vpop.f32.mrb[0].mxu0
      %2465 = vmatprep.mubr.f32.mxu0 0.0
      %2466 = vmatmul.mubr.f32.gmra.mrb[0].mxu0 %v1894
      %v2467 = vpop.f32.mrb[0].mxu0
      %v2468 = vadd.f32 %v1704, %v2467
      %v2469 = vpop.f32.mrb[0].mxu0
      %2470 = vmatprep.mubr.f32.mxu0 0.0
      %2471 = vmatmul.mubr.f32.gmra.mrb[0].mxu0 %v1897
      %v2472 = vpop.f32.mrb[0].mxu0
      %v2473 = vadd.f32 %v1704, %v2472
      %v2474 = vpop.f32.mrb[0].mxu0
      %2475 = vmatprep.mubr.f32.mxu0 0.0
      %2476 = vmatmul.mubr.f32.gmra.mrb[0].mxu0 %v1900
      %v2477 = vpop.f32.mrb[0].mxu0
      %v2478 = vadd.f32 %v1704, %v2477
      %v2479 = vpop.f32.mrb[0].mxu0
      %2480 = vmatprep.mubr.f32.mxu0 0.0
      %2481 = vmatmul.mubr.f32.gmra.mrb[0].mxu0 %v1903
      %v2482 = vpop.f32.mrb[0].mxu0
      %v2483 = vadd.f32 %v1704, %v2482
      %v2484 = vpop.f32.mrb[0].mxu0
      %2485 = vmatprep.mubr.f32.mxu0 0.0
      %2486 = vmatmul.mubr.f32.gmra.mrb[0].mxu0 %v1906
      %v2487 = vpop.f32.mrb[0].mxu0
      %v2488 = vadd.f32 %v1704, %v2487
      %v2489 = vpop.f32.mrb[0].mxu0
      %2490 = vmatprep.mubr.f32.mxu0 0.0
      %2491 = vmatmul.mubr.f32.gmra.mrb[0].mxu0 %v1909
      %v2492 = vpop.f32.mrb[0].mxu0
      %v2493 = vadd.f32 %v1704, %v2492
      %v2494 = vpop.f32.mrb[0].mxu0
      %2495 = vmatprep.mubr.f32.mxu0 0.0
      %2496 = vmatmul.mubr.f32.gmra.mrb[0].mxu0 %v1912
      %v2497 = vpop.f32.mrb[0].mxu0
      %v2498 = vadd.f32 %v1704, %v2497
      %v2499 = vpop.f32.mrb[0].mxu0
      %2500 = vmatprep.mubr.f32.mxu0 0.0
      %2501 = vmatmul.mubr.f32.gmra.mrb[0].mxu0 %v1915
      %v2502 = vpop.f32.mrb[0].mxu0
      %v2503 = vadd.f32 %v1704, %v2502
      %v2504 = vpop.f32.mrb[0].mxu0
      %2505 = vmatprep.mubr.f32.mxu0 0.0
      %2506 = vmatmul.mubr.f32.gmra.mrb[0].mxu0 %v1918
      %v2507 = vpop.f32.mrb[0].mxu0
      %v2508 = vadd.f32 %v1704, %v2507
      %v2509 = vpop.f32.mrb[0].mxu0
      %2510 = vmatprep.mubr.f32.mxu0 0.0
      %2511 = vmatmul.mubr.f32.gmra.mrb[0].mxu0 %v1921
      %v2512 = vpop.f32.mrb[0].mxu0
      %v2513 = vadd.f32 %v1704, %v2512
      %v2514 = vpop.f32.mrb[0].mxu0
      %2515 = vmatprep.mubr.f32.mxu0 0.0
      %2516 = vmatmul.mubr.f32.gmra.mrb[0].mxu0 %v1924
      %v2517 = vpop.f32.mrb[0].mxu0
      %v2518 = vadd.f32 %v1704, %v2517
      %v2519 = vpop.f32.mrb[0].mxu0
      %2520 = vmatprep.mubr.f32.mxu0 0.0
      %2521 = vmatmul.mubr.f32.gmra.mrb[0].mxu0 %v1927
      %v2522 = vpop.f32.mrb[0].mxu0
      %v2523 = vadd.f32 %v1704, %v2522
      %v2524 = vpop.f32.mrb[0].mxu0
      %2525 = vmatprep.mubr.f32.mxu0 0.0
      %2526 = vmatmul.mubr.f32.gmra.mrb[0].mxu0 %v1930
      %v2527 = vpop.f32.mrb[0].mxu0
      %v2528 = vadd.f32 %v1704, %v2527
      %v2529 = vpop.f32.mrb[0].mxu0
      %2530 = vmatprep.mubr.f32.mxu0 0.0
      %2531 = vmatmul.mubr.f32.gmra.mrb[0].mxu0 %v1933
      %v2532 = vpop.f32.mrb[0].mxu0
      %v2533 = vadd.f32 %v1704, %v2532
      %v2534 = vpop.f32.mrb[0].mxu0
      %2535 = vmatprep.mubr.f32.mxu0 0.0
      %2536 = vmatmul.mubr.f32.gmra.mrb[0].mxu0 %v1936
      %v2537 = vpop.f32.mrb[0].mxu0
      %v2538 = vadd.f32 %v1704, %v2537
      %v2539 = vpop.f32.mrb[0].mxu0
      %2540 = vmatprep.mubr.f32.mxu0 0.0
      %2541 = vmatmul.mubr.f32.gmra.mrb[0].mxu0 %v1939
      %v2542 = vpop.f32.mrb[0].mxu0
      %v2543 = vadd.f32 %v1704, %v2542
      %v2544 = vpop.f32.mrb[0].mxu0
      %2545 = vmatprep.mubr.f32.mxu0 0.0
      %2546 = vmatmul.mubr.f32.gmra.mrb[0].mxu0 %v1942
      %v2547 = vpop.f32.mrb[0].mxu0
      %v2548 = vadd.f32 %v1704, %v2547
      %v2549 = vpop.f32.mrb[0].mxu0
      %2550 = vmatprep.mubr.f32.mxu0 0.0
      %2551 = vmatmul.mubr.f32.gmra.mrb[0].mxu0 %v1945
      %v2552 = vpop.f32.mrb[0].mxu0
      %v2553 = vadd.f32 %v1704, %v2552
      %v2554 = vpop.f32.mrb[0].mxu0
      %2555 = vmatprep.mubr.f32.mxu0 0.0
      %2556 = vmatmul.mubr.f32.gmra.mrb[0].mxu0 %v1948
      %v2557 = vpop.f32.mrb[0].mxu0
      %v2558 = vadd.f32 %v1704, %v2557
      %v2559 = vpop.f32.mrb[0].mxu0
      %2560 = vmatprep.mubr.f32.mxu0 0.0
      %2561 = vmatmul.mubr.f32.gmra.mrb[0].mxu0 %v1951
      %v2562 = vpop.f32.mrb[0].mxu0
      %v2563 = vadd.f32 %v1704, %v2562
      %v2564 = vpop.f32.mrb[0].mxu0
      %2565 = vmatprep.mubr.f32.mxu0 0.0
      %2566 = vmatmul.mubr.f32.gmra.mrb[0].mxu0 %v1954
      %v2567 = vpop.f32.mrb[0].mxu0
      %v2568 = vadd.f32 %v1704, %v2567
      %v2569 = vpop.f32.mrb[0].mxu0
      %2570 = vmatprep.mubr.f32.mxu0 0.0
      %2571 = vmatmul.mubr.f32.gmra.mrb[0].mxu0 %v1957
      %v2572 = vpop.f32.mrb[0].mxu0
      %v2573 = vadd.f32 %v1704, %v2572
      %v2574 = vpop.f32.mrb[0].mxu0
      %2575 = vmatprep.mubr.f32.mxu0 0.0
      %2576 = vmatmul.mubr.f32.gmra.mrb[0].mxu0 %v1960
      %v2577 = vpop.f32.mrb[0].mxu0
      %v2578 = vadd.f32 %v1704, %v2577
      %v2579 = vpop.f32.mrb[0].mxu0
      %2580 = vmatprep.mubr.f32.mxu0 0.0
      %2581 = vmatmul.mubr.f32.gmra.mrb[0].mxu0 %v1963
      %v2582 = vpop.f32.mrb[0].mxu0
      %v2583 = vadd.f32 %v1704, %v2582
      %v2584 = vpop.f32.mrb[0].mxu0
      %2585 = vmatprep.mubr.f32.mxu0 0.0
      %2586 = vmatmul.mubr.f32.gmra.mrb[0].mxu0 %v1966
      %v2587 = vpop.f32.mrb[0].mxu0
      %v2588 = vadd.f32 %v1704, %v2587
      %v2589 = vpop.f32.mrb[0].mxu0
      %2590 = vmatprep.mubr.f32.mxu0 0.0
      %2591 = vmatmul.mubr.f32.gmra.mrb[0].mxu0 %v1969
      %v2592 = vpop.f32.mrb[0].mxu0
      %v2593 = vadd.f32 %v1704, %v2592
      %v2594 = vpop.f32.mrb[0].mxu0
      %2595 = vmatprep.mubr.f32.mxu0 0.0
      %2596 = vmatmul.mubr.f32.gmra.mrb[0].mxu0 %v1972
      %v2597 = vpop.f32.mrb[0].mxu0
      %v2598 = vadd.f32 %v1704, %v2597
      %v2599 = vpop.f32.mrb[0].mxu0
      %2600 = vmatprep.mubr.f32.mxu0 0.0
      %2601 = vmatmul.mubr.f32.gmra.mrb[0].mxu0 %v1975
      %v2602 = vpop.f32.mrb[0].mxu0
      %v2603 = vadd.f32 %v1704, %v2602
      %v2604 = vpop.f32.mrb[0].mxu0
      %2605 = vmatprep.mubr.f32.mxu0 0.0
      %2606 = vmatmul.mubr.f32.gmra.mrb[0].mxu0 %v1978
      %v2607 = vpop.f32.mrb[0].mxu0
      %v2608 = vadd.f32 %v1704, %v2607
      %v2609 = vpop.f32.mrb[0].mxu0
      %2610 = vmatprep.mubr.f32.mxu0 0.0
      %2611 = vmatmul.mubr.f32.gmra.mrb[0].mxu0 %v1981
      %v2612 = vpop.f32.mrb[0].mxu0
      %v2613 = vadd.f32 %v1704, %v2612
      %v2614 = vpop.f32.mrb[0].mxu0
      %2615 = vmatprep.mubr.f32.mxu0 0.0
      %2616 = vmatmul.mubr.f32.gmra.mrb[0].mxu0 %v1984
      %v2617 = vpop.f32.mrb[0].mxu0
      %v2618 = vadd.f32 %v1704, %v2617
      %v2619 = vpop.f32.mrb[0].mxu0
      %2620 = vmatprep.mubr.f32.mxu0 0.0
      %2621 = vmatmul.mubr.f32.gmra.mrb[0].mxu0 %v1987
      %v2622 = vpop.f32.mrb[0].mxu0
      %v2623 = vadd.f32 %v1704, %v2622
      %v2624 = vpop.f32.mrb[0].mxu0
      %2625 = vmatprep.mubr.f32.mxu0 0.0
      %2626 = vmatmul.mubr.f32.gmra.mrb[0].mxu0 %v1990
      %v2627 = vpop.f32.mrb[0].mxu0
      %v2628 = vadd.f32 %v1704, %v2627
      %v2629 = vpop.f32.mrb[0].mxu0
      %2630 = vmatprep.mubr.f32.mxu0 0.0
      %2631 = vmatmul.mubr.f32.gmra.mrb[0].mxu0 %v1993
      %v2632 = vpop.f32.mrb[0].mxu0
      %v2633 = vadd.f32 %v1704, %v2632
      %v2634 = vpop.f32.mrb[0].mxu0
      %2635 = vmatprep.mubr.f32.mxu0 0.0
      %2636 = vmatmul.mubr.f32.gmra.mrb[0].mxu0 %v1996
      %v2637 = vpop.f32.mrb[0].mxu0
      %v2638 = vadd.f32 %v1704, %v2637
      %v2639 = vpop.f32.mrb[0].mxu0
      %2640 = vmatprep.mubr.f32.mxu0 0.0
      %2641 = vmatmul.mubr.f32.gmra.mrb[0].mxu0 %v1999
      %v2642 = vpop.f32.mrb[0].mxu0
      %v2643 = vadd.f32 %v1704, %v2642
      %v2644 = vpop.f32.mrb[0].mxu0
      %2645 = vmatprep.mubr.f32.mxu0 0.0
      %2646 = vmatmul.mubr.f32.gmra.mrb[0].mxu0 %v2002
      %v2647 = vpop.f32.mrb[0].mxu0
      %v2648 = vadd.f32 %v1704, %v2647
      %v2649 = vpop.f32.mrb[0].mxu0
      %2650 = vmatprep.mubr.f32.mxu0 0.0
      %2651 = vmatmul.mubr.f32.gmra.mrb[0].mxu0 %v2005
      %v2652 = vpop.f32.mrb[0].mxu0
      %v2653 = vadd.f32 %v1704, %v2652
      %v2654 = vpop.f32.mrb[0].mxu0
      %2655 = vmatprep.mubr.f32.mxu0 0.0
      %2656 = vmatmul.mubr.f32.gmra.mrb[0].mxu0 %v2008
      %v2657 = vpop.f32.mrb[0].mxu0
      %v2658 = vadd.f32 %v1704, %v2657
      %v2659 = vpop.f32.mrb[0].mxu0
      %2660 = vmatprep.mubr.f32.mxu0 0.0
      %2661 = vmatmul.mubr.f32.gmra.mrb[0].mxu0 %v2011
      %v2662 = vpop.f32.mrb[0].mxu0
      %v2663 = vadd.f32 %v1704, %v2662
      %v2664 = vpop.f32.mrb[0].mxu0
      %2665 = vmatprep.mubr.f32.mxu0 0.0
      %2666 = vmatmul.mubr.f32.gmra.mrb[0].mxu0 %v2014
      %v2667 = vpop.f32.mrb[0].mxu0
      %v2668 = vadd.f32 %v1704, %v2667
      %v2669 = vpop.f32.mrb[0].mxu0
      %2670 = vmatprep.mubr.f32.mxu0 0.0
      %2671 = vmatmul.mubr.f32.gmra.mrb[0].mxu0 %v2017
      %v2672 = vpop.f32.mrb[0].mxu0
      %v2673 = vadd.f32 %v1704, %v2672
      %v2674 = vpop.f32.mrb[0].mxu0
      %2675 = vmatprep.mubr.f32.mxu0 0.0
      %2676 = vmatmul.mubr.f32.gmra.mrb[0].mxu0 %v2020
      %v2677 = vpop.f32.mrb[0].mxu0
      %v2678 = vadd.f32 %v1704, %v2677
      %v2679 = vpop.f32.mrb[0].mxu0
      %2680 = vmatprep.mubr.f32.mxu0 0.0
      %2681 = vmatmul.mubr.f32.gmra.mrb[0].mxu0 %v2023
      %v2682 = vpop.f32.mrb[0].mxu0
      %v2683 = vadd.f32 %v1704, %v2682
      %v2684 = vpop.f32.mrb[0].mxu0
      %2685 = vmatprep.mubr.f32.mxu0 0.0
      %2686 = vmatmul.mubr.f32.gmra.mrb[0].mxu0 %v2026
      %v2687 = vpop.f32.mrb[0].mxu0
      %v2688 = vadd.f32 %v1704, %v2687
      %v2689 = vpop.f32.mrb[0].mxu0
      %2690 = vmatprep.mubr.f32.mxu0 0.0
      %2691 = vmatmul.mubr.f32.gmra.mrb[0].mxu0 %v2029
      %v2692 = vpop.f32.mrb[0].mxu0
      %v2693 = vadd.f32 %v1704, %v2692
      %v2694 = vpop.f32.mrb[0].mxu0
      %2695 = vmatprep.mubr.f32.mxu0 0.0
      %2696 = vmatmul.mubr.f32.gmra.mrb[0].mxu0 %v2032
      %v2697 = vpop.f32.mrb[0].mxu0
      %v2698 = vadd.f32 %v1704, %v2697
      %v2699 = vpop.f32.mrb[0].mxu0
      %2700 = vmatprep.mubr.f32.mxu0 0.0
      %2701 = vmatmul.mubr.f32.gmra.mrb[0].mxu0 %v2035
      %v2702 = vpop.f32.mrb[0].mxu0
      %v2703 = vadd.f32 %v1704, %v2702
      %v2704 = vpop.f32.mrb[0].mxu0
      %2705 = vmatprep.mubr.f32.mxu0 0.0
      %2706 = vmatmul.mubr.f32.gmra.mrb[0].mxu0 %v2038
      %v2707 = vpop.f32.mrb[0].mxu0
      %v2708 = vadd.f32 %v1704, %v2707
      %v2709 = vpop.f32.mrb[0].mxu0
      %2710 = vmatprep.mubr.f32.mxu0 0.0
      %2711 = vmatmul.mubr.f32.gmra.mrb[0].mxu0 %v2041
      %v2712 = vpop.f32.mrb[0].mxu0
      %v2713 = vadd.f32 %v1704, %v2712
      %v2714 = vpop.f32.mrb[0].mxu0
      %2715 = vmatprep.mubr.f32.mxu0 0.0
      %2716 = vmatmul.mubr.f32.gmra.mrb[0].mxu0 %v2044
      %v2717 = vpop.f32.mrb[0].mxu0
      %v2718 = vadd.f32 %v1704, %v2717
      %v2719 = vpop.f32.mrb[0].mxu0
      %2720 = vmatprep.mubr.f32.mxu0 0.0
      %2721 = vmatmul.mubr.f32.gmra.mrb[0].mxu0 %v2047
      %v2722 = vpop.f32.mrb[0].mxu0
      %v2723 = vadd.f32 %v1704, %v2722
      %v2724 = vpop.f32.mrb[0].mxu0
      %2725 = vmatprep.mubr.f32.mxu0 0.0
      %2726 = vmatmul.mubr.f32.gmra.mrb[0].mxu0 %v2050
      %v2727 = vpop.f32.mrb[0].mxu0
      %v2728 = vadd.f32 %v1704, %v2727
      %v2729 = vpop.f32.mrb[0].mxu0
      %2730 = vmatprep.mubr.f32.mxu0 0.0
      %2731 = vmatmul.mubr.f32.gmra.mrb[0].mxu0 %v2053
      %v2732 = vpop.f32.mrb[0].mxu0
      %v2733 = vadd.f32 %v1704, %v2732
      %v2734 = vpop.f32.mrb[0].mxu0
      %2735 = vmatprep.mubr.f32.mxu0 0.0
      %2736 = vmatmul.mubr.f32.gmra.mrb[0].mxu0 %v2056
      %v2737 = vpop.f32.mrb[0].mxu0
      %v2738 = vadd.f32 %v1704, %v2737
      %v2739 = vpop.f32.mrb[0].mxu0
      %2740 = vmatprep.mubr.f32.mxu0 0.0
      %2741 = vmatmul.mubr.f32.gmra.mrb[0].mxu0 %v2059
      %v2742 = vpop.f32.mrb[0].mxu0
      %v2743 = vadd.f32 %v1704, %v2742
      %v2744 = vpop.f32.mrb[0].mxu0
      %2745 = vmatprep.mubr.f32.mxu0 0.0
      %2746 = vmatmul.mubr.f32.gmra.mrb[0].mxu0 %v2062
      %v2747 = vpop.f32.mrb[0].mxu0
      %v2748 = vadd.f32 %v1704, %v2747
      %v2749 = vpop.f32.mrb[0].mxu0
      %2750 = vmatprep.mubr.f32.mxu0 0.0
      %2751 = vmatmul.mubr.f32.gmra.mrb[0].mxu0 %v2065
      %v2752 = vpop.f32.mrb[0].mxu0
      %v2753 = vadd.f32 %v1704, %v2752
      %v2754 = vpop.f32.mrb[0].mxu0
      %2755 = vmatprep.mubr.f32.mxu0 0.0
      %2756 = vmatmul.mubr.f32.gmra.mrb[0].mxu0 %v2068
      %v2757 = vpop.f32.mrb[0].mxu0
      %v2758 = vadd.f32 %v1704, %v2757
      %v2759 = vpop.f32.mrb[0].mxu0
      %2760 = vmatprep.mubr.f32.mxu0 0.0
      %2761 = vmatmul.mubr.f32.gmra.mrb[0].mxu0 %v2071
      %v2762 = vpop.f32.mrb[0].mxu0
      %v2763 = vadd.f32 %v1704, %v2762
      %v2764 = vpop.f32.mrb[0].mxu0
      %2765 = vmatprep.mubr.f32.mxu0 0.0
      %2766 = vmatmul.mubr.f32.gmra.mrb[0].mxu0 %v2074
      %v2767 = vpop.f32.mrb[0].mxu0
      %v2768 = vadd.f32 %v1704, %v2767
      %v2769 = vpop.f32.mrb[0].mxu0
      %2770 = vmatprep.mubr.f32.mxu0 0.0
      %2771 = vmatmul.mubr.f32.gmra.mrb[0].mxu0 %v2077
      %v2772 = vpop.f32.mrb[0].mxu0
      %v2773 = vadd.f32 %v1704, %v2772
      %v2774 = vpop.f32.mrb[0].mxu0
      %2775 = vmatprep.mubr.f32.mxu0 0.0
      %2776 = vmatmul.mubr.f32.gmra.mrb[0].mxu0 %v2080
      %v2777 = vpop.f32.mrb[0].mxu0
      %v2778 = vadd.f32 %v1704, %v2777
      %v2779 = vpop.f32.mrb[0].mxu0
      %2780 = vmatprep.mubr.f32.mxu0 0.0
      %2781 = vmatmul.mubr.f32.gmra.mrb[0].mxu0 %v2083
      %v2782 = vpop.f32.mrb[0].mxu0
      %v2783 = vadd.f32 %v1704, %v2782
      %v2784 = vpop.f32.mrb[0].mxu0
      %2785 = vmatprep.mubr.f32.mxu0 0.0
      %2786 = vmatmul.mubr.f32.gmra.mrb[0].mxu0 %v2086
      %v2787 = vpop.f32.mrb[0].mxu0
      %v2788 = vadd.f32 %v1704, %v2787
      %v2789 = vpop.f32.mrb[0].mxu0
      %2790 = vmatprep.mubr.f32.mxu0 0.0
      %2791 = vmatmul.mubr.f32.gmra.mrb[0].mxu0 %v2089
      %v2792 = vpop.f32.mrb[0].mxu0
      %v2793 = vadd.f32 %v1704, %v2792
      %v2794 = vpop.f32.mrb[0].mxu0
      %2795 = vdwg.mxu0
      %v2796 = vmax.f32 %v2158, 0.0
      %v2797 = vmax.f32 %v2163, 0.0
      %v2798 = vmax.f32 %v2168, 0.0
      %v2799 = vmax.f32 %v2173, 0.0
      %v2800 = vmax.f32 %v2178, 0.0
      %v2801 = vmax.f32 %v2183, 0.0
      %v2802 = vmax.f32 %v2188, 0.0
      %v2803 = vmax.f32 %v2193, 0.0
      %v2804 = vmax.f32 %v2198, 0.0
      %v2805 = vmax.f32 %v2203, 0.0
      %v2806 = vmax.f32 %v2208, 0.0
      %v2807 = vmax.f32 %v2213, 0.0
      %v2808 = vmax.f32 %v2218, 0.0
      %v2809 = vmax.f32 %v2223, 0.0
      %v2810 = vmax.f32 %v2228, 0.0
      %v2811 = vmax.f32 %v2233, 0.0
      %v2812 = vmax.f32 %v2238, 0.0
      %v2813 = vmax.f32 %v2243, 0.0
      %v2814 = vmax.f32 %v2248, 0.0
      %v2815 = vmax.f32 %v2253, 0.0
      %v2816 = vmax.f32 %v2258, 0.0
      %v2817 = vmax.f32 %v2263, 0.0
      %v2818 = vmax.f32 %v2268, 0.0
      %v2819 = vmax.f32 %v2273, 0.0
      %v2820 = vmax.f32 %v2278, 0.0
      %v2821 = vmax.f32 %v2283, 0.0
      %v2822 = vmax.f32 %v2288, 0.0
      %v2823 = vmax.f32 %v2293, 0.0
      %v2824 = vmax.f32 %v2298, 0.0
      %v2825 = vmax.f32 %v2303, 0.0
      %v2826 = vmax.f32 %v2308, 0.0
      %v2827 = vmax.f32 %v2313, 0.0
      %v2828 = vmax.f32 %v2318, 0.0
      %v2829 = vmax.f32 %v2323, 0.0
      %v2830 = vmax.f32 %v2328, 0.0
      %v2831 = vmax.f32 %v2333, 0.0
      %v2832 = vmax.f32 %v2338, 0.0
      %v2833 = vmax.f32 %v2343, 0.0
      %v2834 = vmax.f32 %v2348, 0.0
      %v2835 = vmax.f32 %v2353, 0.0
      %v2836 = vmax.f32 %v2358, 0.0
      %v2837 = vmax.f32 %v2363, 0.0
      %v2838 = vmax.f32 %v2368, 0.0
      %v2839 = vmax.f32 %v2373, 0.0
      %v2840 = vmax.f32 %v2378, 0.0
      %v2841 = vmax.f32 %v2383, 0.0
      %v2842 = vmax.f32 %v2388, 0.0
      %v2843 = vmax.f32 %v2393, 0.0
      %v2844 = vmax.f32 %v2398, 0.0
      %v2845 = vmax.f32 %v2403, 0.0
      %v2846 = vmax.f32 %v2408, 0.0
      %v2847 = vmax.f32 %v2413, 0.0
      %v2848 = vmax.f32 %v2418, 0.0
      %v2849 = vmax.f32 %v2423, 0.0
      %v2850 = vmax.f32 %v2428, 0.0
      %v2851 = vmax.f32 %v2433, 0.0
      %v2852 = vmax.f32 %v2438, 0.0
      %v2853 = vmax.f32 %v2443, 0.0
      %v2854 = vmax.f32 %v2448, 0.0
      %v2855 = vmax.f32 %v2453, 0.0
      %v2856 = vmax.f32 %v2458, 0.0
      %v2857 = vmax.f32 %v2463, 0.0
      %v2858 = vmax.f32 %v2468, 0.0
      %v2859 = vmax.f32 %v2473, 0.0
      %v2860 = vmax.f32 %v2478, 0.0
      %v2861 = vmax.f32 %v2483, 0.0
      %v2862 = vmax.f32 %v2488, 0.0
      %v2863 = vmax.f32 %v2493, 0.0
      %v2864 = vmax.f32 %v2498, 0.0
      %v2865 = vmax.f32 %v2503, 0.0
      %v2866 = vmax.f32 %v2508, 0.0
      %v2867 = vmax.f32 %v2513, 0.0
      %v2868 = vmax.f32 %v2518, 0.0
      %v2869 = vmax.f32 %v2523, 0.0
      %v2870 = vmax.f32 %v2528, 0.0
      %v2871 = vmax.f32 %v2533, 0.0
      %v2872 = vmax.f32 %v2538, 0.0
      %v2873 = vmax.f32 %v2543, 0.0
      %v2874 = vmax.f32 %v2548, 0.0
      %v2875 = vmax.f32 %v2553, 0.0
      %v2876 = vmax.f32 %v2558, 0.0
      %v2877 = vmax.f32 %v2563, 0.0
      %v2878 = vmax.f32 %v2568, 0.0
      %v2879 = vmax.f32 %v2573, 0.0
      %v2880 = vmax.f32 %v2578, 0.0
      %v2881 = vmax.f32 %v2583, 0.0
      %v2882 = vmax.f32 %v2588, 0.0
      %v2883 = vmax.f32 %v2593, 0.0
      %v2884 = vmax.f32 %v2598, 0.0
      %v2885 = vmax.f32 %v2603, 0.0
      %v2886 = vmax.f32 %v2608, 0.0
      %v2887 = vmax.f32 %v2613, 0.0
      %v2888 = vmax.f32 %v2618, 0.0
      %v2889 = vmax.f32 %v2623, 0.0
      %v2890 = vmax.f32 %v2628, 0.0
      %v2891 = vmax.f32 %v2633, 0.0
      %v2892 = vmax.f32 %v2638, 0.0
      %v2893 = vmax.f32 %v2643, 0.0
      %v2894 = vmax.f32 %v2648, 0.0
      %v2895 = vmax.f32 %v2653, 0.0
      %v2896 = vmax.f32 %v2658, 0.0
      %v2897 = vmax.f32 %v2663, 0.0
      %v2898 = vmax.f32 %v2668, 0.0
      %v2899 = vmax.f32 %v2673, 0.0
      %v2900 = vmax.f32 %v2678, 0.0
      %v2901 = vmax.f32 %v2683, 0.0
      %v2902 = vmax.f32 %v2688, 0.0
      %v2903 = vmax.f32 %v2693, 0.0
      %v2904 = vmax.f32 %v2698, 0.0
      %v2905 = vmax.f32 %v2703, 0.0
      %v2906 = vmax.f32 %v2708, 0.0
      %v2907 = vmax.f32 %v2713, 0.0
      %v2908 = vmax.f32 %v2718, 0.0
      %v2909 = vmax.f32 %v2723, 0.0
      %v2910 = vmax.f32 %v2728, 0.0
      %v2911 = vmax.f32 %v2733, 0.0
      %v2912 = vmax.f32 %v2738, 0.0
      %v2913 = vmax.f32 %v2743, 0.0
      %v2914 = vmax.f32 %v2748, 0.0
      %v2915 = vmax.f32 %v2753, 0.0
      %v2916 = vmax.f32 %v2758, 0.0
      %v2917 = vmax.f32 %v2763, 0.0
      %v2918 = vmax.f32 %v2768, 0.0
      %v2919 = vmax.f32 %v2773, 0.0
      %v2920 = vmax.f32 %v2778, 0.0
      %v2921 = vmax.f32 %v2783, 0.0
      %v2922 = vmax.f32 %v2788, 0.0
      %v2923 = vmax.f32 %v2793, 0.0
      %v2924 = vld [vmem:[%s5] sm:$0xff]
      %v2925 = vld [vmem:[%s5 + $0x8] sm:$0xff]
      %v2926 = vld [vmem:[%s5 + $0x10] sm:$0xff]
      %v2927 = vld [vmem:[%s5 + $0x18] sm:$0xff]
      %v2928 = vld [vmem:[%s5 + $0x20] sm:$0xff]
      %v2929 = vld [vmem:[%s5 + $0x28] sm:$0xff]
      %v2930 = vld [vmem:[%s5 + $0x30] sm:$0xff]
      %v2931 = vld [vmem:[%s5 + $0x38] sm:$0xff]
      %v2932 = vld [vmem:[%s6] sm:$0x1]
      %v2934 = vlaneseq
      %v2935 = vshrl.u32 %v2934, 7
      %v2936 = vsub.s32 0, %v2935
      %v2937 = vrot.slane %v2932, %v2936
      %v2940 = vsel %vm1706, %v2796, 0
      %v2943 = vsel %vm1706, %v2797, 0
      %v2946 = vsel %vm1706, %v2798, 0
      %v2949 = vsel %vm1706, %v2799, 0
      %v2952 = vsel %vm1706, %v2800, 0
      %v2955 = vsel %vm1706, %v2801, 0
      %v2958 = vsel %vm1706, %v2802, 0
      %v2961 = vsel %vm1706, %v2803, 0
      %v2964 = vsel %vm1706, %v2804, 0
      %v2967 = vsel %vm1706, %v2805, 0
      %v2970 = vsel %vm1706, %v2806, 0
      %v2973 = vsel %vm1706, %v2807, 0
      %v2976 = vsel %vm1706, %v2808, 0
      %v2979 = vsel %vm1706, %v2809, 0
      %v2982 = vsel %vm1706, %v2810, 0
      %v2985 = vsel %vm1706, %v2811, 0
      %v2988 = vsel %vm1706, %v2812, 0
      %v2991 = vsel %vm1706, %v2813, 0
      %v2994 = vsel %vm1706, %v2814, 0
      %v2997 = vsel %vm1706, %v2815, 0
      %v3000 = vsel %vm1706, %v2816, 0
      %v3003 = vsel %vm1706, %v2817, 0
      %v3006 = vsel %vm1706, %v2818, 0
      %v3009 = vsel %vm1706, %v2819, 0
      %v3012 = vsel %vm1706, %v2820, 0
      %v3015 = vsel %vm1706, %v2821, 0
      %v3018 = vsel %vm1706, %v2822, 0
      %v3021 = vsel %vm1706, %v2823, 0
      %v3024 = vsel %vm1706, %v2824, 0
      %v3027 = vsel %vm1706, %v2825, 0
      %v3030 = vsel %vm1706, %v2826, 0
      %v3033 = vsel %vm1706, %v2827, 0
      %v3036 = vsel %vm1706, %v2828, 0
      %v3039 = vsel %vm1706, %v2829, 0
      %v3042 = vsel %vm1706, %v2830, 0
      %v3045 = vsel %vm1706, %v2831, 0
      %v3048 = vsel %vm1706, %v2832, 0
      %v3051 = vsel %vm1706, %v2833, 0
      %v3054 = vsel %vm1706, %v2834, 0
      %v3057 = vsel %vm1706, %v2835, 0
      %v3060 = vsel %vm1706, %v2836, 0
      %v3063 = vsel %vm1706, %v2837, 0
      %v3066 = vsel %vm1706, %v2838, 0
      %v3069 = vsel %vm1706, %v2839, 0
      %v3072 = vsel %vm1706, %v2840, 0
      %v3075 = vsel %vm1706, %v2841, 0
      %v3078 = vsel %vm1706, %v2842, 0
      %v3081 = vsel %vm1706, %v2843, 0
      %v3084 = vsel %vm1706, %v2844, 0
      %v3087 = vsel %vm1706, %v2845, 0
      %v3090 = vsel %vm1706, %v2846, 0
      %v3093 = vsel %vm1706, %v2847, 0
      %v3096 = vsel %vm1706, %v2848, 0
      %v3099 = vsel %vm1706, %v2849, 0
      %v3102 = vsel %vm1706, %v2850, 0
      %v3105 = vsel %vm1706, %v2851, 0
      %v3108 = vsel %vm1706, %v2852, 0
      %v3111 = vsel %vm1706, %v2853, 0
      %v3114 = vsel %vm1706, %v2854, 0
      %v3117 = vsel %vm1706, %v2855, 0
      %v3120 = vsel %vm1706, %v2856, 0
      %v3123 = vsel %vm1706, %v2857, 0
      %v3126 = vsel %vm1706, %v2858, 0
      %v3129 = vsel %vm1706, %v2859, 0
      %v3132 = vsel %vm1706, %v2860, 0
      %v3135 = vsel %vm1706, %v2861, 0
      %v3138 = vsel %vm1706, %v2862, 0
      %v3141 = vsel %vm1706, %v2863, 0
      %v3144 = vsel %vm1706, %v2864, 0
      %v3147 = vsel %vm1706, %v2865, 0
      %v3150 = vsel %vm1706, %v2866, 0
      %v3153 = vsel %vm1706, %v2867, 0
      %v3156 = vsel %vm1706, %v2868, 0
      %v3159 = vsel %vm1706, %v2869, 0
      %v3162 = vsel %vm1706, %v2870, 0
      %v3165 = vsel %vm1706, %v2871, 0
      %v3168 = vsel %vm1706, %v2872, 0
      %v3171 = vsel %vm1706, %v2873, 0
      %v3174 = vsel %vm1706, %v2874, 0
      %v3177 = vsel %vm1706, %v2875, 0
      %v3180 = vsel %vm1706, %v2876, 0
      %v3183 = vsel %vm1706, %v2877, 0
      %v3186 = vsel %vm1706, %v2878, 0
      %v3189 = vsel %vm1706, %v2879, 0
      %v3192 = vsel %vm1706, %v2880, 0
      %v3195 = vsel %vm1706, %v2881, 0
      %v3198 = vsel %vm1706, %v2882, 0
      %v3201 = vsel %vm1706, %v2883, 0
      %v3204 = vsel %vm1706, %v2884, 0
      %v3207 = vsel %vm1706, %v2885, 0
      %v3210 = vsel %vm1706, %v2886, 0
      %v3213 = vsel %vm1706, %v2887, 0
      %v3216 = vsel %vm1706, %v2888, 0
      %v3219 = vsel %vm1706, %v2889, 0
      %v3222 = vsel %vm1706, %v2890, 0
      %v3225 = vsel %vm1706, %v2891, 0
      %v3228 = vsel %vm1706, %v2892, 0
      %v3231 = vsel %vm1706, %v2893, 0
      %v3234 = vsel %vm1706, %v2894, 0
      %v3237 = vsel %vm1706, %v2895, 0
      %v3240 = vsel %vm1706, %v2896, 0
      %v3243 = vsel %vm1706, %v2897, 0
      %v3246 = vsel %vm1706, %v2898, 0
      %v3249 = vsel %vm1706, %v2899, 0
      %v3252 = vsel %vm1706, %v2900, 0
      %v3255 = vsel %vm1706, %v2901, 0
      %v3258 = vsel %vm1706, %v2902, 0
      %v3261 = vsel %vm1706, %v2903, 0
      %v3264 = vsel %vm1706, %v2904, 0
      %v3267 = vsel %vm1706, %v2905, 0
      %v3270 = vsel %vm1706, %v2906, 0
      %v3273 = vsel %vm1706, %v2907, 0
      %v3276 = vsel %vm1706, %v2908, 0
      %v3279 = vsel %vm1706, %v2909, 0
      %v3282 = vsel %vm1706, %v2910, 0
      %v3285 = vsel %vm1706, %v2911, 0
      %v3288 = vsel %vm1706, %v2912, 0
      %v3291 = vsel %vm1706, %v2913, 0
      %v3294 = vsel %vm1706, %v2914, 0
      %v3297 = vsel %vm1706, %v2915, 0
      %v3300 = vsel %vm1706, %v2916, 0
      %v3303 = vsel %vm1706, %v2917, 0
      %v3306 = vsel %vm1706, %v2918, 0
      %v3309 = vsel %vm1706, %v2919, 0
      %v3312 = vsel %vm1706, %v2920, 0
      %v3315 = vsel %vm1706, %v2921, 0
      %v3318 = vsel %vm1706, %v2922, 0
      %v3321 = vsel %vm1706, %v2923, 0
      %3323 = vmatprep.subr.mxu0 0.0
      %3324 = vmatpush1.msra.mxu0 %v2924
      %3325 = vmatprep.subr.mxu0 0.0
      %3326 = vmatpush1.msra.mxu0 %v2925
      %3327 = vmatprep.subr.mxu0 0.0
      %3328 = vmatpush1.msra.mxu0 %v2926
      %3329 = vmatprep.subr.mxu0 0.0
      %3330 = vmatpush1.msra.mxu0 %v2927
      %3331 = vmatprep.subr.mxu0 0.0
      %3332 = vmatpush1.msra.mxu0 %v2928
      %3333 = vmatprep.subr.mxu0 0.0
      %3334 = vmatpush1.msra.mxu0 %v2929
      %3335 = vmatprep.subr.mxu0 0.0
      %3336 = vmatpush1.msra.mxu0 %v2930
      %3337 = vmatprep.subr.mxu0 0.0
      %3338 = vmatpush1.msra.mxu0 %v2931
      %3339 = vmatprep.subr.mxu0 0.0
      %3340 = vmatpush1.msra.mxu0 0.0
      %3341 = vmatprep.subr.mxu0 0.0
      %3342 = vmatpush1.msra.mxu0 0.0
      %3343 = vmatprep.subr.mxu0 0.0
      %3344 = vmatpush1.msra.mxu0 0.0
      %3345 = vmatprep.subr.mxu0 0.0
      %3346 = vmatpush1.msra.mxu0 0.0
      %3347 = vmatprep.subr.mxu0 0.0
      %3348 = vmatpush1.msra.mxu0 0.0
      %3349 = vmatprep.subr.mxu0 0.0
      %3350 = vmatpush1.msra.mxu0 0.0
      %3351 = vmatprep.subr.mxu0 0.0
      %3352 = vmatpush1.msra.mxu0 0.0
      %3353 = vmatprep.subr.mxu0 0.0
      %3354 = vmatpush1.msra.mxu0 0.0
      %3355 = vmatprep.subr.mxu0 0.0
      %3356 = vmatpush1.msra.mxu0 0.0
      %3357 = vmatprep.subr.mxu0 0.0
      %3358 = vmatpush1.msra.mxu0 0.0
      %3359 = vmatprep.subr.mxu0 0.0
      %3360 = vmatpush1.msra.mxu0 0.0
      %3361 = vmatprep.subr.mxu0 0.0
      %3362 = vmatpush1.msra.mxu0 0.0
      %3363 = vmatprep.subr.mxu0 0.0
      %3364 = vmatpush1.msra.mxu0 0.0
      %3365 = vmatprep.subr.mxu0 0.0
      %3366 = vmatpush1.msra.mxu0 0.0
      %3367 = vmatprep.subr.mxu0 0.0
      %3368 = vmatpush1.msra.mxu0 0.0
      %3369 = vmatprep.subr.mxu0 0.0
      %3370 = vmatpush1.msra.mxu0 0.0
      %3371 = vmatprep.subr.mxu0 0.0
      %3372 = vmatpush1.msra.mxu0 0.0
      %3373 = vmatprep.subr.mxu0 0.0
      %3374 = vmatpush1.msra.mxu0 0.0
      %3375 = vmatprep.subr.mxu0 0.0
      %3376 = vmatpush1.msra.mxu0 0.0
      %3377 = vmatprep.subr.mxu0 0.0
      %3378 = vmatpush1.msra.mxu0 0.0
      %3379 = vmatprep.subr.mxu0 0.0
      %3380 = vmatpush1.msra.mxu0 0.0
      %3381 = vmatprep.subr.mxu0 0.0
      %3382 = vmatpush1.msra.mxu0 0.0
      %3383 = vmatprep.subr.mxu0 0.0
      %3384 = vmatpush1.msra.mxu0 0.0
      %3385 = vmatprep.subr.mxu0 0.0
      %3386 = vmatpush1.msra.mxu0 0.0
      %3387 = vmatprep.mubr.f32.mxu0 0.0
      %3388 = vmatmul.mubr.f32.gmra.mrb[0].mxu0 %v2940
      %v3389 = vpop.f32.mrb[0].mxu0
      %v3390 = vadd.f32 %v2937, %v3389
      %v3391 = vpop.f32.mrb[0].mxu0
      %3392 = vmatprep.mubr.f32.mxu0 0.0
      %3393 = vmatmul.mubr.f32.gmra.mrb[0].mxu0 %v2943
      %v3394 = vpop.f32.mrb[0].mxu0
      %v3395 = vadd.f32 %v2937, %v3394
      %v3396 = vpop.f32.mrb[0].mxu0
      %3397 = vmatprep.mubr.f32.mxu0 0.0
      %3398 = vmatmul.mubr.f32.gmra.mrb[0].mxu0 %v2946
      %v3399 = vpop.f32.mrb[0].mxu0
      %v3400 = vadd.f32 %v2937, %v3399
      %v3401 = vpop.f32.mrb[0].mxu0
      %3402 = vmatprep.mubr.f32.mxu0 0.0
      %3403 = vmatmul.mubr.f32.gmra.mrb[0].mxu0 %v2949
      %v3404 = vpop.f32.mrb[0].mxu0
      %v3405 = vadd.f32 %v2937, %v3404
      %v3406 = vpop.f32.mrb[0].mxu0
      %3407 = vmatprep.mubr.f32.mxu0 0.0
      %3408 = vmatmul.mubr.f32.gmra.mrb[0].mxu0 %v2952
      %v3409 = vpop.f32.mrb[0].mxu0
      %v3410 = vadd.f32 %v2937, %v3409
      %v3411 = vpop.f32.mrb[0].mxu0
      %3412 = vmatprep.mubr.f32.mxu0 0.0
      %3413 = vmatmul.mubr.f32.gmra.mrb[0].mxu0 %v2955
      %v3414 = vpop.f32.mrb[0].mxu0
      %v3415 = vadd.f32 %v2937, %v3414
      %v3416 = vpop.f32.mrb[0].mxu0
      %3417 = vmatprep.mubr.f32.mxu0 0.0
      %3418 = vmatmul.mubr.f32.gmra.mrb[0].mxu0 %v2958
      %v3419 = vpop.f32.mrb[0].mxu0
      %v3420 = vadd.f32 %v2937, %v3419
      %v3421 = vpop.f32.mrb[0].mxu0
      %3422 = vmatprep.mubr.f32.mxu0 0.0
      %3423 = vmatmul.mubr.f32.gmra.mrb[0].mxu0 %v2961
      %v3424 = vpop.f32.mrb[0].mxu0
      %v3425 = vadd.f32 %v2937, %v3424
      %v3426 = vpop.f32.mrb[0].mxu0
      %3427 = vmatprep.mubr.f32.mxu0 0.0
      %3428 = vmatmul.mubr.f32.gmra.mrb[0].mxu0 %v2964
      %v3429 = vpop.f32.mrb[0].mxu0
      %v3430 = vadd.f32 %v2937, %v3429
      %v3431 = vpop.f32.mrb[0].mxu0
      %3432 = vmatprep.mubr.f32.mxu0 0.0
      %3433 = vmatmul.mubr.f32.gmra.mrb[0].mxu0 %v2967
      %v3434 = vpop.f32.mrb[0].mxu0
      %v3435 = vadd.f32 %v2937, %v3434
      %v3436 = vpop.f32.mrb[0].mxu0
      %3437 = vmatprep.mubr.f32.mxu0 0.0
      %3438 = vmatmul.mubr.f32.gmra.mrb[0].mxu0 %v2970
      %v3439 = vpop.f32.mrb[0].mxu0
      %v3440 = vadd.f32 %v2937, %v3439
      %v3441 = vpop.f32.mrb[0].mxu0
      %3442 = vmatprep.mubr.f32.mxu0 0.0
      %3443 = vmatmul.mubr.f32.gmra.mrb[0].mxu0 %v2973
      %v3444 = vpop.f32.mrb[0].mxu0
      %v3445 = vadd.f32 %v2937, %v3444
      %v3446 = vpop.f32.mrb[0].mxu0
      %3447 = vmatprep.mubr.f32.mxu0 0.0
      %3448 = vmatmul.mubr.f32.gmra.mrb[0].mxu0 %v2976
      %v3449 = vpop.f32.mrb[0].mxu0
      %v3450 = vadd.f32 %v2937, %v3449
      %v3451 = vpop.f32.mrb[0].mxu0
      %3452 = vmatprep.mubr.f32.mxu0 0.0
      %3453 = vmatmul.mubr.f32.gmra.mrb[0].mxu0 %v2979
      %v3454 = vpop.f32.mrb[0].mxu0
      %v3455 = vadd.f32 %v2937, %v3454
      %v3456 = vpop.f32.mrb[0].mxu0
      %3457 = vmatprep.mubr.f32.mxu0 0.0
      %3458 = vmatmul.mubr.f32.gmra.mrb[0].mxu0 %v2982
      %v3459 = vpop.f32.mrb[0].mxu0
      %v3460 = vadd.f32 %v2937, %v3459
      %v3461 = vpop.f32.mrb[0].mxu0
      %3462 = vmatprep.mubr.f32.mxu0 0.0
      %3463 = vmatmul.mubr.f32.gmra.mrb[0].mxu0 %v2985
      %v3464 = vpop.f32.mrb[0].mxu0
      %v3465 = vadd.f32 %v2937, %v3464
      %v3466 = vpop.f32.mrb[0].mxu0
      %3467 = vmatprep.mubr.f32.mxu0 0.0
      %3468 = vmatmul.mubr.f32.gmra.mrb[0].mxu0 %v2988
      %v3469 = vpop.f32.mrb[0].mxu0
      %v3470 = vadd.f32 %v2937, %v3469
      %v3471 = vpop.f32.mrb[0].mxu0
      %3472 = vmatprep.mubr.f32.mxu0 0.0
      %3473 = vmatmul.mubr.f32.gmra.mrb[0].mxu0 %v2991
      %v3474 = vpop.f32.mrb[0].mxu0
      %v3475 = vadd.f32 %v2937, %v3474
      %v3476 = vpop.f32.mrb[0].mxu0
      %3477 = vmatprep.mubr.f32.mxu0 0.0
      %3478 = vmatmul.mubr.f32.gmra.mrb[0].mxu0 %v2994
      %v3479 = vpop.f32.mrb[0].mxu0
      %v3480 = vadd.f32 %v2937, %v3479
      %v3481 = vpop.f32.mrb[0].mxu0
      %3482 = vmatprep.mubr.f32.mxu0 0.0
      %3483 = vmatmul.mubr.f32.gmra.mrb[0].mxu0 %v2997
      %v3484 = vpop.f32.mrb[0].mxu0
      %v3485 = vadd.f32 %v2937, %v3484
      %v3486 = vpop.f32.mrb[0].mxu0
      %3487 = vmatprep.mubr.f32.mxu0 0.0
      %3488 = vmatmul.mubr.f32.gmra.mrb[0].mxu0 %v3000
      %v3489 = vpop.f32.mrb[0].mxu0
      %v3490 = vadd.f32 %v2937, %v3489
      %v3491 = vpop.f32.mrb[0].mxu0
      %3492 = vmatprep.mubr.f32.mxu0 0.0
      %3493 = vmatmul.mubr.f32.gmra.mrb[0].mxu0 %v3003
      %v3494 = vpop.f32.mrb[0].mxu0
      %v3495 = vadd.f32 %v2937, %v3494
      %v3496 = vpop.f32.mrb[0].mxu0
      %3497 = vmatprep.mubr.f32.mxu0 0.0
      %3498 = vmatmul.mubr.f32.gmra.mrb[0].mxu0 %v3006
      %v3499 = vpop.f32.mrb[0].mxu0
      %v3500 = vadd.f32 %v2937, %v3499
      %v3501 = vpop.f32.mrb[0].mxu0
      %3502 = vmatprep.mubr.f32.mxu0 0.0
      %3503 = vmatmul.mubr.f32.gmra.mrb[0].mxu0 %v3009
      %v3504 = vpop.f32.mrb[0].mxu0
      %v3505 = vadd.f32 %v2937, %v3504
      %v3506 = vpop.f32.mrb[0].mxu0
      %3507 = vmatprep.mubr.f32.mxu0 0.0
      %3508 = vmatmul.mubr.f32.gmra.mrb[0].mxu0 %v3012
      %v3509 = vpop.f32.mrb[0].mxu0
      %v3510 = vadd.f32 %v2937, %v3509
      %v3511 = vpop.f32.mrb[0].mxu0
      %3512 = vmatprep.mubr.f32.mxu0 0.0
      %3513 = vmatmul.mubr.f32.gmra.mrb[0].mxu0 %v3015
      %v3514 = vpop.f32.mrb[0].mxu0
      %v3515 = vadd.f32 %v2937, %v3514
      %v3516 = vpop.f32.mrb[0].mxu0
      %3517 = vmatprep.mubr.f32.mxu0 0.0
      %3518 = vmatmul.mubr.f32.gmra.mrb[0].mxu0 %v3018
      %v3519 = vpop.f32.mrb[0].mxu0
      %v3520 = vadd.f32 %v2937, %v3519
      %v3521 = vpop.f32.mrb[0].mxu0
      %3522 = vmatprep.mubr.f32.mxu0 0.0
      %3523 = vmatmul.mubr.f32.gmra.mrb[0].mxu0 %v3021
      %v3524 = vpop.f32.mrb[0].mxu0
      %v3525 = vadd.f32 %v2937, %v3524
      %v3526 = vpop.f32.mrb[0].mxu0
      %3527 = vmatprep.mubr.f32.mxu0 0.0
      %3528 = vmatmul.mubr.f32.gmra.mrb[0].mxu0 %v3024
      %v3529 = vpop.f32.mrb[0].mxu0
      %v3530 = vadd.f32 %v2937, %v3529
      %v3531 = vpop.f32.mrb[0].mxu0
      %3532 = vmatprep.mubr.f32.mxu0 0.0
      %3533 = vmatmul.mubr.f32.gmra.mrb[0].mxu0 %v3027
      %v3534 = vpop.f32.mrb[0].mxu0
      %v3535 = vadd.f32 %v2937, %v3534
      %v3536 = vpop.f32.mrb[0].mxu0
      %3537 = vmatprep.mubr.f32.mxu0 0.0
      %3538 = vmatmul.mubr.f32.gmra.mrb[0].mxu0 %v3030
      %v3539 = vpop.f32.mrb[0].mxu0
      %v3540 = vadd.f32 %v2937, %v3539
      %v3541 = vpop.f32.mrb[0].mxu0
      %3542 = vmatprep.mubr.f32.mxu0 0.0
      %3543 = vmatmul.mubr.f32.gmra.mrb[0].mxu0 %v3033
      %v3544 = vpop.f32.mrb[0].mxu0
      %v3545 = vadd.f32 %v2937, %v3544
      %v3546 = vpop.f32.mrb[0].mxu0
      %3547 = vmatprep.mubr.f32.mxu0 0.0
      %3548 = vmatmul.mubr.f32.gmra.mrb[0].mxu0 %v3036
      %v3549 = vpop.f32.mrb[0].mxu0
      %v3550 = vadd.f32 %v2937, %v3549
      %v3551 = vpop.f32.mrb[0].mxu0
      %3552 = vmatprep.mubr.f32.mxu0 0.0
      %3553 = vmatmul.mubr.f32.gmra.mrb[0].mxu0 %v3039
      %v3554 = vpop.f32.mrb[0].mxu0
      %v3555 = vadd.f32 %v2937, %v3554
      %v3556 = vpop.f32.mrb[0].mxu0
      %3557 = vmatprep.mubr.f32.mxu0 0.0
      %3558 = vmatmul.mubr.f32.gmra.mrb[0].mxu0 %v3042
      %v3559 = vpop.f32.mrb[0].mxu0
      %v3560 = vadd.f32 %v2937, %v3559
      %v3561 = vpop.f32.mrb[0].mxu0
      %3562 = vmatprep.mubr.f32.mxu0 0.0
      %3563 = vmatmul.mubr.f32.gmra.mrb[0].mxu0 %v3045
      %v3564 = vpop.f32.mrb[0].mxu0
      %v3565 = vadd.f32 %v2937, %v3564
      %v3566 = vpop.f32.mrb[0].mxu0
      %3567 = vmatprep.mubr.f32.mxu0 0.0
      %3568 = vmatmul.mubr.f32.gmra.mrb[0].mxu0 %v3048
      %v3569 = vpop.f32.mrb[0].mxu0
      %v3570 = vadd.f32 %v2937, %v3569
      %v3571 = vpop.f32.mrb[0].mxu0
      %3572 = vmatprep.mubr.f32.mxu0 0.0
      %3573 = vmatmul.mubr.f32.gmra.mrb[0].mxu0 %v3051
      %v3574 = vpop.f32.mrb[0].mxu0
      %v3575 = vadd.f32 %v2937, %v3574
      %v3576 = vpop.f32.mrb[0].mxu0
      %3577 = vmatprep.mubr.f32.mxu0 0.0
      %3578 = vmatmul.mubr.f32.gmra.mrb[0].mxu0 %v3054
      %v3579 = vpop.f32.mrb[0].mxu0
      %v3580 = vadd.f32 %v2937, %v3579
      %v3581 = vpop.f32.mrb[0].mxu0
      %3582 = vmatprep.mubr.f32.mxu0 0.0
      %3583 = vmatmul.mubr.f32.gmra.mrb[0].mxu0 %v3057
      %v3584 = vpop.f32.mrb[0].mxu0
      %v3585 = vadd.f32 %v2937, %v3584
      %v3586 = vpop.f32.mrb[0].mxu0
      %3587 = vmatprep.mubr.f32.mxu0 0.0
      %3588 = vmatmul.mubr.f32.gmra.mrb[0].mxu0 %v3060
      %v3589 = vpop.f32.mrb[0].mxu0
      %v3590 = vadd.f32 %v2937, %v3589
      %v3591 = vpop.f32.mrb[0].mxu0
      %3592 = vmatprep.mubr.f32.mxu0 0.0
      %3593 = vmatmul.mubr.f32.gmra.mrb[0].mxu0 %v3063
      %v3594 = vpop.f32.mrb[0].mxu0
      %v3595 = vadd.f32 %v2937, %v3594
      %v3596 = vpop.f32.mrb[0].mxu0
      %3597 = vmatprep.mubr.f32.mxu0 0.0
      %3598 = vmatmul.mubr.f32.gmra.mrb[0].mxu0 %v3066
      %v3599 = vpop.f32.mrb[0].mxu0
      %v3600 = vadd.f32 %v2937, %v3599
      %v3601 = vpop.f32.mrb[0].mxu0
      %3602 = vmatprep.mubr.f32.mxu0 0.0
      %3603 = vmatmul.mubr.f32.gmra.mrb[0].mxu0 %v3069
      %v3604 = vpop.f32.mrb[0].mxu0
      %v3605 = vadd.f32 %v2937, %v3604
      %v3606 = vpop.f32.mrb[0].mxu0
      %3607 = vmatprep.mubr.f32.mxu0 0.0
      %3608 = vmatmul.mubr.f32.gmra.mrb[0].mxu0 %v3072
      %v3609 = vpop.f32.mrb[0].mxu0
      %v3610 = vadd.f32 %v2937, %v3609
      %v3611 = vpop.f32.mrb[0].mxu0
      %3612 = vmatprep.mubr.f32.mxu0 0.0
      %3613 = vmatmul.mubr.f32.gmra.mrb[0].mxu0 %v3075
      %v3614 = vpop.f32.mrb[0].mxu0
      %v3615 = vadd.f32 %v2937, %v3614
      %v3616 = vpop.f32.mrb[0].mxu0
      %3617 = vmatprep.mubr.f32.mxu0 0.0
      %3618 = vmatmul.mubr.f32.gmra.mrb[0].mxu0 %v3078
      %v3619 = vpop.f32.mrb[0].mxu0
      %v3620 = vadd.f32 %v2937, %v3619
      %v3621 = vpop.f32.mrb[0].mxu0
      %3622 = vmatprep.mubr.f32.mxu0 0.0
      %3623 = vmatmul.mubr.f32.gmra.mrb[0].mxu0 %v3081
      %v3624 = vpop.f32.mrb[0].mxu0
      %v3625 = vadd.f32 %v2937, %v3624
      %v3626 = vpop.f32.mrb[0].mxu0
      %3627 = vmatprep.mubr.f32.mxu0 0.0
      %3628 = vmatmul.mubr.f32.gmra.mrb[0].mxu0 %v3084
      %v3629 = vpop.f32.mrb[0].mxu0
      %v3630 = vadd.f32 %v2937, %v3629
      %v3631 = vpop.f32.mrb[0].mxu0
      %3632 = vmatprep.mubr.f32.mxu0 0.0
      %3633 = vmatmul.mubr.f32.gmra.mrb[0].mxu0 %v3087
      %v3634 = vpop.f32.mrb[0].mxu0
      %v3635 = vadd.f32 %v2937, %v3634
      %v3636 = vpop.f32.mrb[0].mxu0
      %3637 = vmatprep.mubr.f32.mxu0 0.0
      %3638 = vmatmul.mubr.f32.gmra.mrb[0].mxu0 %v3090
      %v3639 = vpop.f32.mrb[0].mxu0
      %v3640 = vadd.f32 %v2937, %v3639
      %v3641 = vpop.f32.mrb[0].mxu0
      %3642 = vmatprep.mubr.f32.mxu0 0.0
      %3643 = vmatmul.mubr.f32.gmra.mrb[0].mxu0 %v3093
      %v3644 = vpop.f32.mrb[0].mxu0
      %v3645 = vadd.f32 %v2937, %v3644
      %v3646 = vpop.f32.mrb[0].mxu0
      %3647 = vmatprep.mubr.f32.mxu0 0.0
      %3648 = vmatmul.mubr.f32.gmra.mrb[0].mxu0 %v3096
      %v3649 = vpop.f32.mrb[0].mxu0
      %v3650 = vadd.f32 %v2937, %v3649
      %v3651 = vpop.f32.mrb[0].mxu0
      %3652 = vmatprep.mubr.f32.mxu0 0.0
      %3653 = vmatmul.mubr.f32.gmra.mrb[0].mxu0 %v3099
      %v3654 = vpop.f32.mrb[0].mxu0
      %v3655 = vadd.f32 %v2937, %v3654
      %v3656 = vpop.f32.mrb[0].mxu0
      %3657 = vmatprep.mubr.f32.mxu0 0.0
      %3658 = vmatmul.mubr.f32.gmra.mrb[0].mxu0 %v3102
      %v3659 = vpop.f32.mrb[0].mxu0
      %v3660 = vadd.f32 %v2937, %v3659
      %v3661 = vpop.f32.mrb[0].mxu0
      %3662 = vmatprep.mubr.f32.mxu0 0.0
      %3663 = vmatmul.mubr.f32.gmra.mrb[0].mxu0 %v3105
      %v3664 = vpop.f32.mrb[0].mxu0
      %v3665 = vadd.f32 %v2937, %v3664
      %v3666 = vpop.f32.mrb[0].mxu0
      %3667 = vmatprep.mubr.f32.mxu0 0.0
      %3668 = vmatmul.mubr.f32.gmra.mrb[0].mxu0 %v3108
      %v3669 = vpop.f32.mrb[0].mxu0
      %v3670 = vadd.f32 %v2937, %v3669
      %v3671 = vpop.f32.mrb[0].mxu0
      %3672 = vmatprep.mubr.f32.mxu0 0.0
      %3673 = vmatmul.mubr.f32.gmra.mrb[0].mxu0 %v3111
      %v3674 = vpop.f32.mrb[0].mxu0
      %v3675 = vadd.f32 %v2937, %v3674
      %v3676 = vpop.f32.mrb[0].mxu0
      %3677 = vmatprep.mubr.f32.mxu0 0.0
      %3678 = vmatmul.mubr.f32.gmra.mrb[0].mxu0 %v3114
      %v3679 = vpop.f32.mrb[0].mxu0
      %v3680 = vadd.f32 %v2937, %v3679
      %v3681 = vpop.f32.mrb[0].mxu0
      %3682 = vmatprep.mubr.f32.mxu0 0.0
      %3683 = vmatmul.mubr.f32.gmra.mrb[0].mxu0 %v3117
      %v3684 = vpop.f32.mrb[0].mxu0
      %v3685 = vadd.f32 %v2937, %v3684
      %v3686 = vpop.f32.mrb[0].mxu0
      %3687 = vmatprep.mubr.f32.mxu0 0.0
      %3688 = vmatmul.mubr.f32.gmra.mrb[0].mxu0 %v3120
      %v3689 = vpop.f32.mrb[0].mxu0
      %v3690 = vadd.f32 %v2937, %v3689
      %v3691 = vpop.f32.mrb[0].mxu0
      %3692 = vmatprep.mubr.f32.mxu0 0.0
      %3693 = vmatmul.mubr.f32.gmra.mrb[0].mxu0 %v3123
      %v3694 = vpop.f32.mrb[0].mxu0
      %v3695 = vadd.f32 %v2937, %v3694
      %v3696 = vpop.f32.mrb[0].mxu0
      %3697 = vmatprep.mubr.f32.mxu0 0.0
      %3698 = vmatmul.mubr.f32.gmra.mrb[0].mxu0 %v3126
      %v3699 = vpop.f32.mrb[0].mxu0
      %v3700 = vadd.f32 %v2937, %v3699
      %v3701 = vpop.f32.mrb[0].mxu0
      %3702 = vmatprep.mubr.f32.mxu0 0.0
      %3703 = vmatmul.mubr.f32.gmra.mrb[0].mxu0 %v3129
      %v3704 = vpop.f32.mrb[0].mxu0
      %v3705 = vadd.f32 %v2937, %v3704
      %v3706 = vpop.f32.mrb[0].mxu0
      %3707 = vmatprep.mubr.f32.mxu0 0.0
      %3708 = vmatmul.mubr.f32.gmra.mrb[0].mxu0 %v3132
      %v3709 = vpop.f32.mrb[0].mxu0
      %v3710 = vadd.f32 %v2937, %v3709
      %v3711 = vpop.f32.mrb[0].mxu0
      %3712 = vmatprep.mubr.f32.mxu0 0.0
      %3713 = vmatmul.mubr.f32.gmra.mrb[0].mxu0 %v3135
      %v3714 = vpop.f32.mrb[0].mxu0
      %v3715 = vadd.f32 %v2937, %v3714
      %v3716 = vpop.f32.mrb[0].mxu0
      %3717 = vmatprep.mubr.f32.mxu0 0.0
      %3718 = vmatmul.mubr.f32.gmra.mrb[0].mxu0 %v3138
      %v3719 = vpop.f32.mrb[0].mxu0
      %v3720 = vadd.f32 %v2937, %v3719
      %v3721 = vpop.f32.mrb[0].mxu0
      %3722 = vmatprep.mubr.f32.mxu0 0.0
      %3723 = vmatmul.mubr.f32.gmra.mrb[0].mxu0 %v3141
      %v3724 = vpop.f32.mrb[0].mxu0
      %v3725 = vadd.f32 %v2937, %v3724
      %v3726 = vpop.f32.mrb[0].mxu0
      %3727 = vmatprep.mubr.f32.mxu0 0.0
      %3728 = vmatmul.mubr.f32.gmra.mrb[0].mxu0 %v3144
      %v3729 = vpop.f32.mrb[0].mxu0
      %v3730 = vadd.f32 %v2937, %v3729
      %v3731 = vpop.f32.mrb[0].mxu0
      %3732 = vmatprep.mubr.f32.mxu0 0.0
      %3733 = vmatmul.mubr.f32.gmra.mrb[0].mxu0 %v3147
      %v3734 = vpop.f32.mrb[0].mxu0
      %v3735 = vadd.f32 %v2937, %v3734
      %v3736 = vpop.f32.mrb[0].mxu0
      %3737 = vmatprep.mubr.f32.mxu0 0.0
      %3738 = vmatmul.mubr.f32.gmra.mrb[0].mxu0 %v3150
      %v3739 = vpop.f32.mrb[0].mxu0
      %v3740 = vadd.f32 %v2937, %v3739
      %v3741 = vpop.f32.mrb[0].mxu0
      %3742 = vmatprep.mubr.f32.mxu0 0.0
      %3743 = vmatmul.mubr.f32.gmra.mrb[0].mxu0 %v3153
      %v3744 = vpop.f32.mrb[0].mxu0
      %v3745 = vadd.f32 %v2937, %v3744
      %v3746 = vpop.f32.mrb[0].mxu0
      %3747 = vmatprep.mubr.f32.mxu0 0.0
      %3748 = vmatmul.mubr.f32.gmra.mrb[0].mxu0 %v3156
      %v3749 = vpop.f32.mrb[0].mxu0
      %v3750 = vadd.f32 %v2937, %v3749
      %v3751 = vpop.f32.mrb[0].mxu0
      %3752 = vmatprep.mubr.f32.mxu0 0.0
      %3753 = vmatmul.mubr.f32.gmra.mrb[0].mxu0 %v3159
      %v3754 = vpop.f32.mrb[0].mxu0
      %v3755 = vadd.f32 %v2937, %v3754
      %v3756 = vpop.f32.mrb[0].mxu0
      %3757 = vmatprep.mubr.f32.mxu0 0.0
      %3758 = vmatmul.mubr.f32.gmra.mrb[0].mxu0 %v3162
      %v3759 = vpop.f32.mrb[0].mxu0
      %v3760 = vadd.f32 %v2937, %v3759
      %v3761 = vpop.f32.mrb[0].mxu0
      %3762 = vmatprep.mubr.f32.mxu0 0.0
      %3763 = vmatmul.mubr.f32.gmra.mrb[0].mxu0 %v3165
      %v3764 = vpop.f32.mrb[0].mxu0
      %v3765 = vadd.f32 %v2937, %v3764
      %v3766 = vpop.f32.mrb[0].mxu0
      %3767 = vmatprep.mubr.f32.mxu0 0.0
      %3768 = vmatmul.mubr.f32.gmra.mrb[0].mxu0 %v3168
      %v3769 = vpop.f32.mrb[0].mxu0
      %v3770 = vadd.f32 %v2937, %v3769
      %v3771 = vpop.f32.mrb[0].mxu0
      %3772 = vmatprep.mubr.f32.mxu0 0.0
      %3773 = vmatmul.mubr.f32.gmra.mrb[0].mxu0 %v3171
      %v3774 = vpop.f32.mrb[0].mxu0
      %v3775 = vadd.f32 %v2937, %v3774
      %v3776 = vpop.f32.mrb[0].mxu0
      %3777 = vmatprep.mubr.f32.mxu0 0.0
      %3778 = vmatmul.mubr.f32.gmra.mrb[0].mxu0 %v3174
      %v3779 = vpop.f32.mrb[0].mxu0
      %v3780 = vadd.f32 %v2937, %v3779
      %v3781 = vpop.f32.mrb[0].mxu0
      %3782 = vmatprep.mubr.f32.mxu0 0.0
      %3783 = vmatmul.mubr.f32.gmra.mrb[0].mxu0 %v3177
      %v3784 = vpop.f32.mrb[0].mxu0
      %v3785 = vadd.f32 %v2937, %v3784
      %v3786 = vpop.f32.mrb[0].mxu0
      %3787 = vmatprep.mubr.f32.mxu0 0.0
      %3788 = vmatmul.mubr.f32.gmra.mrb[0].mxu0 %v3180
      %v3789 = vpop.f32.mrb[0].mxu0
      %v3790 = vadd.f32 %v2937, %v3789
      %v3791 = vpop.f32.mrb[0].mxu0
      %3792 = vmatprep.mubr.f32.mxu0 0.0
      %3793 = vmatmul.mubr.f32.gmra.mrb[0].mxu0 %v3183
      %v3794 = vpop.f32.mrb[0].mxu0
      %v3795 = vadd.f32 %v2937, %v3794
      %v3796 = vpop.f32.mrb[0].mxu0
      %3797 = vmatprep.mubr.f32.mxu0 0.0
      %3798 = vmatmul.mubr.f32.gmra.mrb[0].mxu0 %v3186
      %v3799 = vpop.f32.mrb[0].mxu0
      %v3800 = vadd.f32 %v2937, %v3799
      %v3801 = vpop.f32.mrb[0].mxu0
      %3802 = vmatprep.mubr.f32.mxu0 0.0
      %3803 = vmatmul.mubr.f32.gmra.mrb[0].mxu0 %v3189
      %v3804 = vpop.f32.mrb[0].mxu0
      %v3805 = vadd.f32 %v2937, %v3804
      %v3806 = vpop.f32.mrb[0].mxu0
      %3807 = vmatprep.mubr.f32.mxu0 0.0
      %3808 = vmatmul.mubr.f32.gmra.mrb[0].mxu0 %v3192
      %v3809 = vpop.f32.mrb[0].mxu0
      %v3810 = vadd.f32 %v2937, %v3809
      %v3811 = vpop.f32.mrb[0].mxu0
      %3812 = vmatprep.mubr.f32.mxu0 0.0
      %3813 = vmatmul.mubr.f32.gmra.mrb[0].mxu0 %v3195
      %v3814 = vpop.f32.mrb[0].mxu0
      %v3815 = vadd.f32 %v2937, %v3814
      %v3816 = vpop.f32.mrb[0].mxu0
      %3817 = vmatprep.mubr.f32.mxu0 0.0
      %3818 = vmatmul.mubr.f32.gmra.mrb[0].mxu0 %v3198
      %v3819 = vpop.f32.mrb[0].mxu0
      %v3820 = vadd.f32 %v2937, %v3819
      %v3821 = vpop.f32.mrb[0].mxu0
      %3822 = vmatprep.mubr.f32.mxu0 0.0
      %3823 = vmatmul.mubr.f32.gmra.mrb[0].mxu0 %v3201
      %v3824 = vpop.f32.mrb[0].mxu0
      %v3825 = vadd.f32 %v2937, %v3824
      %v3826 = vpop.f32.mrb[0].mxu0
      %3827 = vmatprep.mubr.f32.mxu0 0.0
      %3828 = vmatmul.mubr.f32.gmra.mrb[0].mxu0 %v3204
      %v3829 = vpop.f32.mrb[0].mxu0
      %v3830 = vadd.f32 %v2937, %v3829
      %v3831 = vpop.f32.mrb[0].mxu0
      %3832 = vmatprep.mubr.f32.mxu0 0.0
      %3833 = vmatmul.mubr.f32.gmra.mrb[0].mxu0 %v3207
      %v3834 = vpop.f32.mrb[0].mxu0
      %v3835 = vadd.f32 %v2937, %v3834
      %v3836 = vpop.f32.mrb[0].mxu0
      %3837 = vmatprep.mubr.f32.mxu0 0.0
      %3838 = vmatmul.mubr.f32.gmra.mrb[0].mxu0 %v3210
      %v3839 = vpop.f32.mrb[0].mxu0
      %v3840 = vadd.f32 %v2937, %v3839
      %v3841 = vpop.f32.mrb[0].mxu0
      %3842 = vmatprep.mubr.f32.mxu0 0.0
      %3843 = vmatmul.mubr.f32.gmra.mrb[0].mxu0 %v3213
      %v3844 = vpop.f32.mrb[0].mxu0
      %v3845 = vadd.f32 %v2937, %v3844
      %v3846 = vpop.f32.mrb[0].mxu0
      %3847 = vmatprep.mubr.f32.mxu0 0.0
      %3848 = vmatmul.mubr.f32.gmra.mrb[0].mxu0 %v3216
      %v3849 = vpop.f32.mrb[0].mxu0
      %v3850 = vadd.f32 %v2937, %v3849
      %v3851 = vpop.f32.mrb[0].mxu0
      %3852 = vmatprep.mubr.f32.mxu0 0.0
      %3853 = vmatmul.mubr.f32.gmra.mrb[0].mxu0 %v3219
      %v3854 = vpop.f32.mrb[0].mxu0
      %v3855 = vadd.f32 %v2937, %v3854
      %v3856 = vpop.f32.mrb[0].mxu0
      %3857 = vmatprep.mubr.f32.mxu0 0.0
      %3858 = vmatmul.mubr.f32.gmra.mrb[0].mxu0 %v3222
      %v3859 = vpop.f32.mrb[0].mxu0
      %v3860 = vadd.f32 %v2937, %v3859
      %v3861 = vpop.f32.mrb[0].mxu0
      %3862 = vmatprep.mubr.f32.mxu0 0.0
      %3863 = vmatmul.mubr.f32.gmra.mrb[0].mxu0 %v3225
      %v3864 = vpop.f32.mrb[0].mxu0
      %v3865 = vadd.f32 %v2937, %v3864
      %v3866 = vpop.f32.mrb[0].mxu0
      %3867 = vmatprep.mubr.f32.mxu0 0.0
      %3868 = vmatmul.mubr.f32.gmra.mrb[0].mxu0 %v3228
      %v3869 = vpop.f32.mrb[0].mxu0
      %v3870 = vadd.f32 %v2937, %v3869
      %v3871 = vpop.f32.mrb[0].mxu0
      %3872 = vmatprep.mubr.f32.mxu0 0.0
      %3873 = vmatmul.mubr.f32.gmra.mrb[0].mxu0 %v3231
      %v3874 = vpop.f32.mrb[0].mxu0
      %v3875 = vadd.f32 %v2937, %v3874
      %v3876 = vpop.f32.mrb[0].mxu0
      %3877 = vmatprep.mubr.f32.mxu0 0.0
      %3878 = vmatmul.mubr.f32.gmra.mrb[0].mxu0 %v3234
      %v3879 = vpop.f32.mrb[0].mxu0
      %v3880 = vadd.f32 %v2937, %v3879
      %v3881 = vpop.f32.mrb[0].mxu0
      %3882 = vmatprep.mubr.f32.mxu0 0.0
      %3883 = vmatmul.mubr.f32.gmra.mrb[0].mxu0 %v3237
      %v3884 = vpop.f32.mrb[0].mxu0
      %v3885 = vadd.f32 %v2937, %v3884
      %v3886 = vpop.f32.mrb[0].mxu0
      %3887 = vmatprep.mubr.f32.mxu0 0.0
      %3888 = vmatmul.mubr.f32.gmra.mrb[0].mxu0 %v3240
      %v3889 = vpop.f32.mrb[0].mxu0
      %v3890 = vadd.f32 %v2937, %v3889
      %v3891 = vpop.f32.mrb[0].mxu0
      %3892 = vmatprep.mubr.f32.mxu0 0.0
      %3893 = vmatmul.mubr.f32.gmra.mrb[0].mxu0 %v3243
      %v3894 = vpop.f32.mrb[0].mxu0
      %v3895 = vadd.f32 %v2937, %v3894
      %v3896 = vpop.f32.mrb[0].mxu0
      %3897 = vmatprep.mubr.f32.mxu0 0.0
      %3898 = vmatmul.mubr.f32.gmra.mrb[0].mxu0 %v3246
      %v3899 = vpop.f32.mrb[0].mxu0
      %v3900 = vadd.f32 %v2937, %v3899
      %v3901 = vpop.f32.mrb[0].mxu0
      %3902 = vmatprep.mubr.f32.mxu0 0.0
      %3903 = vmatmul.mubr.f32.gmra.mrb[0].mxu0 %v3249
      %v3904 = vpop.f32.mrb[0].mxu0
      %v3905 = vadd.f32 %v2937, %v3904
      %v3906 = vpop.f32.mrb[0].mxu0
      %3907 = vmatprep.mubr.f32.mxu0 0.0
      %3908 = vmatmul.mubr.f32.gmra.mrb[0].mxu0 %v3252
      %v3909 = vpop.f32.mrb[0].mxu0
      %v3910 = vadd.f32 %v2937, %v3909
      %v3911 = vpop.f32.mrb[0].mxu0
      %3912 = vmatprep.mubr.f32.mxu0 0.0
      %3913 = vmatmul.mubr.f32.gmra.mrb[0].mxu0 %v3255
      %v3914 = vpop.f32.mrb[0].mxu0
      %v3915 = vadd.f32 %v2937, %v3914
      %v3916 = vpop.f32.mrb[0].mxu0
      %3917 = vmatprep.mubr.f32.mxu0 0.0
      %3918 = vmatmul.mubr.f32.gmra.mrb[0].mxu0 %v3258
      %v3919 = vpop.f32.mrb[0].mxu0
      %v3920 = vadd.f32 %v2937, %v3919
      %v3921 = vpop.f32.mrb[0].mxu0
      %3922 = vmatprep.mubr.f32.mxu0 0.0
      %3923 = vmatmul.mubr.f32.gmra.mrb[0].mxu0 %v3261
      %v3924 = vpop.f32.mrb[0].mxu0
      %v3925 = vadd.f32 %v2937, %v3924
      %v3926 = vpop.f32.mrb[0].mxu0
      %3927 = vmatprep.mubr.f32.mxu0 0.0
      %3928 = vmatmul.mubr.f32.gmra.mrb[0].mxu0 %v3264
      %v3929 = vpop.f32.mrb[0].mxu0
      %v3930 = vadd.f32 %v2937, %v3929
      %v3931 = vpop.f32.mrb[0].mxu0
      %3932 = vmatprep.mubr.f32.mxu0 0.0
      %3933 = vmatmul.mubr.f32.gmra.mrb[0].mxu0 %v3267
      %v3934 = vpop.f32.mrb[0].mxu0
      %v3935 = vadd.f32 %v2937, %v3934
      %v3936 = vpop.f32.mrb[0].mxu0
      %3937 = vmatprep.mubr.f32.mxu0 0.0
      %3938 = vmatmul.mubr.f32.gmra.mrb[0].mxu0 %v3270
      %v3939 = vpop.f32.mrb[0].mxu0
      %v3940 = vadd.f32 %v2937, %v3939
      %v3941 = vpop.f32.mrb[0].mxu0
      %3942 = vmatprep.mubr.f32.mxu0 0.0
      %3943 = vmatmul.mubr.f32.gmra.mrb[0].mxu0 %v3273
      %v3944 = vpop.f32.mrb[0].mxu0
      %v3945 = vadd.f32 %v2937, %v3944
      %v3946 = vpop.f32.mrb[0].mxu0
      %3947 = vmatprep.mubr.f32.mxu0 0.0
      %3948 = vmatmul.mubr.f32.gmra.mrb[0].mxu0 %v3276
      %v3949 = vpop.f32.mrb[0].mxu0
      %v3950 = vadd.f32 %v2937, %v3949
      %v3951 = vpop.f32.mrb[0].mxu0
      %3952 = vmatprep.mubr.f32.mxu0 0.0
      %3953 = vmatmul.mubr.f32.gmra.mrb[0].mxu0 %v3279
      %v3954 = vpop.f32.mrb[0].mxu0
      %v3955 = vadd.f32 %v2937, %v3954
      %v3956 = vpop.f32.mrb[0].mxu0
      %3957 = vmatprep.mubr.f32.mxu0 0.0
      %3958 = vmatmul.mubr.f32.gmra.mrb[0].mxu0 %v3282
      %v3959 = vpop.f32.mrb[0].mxu0
      %v3960 = vadd.f32 %v2937, %v3959
      %v3961 = vpop.f32.mrb[0].mxu0
      %3962 = vmatprep.mubr.f32.mxu0 0.0
      %3963 = vmatmul.mubr.f32.gmra.mrb[0].mxu0 %v3285
      %v3964 = vpop.f32.mrb[0].mxu0
      %v3965 = vadd.f32 %v2937, %v3964
      %v3966 = vpop.f32.mrb[0].mxu0
      %3967 = vmatprep.mubr.f32.mxu0 0.0
      %3968 = vmatmul.mubr.f32.gmra.mrb[0].mxu0 %v3288
      %v3969 = vpop.f32.mrb[0].mxu0
      %v3970 = vadd.f32 %v2937, %v3969
      %v3971 = vpop.f32.mrb[0].mxu0
      %3972 = vmatprep.mubr.f32.mxu0 0.0
      %3973 = vmatmul.mubr.f32.gmra.mrb[0].mxu0 %v3291
      %v3974 = vpop.f32.mrb[0].mxu0
      %v3975 = vadd.f32 %v2937, %v3974
      %v3976 = vpop.f32.mrb[0].mxu0
      %3977 = vmatprep.mubr.f32.mxu0 0.0
      %3978 = vmatmul.mubr.f32.gmra.mrb[0].mxu0 %v3294
      %v3979 = vpop.f32.mrb[0].mxu0
      %v3980 = vadd.f32 %v2937, %v3979
      %v3981 = vpop.f32.mrb[0].mxu0
      %3982 = vmatprep.mubr.f32.mxu0 0.0
      %3983 = vmatmul.mubr.f32.gmra.mrb[0].mxu0 %v3297
      %v3984 = vpop.f32.mrb[0].mxu0
      %v3985 = vadd.f32 %v2937, %v3984
      %v3986 = vpop.f32.mrb[0].mxu0
      %3987 = vmatprep.mubr.f32.mxu0 0.0
      %3988 = vmatmul.mubr.f32.gmra.mrb[0].mxu0 %v3300
      %v3989 = vpop.f32.mrb[0].mxu0
      %v3990 = vadd.f32 %v2937, %v3989
      %v3991 = vpop.f32.mrb[0].mxu0
      %3992 = vmatprep.mubr.f32.mxu0 0.0
      %3993 = vmatmul.mubr.f32.gmra.mrb[0].mxu0 %v3303
      %v3994 = vpop.f32.mrb[0].mxu0
      %v3995 = vadd.f32 %v2937, %v3994
      %v3996 = vpop.f32.mrb[0].mxu0
      %3997 = vmatprep.mubr.f32.mxu0 0.0
      %3998 = vmatmul.mubr.f32.gmra.mrb[0].mxu0 %v3306
      %v3999 = vpop.f32.mrb[0].mxu0
      %v4000 = vadd.f32 %v2937, %v3999
      %v4001 = vpop.f32.mrb[0].mxu0
      %4002 = vmatprep.mubr.f32.mxu0 0.0
      %4003 = vmatmul.mubr.f32.gmra.mrb[0].mxu0 %v3309
      %v4004 = vpop.f32.mrb[0].mxu0
      %v4005 = vadd.f32 %v2937, %v4004
      %v4006 = vpop.f32.mrb[0].mxu0
      %4007 = vmatprep.mubr.f32.mxu0 0.0
      %4008 = vmatmul.mubr.f32.gmra.mrb[0].mxu0 %v3312
      %v4009 = vpop.f32.mrb[0].mxu0
      %v4010 = vadd.f32 %v2937, %v4009
      %v4011 = vpop.f32.mrb[0].mxu0
      %4012 = vmatprep.mubr.f32.mxu0 0.0
      %4013 = vmatmul.mubr.f32.gmra.mrb[0].mxu0 %v3315
      %v4014 = vpop.f32.mrb[0].mxu0
      %v4015 = vadd.f32 %v2937, %v4014
      %v4016 = vpop.f32.mrb[0].mxu0
      %4017 = vmatprep.mubr.f32.mxu0 0.0
      %4018 = vmatmul.mubr.f32.gmra.mrb[0].mxu0 %v3318
      %v4019 = vpop.f32.mrb[0].mxu0
      %v4020 = vadd.f32 %v2937, %v4019
      %v4021 = vpop.f32.mrb[0].mxu0
      %4022 = vmatprep.mubr.f32.mxu0 0.0
      %4023 = vmatmul.mubr.f32.gmra.mrb[0].mxu0 %v3321
      %v4024 = vpop.f32.mrb[0].mxu0
      %v4025 = vadd.f32 %v2937, %v4024
      %v4026 = vpop.f32.mrb[0].mxu0
      %4027 = vdwg.mxu0
      %v4028 = vmax.f32 %v3390, 0.0
      %v4029 = vmax.f32 %v3395, 0.0
      %v4030 = vmax.f32 %v3400, 0.0
      %v4031 = vmax.f32 %v3405, 0.0
      %v4032 = vmax.f32 %v3410, 0.0
      %v4033 = vmax.f32 %v3415, 0.0
      %v4034 = vmax.f32 %v3420, 0.0
      %v4035 = vmax.f32 %v3425, 0.0
      %v4036 = vmax.f32 %v3430, 0.0
      %v4037 = vmax.f32 %v3435, 0.0
      %v4038 = vmax.f32 %v3440, 0.0
      %v4039 = vmax.f32 %v3445, 0.0
      %v4040 = vmax.f32 %v3450, 0.0
      %v4041 = vmax.f32 %v3455, 0.0
      %v4042 = vmax.f32 %v3460, 0.0
      %v4043 = vmax.f32 %v3465, 0.0
      %v4044 = vmax.f32 %v3470, 0.0
      %v4045 = vmax.f32 %v3475, 0.0
      %v4046 = vmax.f32 %v3480, 0.0
      %v4047 = vmax.f32 %v3485, 0.0
      %v4048 = vmax.f32 %v3490, 0.0
      %v4049 = vmax.f32 %v3495, 0.0
      %v4050 = vmax.f32 %v3500, 0.0
      %v4051 = vmax.f32 %v3505, 0.0
      %v4052 = vmax.f32 %v3510, 0.0
      %v4053 = vmax.f32 %v3515, 0.0
      %v4054 = vmax.f32 %v3520, 0.0
      %v4055 = vmax.f32 %v3525, 0.0
      %v4056 = vmax.f32 %v3530, 0.0
      %v4057 = vmax.f32 %v3535, 0.0
      %v4058 = vmax.f32 %v3540, 0.0
      %v4059 = vmax.f32 %v3545, 0.0
      %v4060 = vmax.f32 %v3550, 0.0
      %v4061 = vmax.f32 %v3555, 0.0
      %v4062 = vmax.f32 %v3560, 0.0
      %v4063 = vmax.f32 %v3565, 0.0
      %v4064 = vmax.f32 %v3570, 0.0
      %v4065 = vmax.f32 %v3575, 0.0
      %v4066 = vmax.f32 %v3580, 0.0
      %v4067 = vmax.f32 %v3585, 0.0
      %v4068 = vmax.f32 %v3590, 0.0
      %v4069 = vmax.f32 %v3595, 0.0
      %v4070 = vmax.f32 %v3600, 0.0
      %v4071 = vmax.f32 %v3605, 0.0
      %v4072 = vmax.f32 %v3610, 0.0
      %v4073 = vmax.f32 %v3615, 0.0
      %v4074 = vmax.f32 %v3620, 0.0
      %v4075 = vmax.f32 %v3625, 0.0
      %v4076 = vmax.f32 %v3630, 0.0
      %v4077 = vmax.f32 %v3635, 0.0
      %v4078 = vmax.f32 %v3640, 0.0
      %v4079 = vmax.f32 %v3645, 0.0
      %v4080 = vmax.f32 %v3650, 0.0
      %v4081 = vmax.f32 %v3655, 0.0
      %v4082 = vmax.f32 %v3660, 0.0
      %v4083 = vmax.f32 %v3665, 0.0
      %v4084 = vmax.f32 %v3670, 0.0
      %v4085 = vmax.f32 %v3675, 0.0
      %v4086 = vmax.f32 %v3680, 0.0
      %v4087 = vmax.f32 %v3685, 0.0
      %v4088 = vmax.f32 %v3690, 0.0
      %v4089 = vmax.f32 %v3695, 0.0
      %v4090 = vmax.f32 %v3700, 0.0
      %v4091 = vmax.f32 %v3705, 0.0
      %v4092 = vmax.f32 %v3710, 0.0
      %v4093 = vmax.f32 %v3715, 0.0
      %v4094 = vmax.f32 %v3720, 0.0
      %v4095 = vmax.f32 %v3725, 0.0
      %v4096 = vmax.f32 %v3730, 0.0
      %v4097 = vmax.f32 %v3735, 0.0
      %v4098 = vmax.f32 %v3740, 0.0
      %v4099 = vmax.f32 %v3745, 0.0
      %v4100 = vmax.f32 %v3750, 0.0
      %v4101 = vmax.f32 %v3755, 0.0
      %v4102 = vmax.f32 %v3760, 0.0
      %v4103 = vmax.f32 %v3765, 0.0
      %v4104 = vmax.f32 %v3770, 0.0
      %v4105 = vmax.f32 %v3775, 0.0
      %v4106 = vmax.f32 %v3780, 0.0
      %v4107 = vmax.f32 %v3785, 0.0
      %v4108 = vmax.f32 %v3790, 0.0
      %v4109 = vmax.f32 %v3795, 0.0
      %v4110 = vmax.f32 %v3800, 0.0
      %v4111 = vmax.f32 %v3805, 0.0
      %v4112 = vmax.f32 %v3810, 0.0
      %v4113 = vmax.f32 %v3815, 0.0
      %v4114 = vmax.f32 %v3820, 0.0
      %v4115 = vmax.f32 %v3825, 0.0
      %v4116 = vmax.f32 %v3830, 0.0
      %v4117 = vmax.f32 %v3835, 0.0
      %v4118 = vmax.f32 %v3840, 0.0
      %v4119 = vmax.f32 %v3845, 0.0
      %v4120 = vmax.f32 %v3850, 0.0
      %v4121 = vmax.f32 %v3855, 0.0
      %v4122 = vmax.f32 %v3860, 0.0
      %v4123 = vmax.f32 %v3865, 0.0
      %v4124 = vmax.f32 %v3870, 0.0
      %v4125 = vmax.f32 %v3875, 0.0
      %v4126 = vmax.f32 %v3880, 0.0
      %v4127 = vmax.f32 %v3885, 0.0
      %v4128 = vmax.f32 %v3890, 0.0
      %v4129 = vmax.f32 %v3895, 0.0
      %v4130 = vmax.f32 %v3900, 0.0
      %v4131 = vmax.f32 %v3905, 0.0
      %v4132 = vmax.f32 %v3910, 0.0
      %v4133 = vmax.f32 %v3915, 0.0
      %v4134 = vmax.f32 %v3920, 0.0
      %v4135 = vmax.f32 %v3925, 0.0
      %v4136 = vmax.f32 %v3930, 0.0
      %v4137 = vmax.f32 %v3935, 0.0
      %v4138 = vmax.f32 %v3940, 0.0
      %v4139 = vmax.f32 %v3945, 0.0
      %v4140 = vmax.f32 %v3950, 0.0
      %v4141 = vmax.f32 %v3955, 0.0
      %v4142 = vmax.f32 %v3960, 0.0
      %v4143 = vmax.f32 %v3965, 0.0
      %v4144 = vmax.f32 %v3970, 0.0
      %v4145 = vmax.f32 %v3975, 0.0
      %v4146 = vmax.f32 %v3980, 0.0
      %v4147 = vmax.f32 %v3985, 0.0
      %v4148 = vmax.f32 %v3990, 0.0
      %v4149 = vmax.f32 %v3995, 0.0
      %v4150 = vmax.f32 %v4000, 0.0
      %v4151 = vmax.f32 %v4005, 0.0
      %v4152 = vmax.f32 %v4010, 0.0
      %v4153 = vmax.f32 %v4015, 0.0
      %v4154 = vmax.f32 %v4020, 0.0
      %v4155 = vmax.f32 %v4025, 0.0
      %v4156 = vld [vmem:[%s7] sm:$0xff]
      %v4157 = vld [vmem:[%s7 + $0x8] sm:$0xff]
      %v4158 = vld [vmem:[%s7 + $0x10] sm:$0xff]
      %v4159 = vld [vmem:[%s7 + $0x18] sm:$0xff]
      %v4160 = vld [vmem:[%s7 + $0x20] sm:$0xff]
      %v4161 = vld [vmem:[%s7 + $0x28] sm:$0xff]
      %v4162 = vld [vmem:[%s7 + $0x30] sm:$0xff]
      %v4163 = vld [vmem:[%s7 + $0x38] sm:$0xff]
      %v4164 = vld [vmem:[%s8] sm:$0x1]
      %v4166 = vlaneseq
      %v4167 = vshrl.u32 %v4166, 7
      %v4168 = vsub.s32 0, %v4167
      %v4169 = vrot.slane %v4164, %v4168
      %v4172 = vsel %vm1706, %v4028, 0
      %v4175 = vsel %vm1706, %v4029, 0
      %v4178 = vsel %vm1706, %v4030, 0
      %v4181 = vsel %vm1706, %v4031, 0
      %v4184 = vsel %vm1706, %v4032, 0
      %v4187 = vsel %vm1706, %v4033, 0
      %v4190 = vsel %vm1706, %v4034, 0
      %v4193 = vsel %vm1706, %v4035, 0
      %v4196 = vsel %vm1706, %v4036, 0
      %v4199 = vsel %vm1706, %v4037, 0
      %v4202 = vsel %vm1706, %v4038, 0
      %v4205 = vsel %vm1706, %v4039, 0
      %v4208 = vsel %vm1706, %v4040, 0
      %v4211 = vsel %vm1706, %v4041, 0
      %v4214 = vsel %vm1706, %v4042, 0
      %v4217 = vsel %vm1706, %v4043, 0
      %v4220 = vsel %vm1706, %v4044, 0
      %v4223 = vsel %vm1706, %v4045, 0
      %v4226 = vsel %vm1706, %v4046, 0
      %v4229 = vsel %vm1706, %v4047, 0
      %v4232 = vsel %vm1706, %v4048, 0
      %v4235 = vsel %vm1706, %v4049, 0
      %v4238 = vsel %vm1706, %v4050, 0
      %v4241 = vsel %vm1706, %v4051, 0
      %v4244 = vsel %vm1706, %v4052, 0
      %v4247 = vsel %vm1706, %v4053, 0
      %v4250 = vsel %vm1706, %v4054, 0
      %v4253 = vsel %vm1706, %v4055, 0
      %v4256 = vsel %vm1706, %v4056, 0
      %v4259 = vsel %vm1706, %v4057, 0
      %v4262 = vsel %vm1706, %v4058, 0
      %v4265 = vsel %vm1706, %v4059, 0
      %v4268 = vsel %vm1706, %v4060, 0
      %v4271 = vsel %vm1706, %v4061, 0
      %v4274 = vsel %vm1706, %v4062, 0
      %v4277 = vsel %vm1706, %v4063, 0
      %v4280 = vsel %vm1706, %v4064, 0
      %v4283 = vsel %vm1706, %v4065, 0
      %v4286 = vsel %vm1706, %v4066, 0
      %v4289 = vsel %vm1706, %v4067, 0
      %v4292 = vsel %vm1706, %v4068, 0
      %v4295 = vsel %vm1706, %v4069, 0
      %v4298 = vsel %vm1706, %v4070, 0
      %v4301 = vsel %vm1706, %v4071, 0
      %v4304 = vsel %vm1706, %v4072, 0
      %v4307 = vsel %vm1706, %v4073, 0
      %v4310 = vsel %vm1706, %v4074, 0
      %v4313 = vsel %vm1706, %v4075, 0
      %v4316 = vsel %vm1706, %v4076, 0
      %v4319 = vsel %vm1706, %v4077, 0
      %v4322 = vsel %vm1706, %v4078, 0
      %v4325 = vsel %vm1706, %v4079, 0
      %v4328 = vsel %vm1706, %v4080, 0
      %v4331 = vsel %vm1706, %v4081, 0
      %v4334 = vsel %vm1706, %v4082, 0
      %v4337 = vsel %vm1706, %v4083, 0
      %v4340 = vsel %vm1706, %v4084, 0
      %v4343 = vsel %vm1706, %v4085, 0
      %v4346 = vsel %vm1706, %v4086, 0
      %v4349 = vsel %vm1706, %v4087, 0
      %v4352 = vsel %vm1706, %v4088, 0
      %v4355 = vsel %vm1706, %v4089, 0
      %v4358 = vsel %vm1706, %v4090, 0
      %v4361 = vsel %vm1706, %v4091, 0
      %v4364 = vsel %vm1706, %v4092, 0
      %v4367 = vsel %vm1706, %v4093, 0
      %v4370 = vsel %vm1706, %v4094, 0
      %v4373 = vsel %vm1706, %v4095, 0
      %v4376 = vsel %vm1706, %v4096, 0
      %v4379 = vsel %vm1706, %v4097, 0
      %v4382 = vsel %vm1706, %v4098, 0
      %v4385 = vsel %vm1706, %v4099, 0
      %v4388 = vsel %vm1706, %v4100, 0
      %v4391 = vsel %vm1706, %v4101, 0
      %v4394 = vsel %vm1706, %v4102, 0
      %v4397 = vsel %vm1706, %v4103, 0
      %v4400 = vsel %vm1706, %v4104, 0
      %v4403 = vsel %vm1706, %v4105, 0
      %v4406 = vsel %vm1706, %v4106, 0
      %v4409 = vsel %vm1706, %v4107, 0
      %v4412 = vsel %vm1706, %v4108, 0
      %v4415 = vsel %vm1706, %v4109, 0
      %v4418 = vsel %vm1706, %v4110, 0
      %v4421 = vsel %vm1706, %v4111, 0
      %v4424 = vsel %vm1706, %v4112, 0
      %v4427 = vsel %vm1706, %v4113, 0
      %v4430 = vsel %vm1706, %v4114, 0
      %v4433 = vsel %vm1706, %v4115, 0
      %v4436 = vsel %vm1706, %v4116, 0
      %v4439 = vsel %vm1706, %v4117, 0
      %v4442 = vsel %vm1706, %v4118, 0
      %v4445 = vsel %vm1706, %v4119, 0
      %v4448 = vsel %vm1706, %v4120, 0
      %v4451 = vsel %vm1706, %v4121, 0
      %v4454 = vsel %vm1706, %v4122, 0
      %v4457 = vsel %vm1706, %v4123, 0
      %v4460 = vsel %vm1706, %v4124, 0
      %v4463 = vsel %vm1706, %v4125, 0
      %v4466 = vsel %vm1706, %v4126, 0
      %v4469 = vsel %vm1706, %v4127, 0
      %v4472 = vsel %vm1706, %v4128, 0
      %v4475 = vsel %vm1706, %v4129, 0
      %v4478 = vsel %vm1706, %v4130, 0
      %v4481 = vsel %vm1706, %v4131, 0
      %v4484 = vsel %vm1706, %v4132, 0
      %v4487 = vsel %vm1706, %v4133, 0
      %v4490 = vsel %vm1706, %v4134, 0
      %v4493 = vsel %vm1706, %v4135, 0
      %v4496 = vsel %vm1706, %v4136, 0
      %v4499 = vsel %vm1706, %v4137, 0
      %v4502 = vsel %vm1706, %v4138, 0
      %v4505 = vsel %vm1706, %v4139, 0
      %v4508 = vsel %vm1706, %v4140, 0
      %v4511 = vsel %vm1706, %v4141, 0
      %v4514 = vsel %vm1706, %v4142, 0
      %v4517 = vsel %vm1706, %v4143, 0
      %v4520 = vsel %vm1706, %v4144, 0
      %v4523 = vsel %vm1706, %v4145, 0
      %v4526 = vsel %vm1706, %v4146, 0
      %v4529 = vsel %vm1706, %v4147, 0
      %v4532 = vsel %vm1706, %v4148, 0
      %v4535 = vsel %vm1706, %v4149, 0
      %v4538 = vsel %vm1706, %v4150, 0
      %v4541 = vsel %vm1706, %v4151, 0
      %v4544 = vsel %vm1706, %v4152, 0
      %v4547 = vsel %vm1706, %v4153, 0
      %v4550 = vsel %vm1706, %v4154, 0
      %v4553 = vsel %vm1706, %v4155, 0
      %4555 = vmatprep.subr.mxu0 0.0
      %4556 = vmatpush1.msra.mxu0 %v4156
      %4557 = vmatprep.subr.mxu0 0.0
      %4558 = vmatpush1.msra.mxu0 %v4157
      %4559 = vmatprep.subr.mxu0 0.0
      %4560 = vmatpush1.msra.mxu0 %v4158
      %4561 = vmatprep.subr.mxu0 0.0
      %4562 = vmatpush1.msra.mxu0 %v4159
      %4563 = vmatprep.subr.mxu0 0.0
      %4564 = vmatpush1.msra.mxu0 %v4160
      %4565 = vmatprep.subr.mxu0 0.0
      %4566 = vmatpush1.msra.mxu0 %v4161
      %4567 = vmatprep.subr.mxu0 0.0
      %4568 = vmatpush1.msra.mxu0 %v4162
      %4569 = vmatprep.subr.mxu0 0.0
      %4570 = vmatpush1.msra.mxu0 %v4163
      %4571 = vmatprep.subr.mxu0 0.0
      %4572 = vmatpush1.msra.mxu0 0.0
      %4573 = vmatprep.subr.mxu0 0.0
      %4574 = vmatpush1.msra.mxu0 0.0
      %4575 = vmatprep.subr.mxu0 0.0
      %4576 = vmatpush1.msra.mxu0 0.0
      %4577 = vmatprep.subr.mxu0 0.0
      %4578 = vmatpush1.msra.mxu0 0.0
      %4579 = vmatprep.subr.mxu0 0.0
      %4580 = vmatpush1.msra.mxu0 0.0
      %4581 = vmatprep.subr.mxu0 0.0
      %4582 = vmatpush1.msra.mxu0 0.0
      %4583 = vmatprep.subr.mxu0 0.0
      %4584 = vmatpush1.msra.mxu0 0.0
      %4585 = vmatprep.subr.mxu0 0.0
      %4586 = vmatpush1.msra.mxu0 0.0
      %4587 = vmatprep.subr.mxu0 0.0
      %4588 = vmatpush1.msra.mxu0 0.0
      %4589 = vmatprep.subr.mxu0 0.0
      %4590 = vmatpush1.msra.mxu0 0.0
      %4591 = vmatprep.subr.mxu0 0.0
      %4592 = vmatpush1.msra.mxu0 0.0
      %4593 = vmatprep.subr.mxu0 0.0
      %4594 = vmatpush1.msra.mxu0 0.0
      %4595 = vmatprep.subr.mxu0 0.0
      %4596 = vmatpush1.msra.mxu0 0.0
      %4597 = vmatprep.subr.mxu0 0.0
      %4598 = vmatpush1.msra.mxu0 0.0
      %4599 = vmatprep.subr.mxu0 0.0
      %4600 = vmatpush1.msra.mxu0 0.0
      %4601 = vmatprep.subr.mxu0 0.0
      %4602 = vmatpush1.msra.mxu0 0.0
      %4603 = vmatprep.subr.mxu0 0.0
      %4604 = vmatpush1.msra.mxu0 0.0
      %4605 = vmatprep.subr.mxu0 0.0
      %4606 = vmatpush1.msra.mxu0 0.0
      %4607 = vmatprep.subr.mxu0 0.0
      %4608 = vmatpush1.msra.mxu0 0.0
      %4609 = vmatprep.subr.mxu0 0.0
      %4610 = vmatpush1.msra.mxu0 0.0
      %4611 = vmatprep.subr.mxu0 0.0
      %4612 = vmatpush1.msra.mxu0 0.0
      %4613 = vmatprep.subr.mxu0 0.0
      %4614 = vmatpush1.msra.mxu0 0.0
      %4615 = vmatprep.subr.mxu0 0.0
      %4616 = vmatpush1.msra.mxu0 0.0
      %4617 = vmatprep.subr.mxu0 0.0
      %4618 = vmatpush1.msra.mxu0 0.0
      %4619 = vmatprep.mubr.f32.mxu0 0.0
      %4620 = vmatmul.mubr.f32.gmra.mrb[0].mxu0 %v4172
      %v4621 = vpop.f32.mrb[0].mxu0
      %v4622 = vadd.f32 %v4169, %v4621
      %v4623 = vpop.f32.mrb[0].mxu0
      %4624 = vmatprep.mubr.f32.mxu0 0.0
      %4625 = vmatmul.mubr.f32.gmra.mrb[0].mxu0 %v4175
      %v4626 = vpop.f32.mrb[0].mxu0
      %v4627 = vadd.f32 %v4169, %v4626
      %v4628 = vpop.f32.mrb[0].mxu0
      %4629 = vmatprep.mubr.f32.mxu0 0.0
      %4630 = vmatmul.mubr.f32.gmra.mrb[0].mxu0 %v4178
      %v4631 = vpop.f32.mrb[0].mxu0
      %v4632 = vadd.f32 %v4169, %v4631
      %v4633 = vpop.f32.mrb[0].mxu0
      %4634 = vmatprep.mubr.f32.mxu0 0.0
      %4635 = vmatmul.mubr.f32.gmra.mrb[0].mxu0 %v4181
      %v4636 = vpop.f32.mrb[0].mxu0
      %v4637 = vadd.f32 %v4169, %v4636
      %v4638 = vpop.f32.mrb[0].mxu0
      %4639 = vmatprep.mubr.f32.mxu0 0.0
      %4640 = vmatmul.mubr.f32.gmra.mrb[0].mxu0 %v4184
      %v4641 = vpop.f32.mrb[0].mxu0
      %v4642 = vadd.f32 %v4169, %v4641
      %v4643 = vpop.f32.mrb[0].mxu0
      %4644 = vmatprep.mubr.f32.mxu0 0.0
      %4645 = vmatmul.mubr.f32.gmra.mrb[0].mxu0 %v4187
      %v4646 = vpop.f32.mrb[0].mxu0
      %v4647 = vadd.f32 %v4169, %v4646
      %v4648 = vpop.f32.mrb[0].mxu0
      %4649 = vmatprep.mubr.f32.mxu0 0.0
      %4650 = vmatmul.mubr.f32.gmra.mrb[0].mxu0 %v4190
      %v4651 = vpop.f32.mrb[0].mxu0
      %v4652 = vadd.f32 %v4169, %v4651
      %v4653 = vpop.f32.mrb[0].mxu0
      %4654 = vmatprep.mubr.f32.mxu0 0.0
      %4655 = vmatmul.mubr.f32.gmra.mrb[0].mxu0 %v4193
      %v4656 = vpop.f32.mrb[0].mxu0
      %v4657 = vadd.f32 %v4169, %v4656
      %v4658 = vpop.f32.mrb[0].mxu0
      %4659 = vmatprep.mubr.f32.mxu0 0.0
      %4660 = vmatmul.mubr.f32.gmra.mrb[0].mxu0 %v4196
      %v4661 = vpop.f32.mrb[0].mxu0
      %v4662 = vadd.f32 %v4169, %v4661
      %v4663 = vpop.f32.mrb[0].mxu0
      %4664 = vmatprep.mubr.f32.mxu0 0.0
      %4665 = vmatmul.mubr.f32.gmra.mrb[0].mxu0 %v4199
      %v4666 = vpop.f32.mrb[0].mxu0
      %v4667 = vadd.f32 %v4169, %v4666
      %v4668 = vpop.f32.mrb[0].mxu0
      %4669 = vmatprep.mubr.f32.mxu0 0.0
      %4670 = vmatmul.mubr.f32.gmra.mrb[0].mxu0 %v4202
      %v4671 = vpop.f32.mrb[0].mxu0
      %v4672 = vadd.f32 %v4169, %v4671
      %v4673 = vpop.f32.mrb[0].mxu0
      %4674 = vmatprep.mubr.f32.mxu0 0.0
      %4675 = vmatmul.mubr.f32.gmra.mrb[0].mxu0 %v4205
      %v4676 = vpop.f32.mrb[0].mxu0
      %v4677 = vadd.f32 %v4169, %v4676
      %v4678 = vpop.f32.mrb[0].mxu0
      %4679 = vmatprep.mubr.f32.mxu0 0.0
      %4680 = vmatmul.mubr.f32.gmra.mrb[0].mxu0 %v4208
      %v4681 = vpop.f32.mrb[0].mxu0
      %v4682 = vadd.f32 %v4169, %v4681
      %v4683 = vpop.f32.mrb[0].mxu0
      %4684 = vmatprep.mubr.f32.mxu0 0.0
      %4685 = vmatmul.mubr.f32.gmra.mrb[0].mxu0 %v4211
      %v4686 = vpop.f32.mrb[0].mxu0
      %v4687 = vadd.f32 %v4169, %v4686
      %v4688 = vpop.f32.mrb[0].mxu0
      %4689 = vmatprep.mubr.f32.mxu0 0.0
      %4690 = vmatmul.mubr.f32.gmra.mrb[0].mxu0 %v4214
      %v4691 = vpop.f32.mrb[0].mxu0
      %v4692 = vadd.f32 %v4169, %v4691
      %v4693 = vpop.f32.mrb[0].mxu0
      %4694 = vmatprep.mubr.f32.mxu0 0.0
      %4695 = vmatmul.mubr.f32.gmra.mrb[0].mxu0 %v4217
      %v4696 = vpop.f32.mrb[0].mxu0
      %v4697 = vadd.f32 %v4169, %v4696
      %v4698 = vpop.f32.mrb[0].mxu0
      %4699 = vmatprep.mubr.f32.mxu0 0.0
      %4700 = vmatmul.mubr.f32.gmra.mrb[0].mxu0 %v4220
      %v4701 = vpop.f32.mrb[0].mxu0
      %v4702 = vadd.f32 %v4169, %v4701
      %v4703 = vpop.f32.mrb[0].mxu0
      %4704 = vmatprep.mubr.f32.mxu0 0.0
      %4705 = vmatmul.mubr.f32.gmra.mrb[0].mxu0 %v4223
      %v4706 = vpop.f32.mrb[0].mxu0
      %v4707 = vadd.f32 %v4169, %v4706
      %v4708 = vpop.f32.mrb[0].mxu0
      %4709 = vmatprep.mubr.f32.mxu0 0.0
      %4710 = vmatmul.mubr.f32.gmra.mrb[0].mxu0 %v4226
      %v4711 = vpop.f32.mrb[0].mxu0
      %v4712 = vadd.f32 %v4169, %v4711
      %v4713 = vpop.f32.mrb[0].mxu0
      %4714 = vmatprep.mubr.f32.mxu0 0.0
      %4715 = vmatmul.mubr.f32.gmra.mrb[0].mxu0 %v4229
      %v4716 = vpop.f32.mrb[0].mxu0
      %v4717 = vadd.f32 %v4169, %v4716
      %v4718 = vpop.f32.mrb[0].mxu0
      %4719 = vmatprep.mubr.f32.mxu0 0.0
      %4720 = vmatmul.mubr.f32.gmra.mrb[0].mxu0 %v4232
      %v4721 = vpop.f32.mrb[0].mxu0
      %v4722 = vadd.f32 %v4169, %v4721
      %v4723 = vpop.f32.mrb[0].mxu0
      %4724 = vmatprep.mubr.f32.mxu0 0.0
      %4725 = vmatmul.mubr.f32.gmra.mrb[0].mxu0 %v4235
      %v4726 = vpop.f32.mrb[0].mxu0
      %v4727 = vadd.f32 %v4169, %v4726
      %v4728 = vpop.f32.mrb[0].mxu0
      %4729 = vmatprep.mubr.f32.mxu0 0.0
      %4730 = vmatmul.mubr.f32.gmra.mrb[0].mxu0 %v4238
      %v4731 = vpop.f32.mrb[0].mxu0
      %v4732 = vadd.f32 %v4169, %v4731
      %v4733 = vpop.f32.mrb[0].mxu0
      %4734 = vmatprep.mubr.f32.mxu0 0.0
      %4735 = vmatmul.mubr.f32.gmra.mrb[0].mxu0 %v4241
      %v4736 = vpop.f32.mrb[0].mxu0
      %v4737 = vadd.f32 %v4169, %v4736
      %v4738 = vpop.f32.mrb[0].mxu0
      %4739 = vmatprep.mubr.f32.mxu0 0.0
      %4740 = vmatmul.mubr.f32.gmra.mrb[0].mxu0 %v4244
      %v4741 = vpop.f32.mrb[0].mxu0
      %v4742 = vadd.f32 %v4169, %v4741
      %v4743 = vpop.f32.mrb[0].mxu0
      %4744 = vmatprep.mubr.f32.mxu0 0.0
      %4745 = vmatmul.mubr.f32.gmra.mrb[0].mxu0 %v4247
      %v4746 = vpop.f32.mrb[0].mxu0
      %v4747 = vadd.f32 %v4169, %v4746
      %v4748 = vpop.f32.mrb[0].mxu0
      %4749 = vmatprep.mubr.f32.mxu0 0.0
      %4750 = vmatmul.mubr.f32.gmra.mrb[0].mxu0 %v4250
      %v4751 = vpop.f32.mrb[0].mxu0
      %v4752 = vadd.f32 %v4169, %v4751
      %v4753 = vpop.f32.mrb[0].mxu0
      %4754 = vmatprep.mubr.f32.mxu0 0.0
      %4755 = vmatmul.mubr.f32.gmra.mrb[0].mxu0 %v4253
      %v4756 = vpop.f32.mrb[0].mxu0
      %v4757 = vadd.f32 %v4169, %v4756
      %v4758 = vpop.f32.mrb[0].mxu0
      %4759 = vmatprep.mubr.f32.mxu0 0.0
      %4760 = vmatmul.mubr.f32.gmra.mrb[0].mxu0 %v4256
      %v4761 = vpop.f32.mrb[0].mxu0
      %v4762 = vadd.f32 %v4169, %v4761
      %v4763 = vpop.f32.mrb[0].mxu0
      %4764 = vmatprep.mubr.f32.mxu0 0.0
      %4765 = vmatmul.mubr.f32.gmra.mrb[0].mxu0 %v4259
      %v4766 = vpop.f32.mrb[0].mxu0
      %v4767 = vadd.f32 %v4169, %v4766
      %v4768 = vpop.f32.mrb[0].mxu0
      %4769 = vmatprep.mubr.f32.mxu0 0.0
      %4770 = vmatmul.mubr.f32.gmra.mrb[0].mxu0 %v4262
      %v4771 = vpop.f32.mrb[0].mxu0
      %v4772 = vadd.f32 %v4169, %v4771
      %v4773 = vpop.f32.mrb[0].mxu0
      %4774 = vmatprep.mubr.f32.mxu0 0.0
      %4775 = vmatmul.mubr.f32.gmra.mrb[0].mxu0 %v4265
      %v4776 = vpop.f32.mrb[0].mxu0
      %v4777 = vadd.f32 %v4169, %v4776
      %v4778 = vpop.f32.mrb[0].mxu0
      %4779 = vmatprep.mubr.f32.mxu0 0.0
      %4780 = vmatmul.mubr.f32.gmra.mrb[0].mxu0 %v4268
      %v4781 = vpop.f32.mrb[0].mxu0
      %v4782 = vadd.f32 %v4169, %v4781
      %v4783 = vpop.f32.mrb[0].mxu0
      %4784 = vmatprep.mubr.f32.mxu0 0.0
      %4785 = vmatmul.mubr.f32.gmra.mrb[0].mxu0 %v4271
      %v4786 = vpop.f32.mrb[0].mxu0
      %v4787 = vadd.f32 %v4169, %v4786
      %v4788 = vpop.f32.mrb[0].mxu0
      %4789 = vmatprep.mubr.f32.mxu0 0.0
      %4790 = vmatmul.mubr.f32.gmra.mrb[0].mxu0 %v4274
      %v4791 = vpop.f32.mrb[0].mxu0
      %v4792 = vadd.f32 %v4169, %v4791
      %v4793 = vpop.f32.mrb[0].mxu0
      %4794 = vmatprep.mubr.f32.mxu0 0.0
      %4795 = vmatmul.mubr.f32.gmra.mrb[0].mxu0 %v4277
      %v4796 = vpop.f32.mrb[0].mxu0
      %v4797 = vadd.f32 %v4169, %v4796
      %v4798 = vpop.f32.mrb[0].mxu0
      %4799 = vmatprep.mubr.f32.mxu0 0.0
      %4800 = vmatmul.mubr.f32.gmra.mrb[0].mxu0 %v4280
      %v4801 = vpop.f32.mrb[0].mxu0
      %v4802 = vadd.f32 %v4169, %v4801
      %v4803 = vpop.f32.mrb[0].mxu0
      %4804 = vmatprep.mubr.f32.mxu0 0.0
      %4805 = vmatmul.mubr.f32.gmra.mrb[0].mxu0 %v4283
      %v4806 = vpop.f32.mrb[0].mxu0
      %v4807 = vadd.f32 %v4169, %v4806
      %v4808 = vpop.f32.mrb[0].mxu0
      %4809 = vmatprep.mubr.f32.mxu0 0.0
      %4810 = vmatmul.mubr.f32.gmra.mrb[0].mxu0 %v4286
      %v4811 = vpop.f32.mrb[0].mxu0
      %v4812 = vadd.f32 %v4169, %v4811
      %v4813 = vpop.f32.mrb[0].mxu0
      %4814 = vmatprep.mubr.f32.mxu0 0.0
      %4815 = vmatmul.mubr.f32.gmra.mrb[0].mxu0 %v4289
      %v4816 = vpop.f32.mrb[0].mxu0
      %v4817 = vadd.f32 %v4169, %v4816
      %v4818 = vpop.f32.mrb[0].mxu0
      %4819 = vmatprep.mubr.f32.mxu0 0.0
      %4820 = vmatmul.mubr.f32.gmra.mrb[0].mxu0 %v4292
      %v4821 = vpop.f32.mrb[0].mxu0
      %v4822 = vadd.f32 %v4169, %v4821
      %v4823 = vpop.f32.mrb[0].mxu0
      %4824 = vmatprep.mubr.f32.mxu0 0.0
      %4825 = vmatmul.mubr.f32.gmra.mrb[0].mxu0 %v4295
      %v4826 = vpop.f32.mrb[0].mxu0
      %v4827 = vadd.f32 %v4169, %v4826
      %v4828 = vpop.f32.mrb[0].mxu0
      %4829 = vmatprep.mubr.f32.mxu0 0.0
      %4830 = vmatmul.mubr.f32.gmra.mrb[0].mxu0 %v4298
      %v4831 = vpop.f32.mrb[0].mxu0
      %v4832 = vadd.f32 %v4169, %v4831
      %v4833 = vpop.f32.mrb[0].mxu0
      %4834 = vmatprep.mubr.f32.mxu0 0.0
      %4835 = vmatmul.mubr.f32.gmra.mrb[0].mxu0 %v4301
      %v4836 = vpop.f32.mrb[0].mxu0
      %v4837 = vadd.f32 %v4169, %v4836
      %v4838 = vpop.f32.mrb[0].mxu0
      %4839 = vmatprep.mubr.f32.mxu0 0.0
      %4840 = vmatmul.mubr.f32.gmra.mrb[0].mxu0 %v4304
      %v4841 = vpop.f32.mrb[0].mxu0
      %v4842 = vadd.f32 %v4169, %v4841
      %v4843 = vpop.f32.mrb[0].mxu0
      %4844 = vmatprep.mubr.f32.mxu0 0.0
      %4845 = vmatmul.mubr.f32.gmra.mrb[0].mxu0 %v4307
      %v4846 = vpop.f32.mrb[0].mxu0
      %v4847 = vadd.f32 %v4169, %v4846
      %v4848 = vpop.f32.mrb[0].mxu0
      %4849 = vmatprep.mubr.f32.mxu0 0.0
      %4850 = vmatmul.mubr.f32.gmra.mrb[0].mxu0 %v4310
      %v4851 = vpop.f32.mrb[0].mxu0
      %v4852 = vadd.f32 %v4169, %v4851
      %v4853 = vpop.f32.mrb[0].mxu0
      %4854 = vmatprep.mubr.f32.mxu0 0.0
      %4855 = vmatmul.mubr.f32.gmra.mrb[0].mxu0 %v4313
      %v4856 = vpop.f32.mrb[0].mxu0
      %v4857 = vadd.f32 %v4169, %v4856
      %v4858 = vpop.f32.mrb[0].mxu0
      %4859 = vmatprep.mubr.f32.mxu0 0.0
      %4860 = vmatmul.mubr.f32.gmra.mrb[0].mxu0 %v4316
      %v4861 = vpop.f32.mrb[0].mxu0
      %v4862 = vadd.f32 %v4169, %v4861
      %v4863 = vpop.f32.mrb[0].mxu0
      %4864 = vmatprep.mubr.f32.mxu0 0.0
      %4865 = vmatmul.mubr.f32.gmra.mrb[0].mxu0 %v4319
      %v4866 = vpop.f32.mrb[0].mxu0
      %v4867 = vadd.f32 %v4169, %v4866
      %v4868 = vpop.f32.mrb[0].mxu0
      %4869 = vmatprep.mubr.f32.mxu0 0.0
      %4870 = vmatmul.mubr.f32.gmra.mrb[0].mxu0 %v4322
      %v4871 = vpop.f32.mrb[0].mxu0
      %v4872 = vadd.f32 %v4169, %v4871
      %v4873 = vpop.f32.mrb[0].mxu0
      %4874 = vmatprep.mubr.f32.mxu0 0.0
      %4875 = vmatmul.mubr.f32.gmra.mrb[0].mxu0 %v4325
      %v4876 = vpop.f32.mrb[0].mxu0
      %v4877 = vadd.f32 %v4169, %v4876
      %v4878 = vpop.f32.mrb[0].mxu0
      %4879 = vmatprep.mubr.f32.mxu0 0.0
      %4880 = vmatmul.mubr.f32.gmra.mrb[0].mxu0 %v4328
      %v4881 = vpop.f32.mrb[0].mxu0
      %v4882 = vadd.f32 %v4169, %v4881
      %v4883 = vpop.f32.mrb[0].mxu0
      %4884 = vmatprep.mubr.f32.mxu0 0.0
      %4885 = vmatmul.mubr.f32.gmra.mrb[0].mxu0 %v4331
      %v4886 = vpop.f32.mrb[0].mxu0
      %v4887 = vadd.f32 %v4169, %v4886
      %v4888 = vpop.f32.mrb[0].mxu0
      %4889 = vmatprep.mubr.f32.mxu0 0.0
      %4890 = vmatmul.mubr.f32.gmra.mrb[0].mxu0 %v4334
      %v4891 = vpop.f32.mrb[0].mxu0
      %v4892 = vadd.f32 %v4169, %v4891
      %v4893 = vpop.f32.mrb[0].mxu0
      %4894 = vmatprep.mubr.f32.mxu0 0.0
      %4895 = vmatmul.mubr.f32.gmra.mrb[0].mxu0 %v4337
      %v4896 = vpop.f32.mrb[0].mxu0
      %v4897 = vadd.f32 %v4169, %v4896
      %v4898 = vpop.f32.mrb[0].mxu0
      %4899 = vmatprep.mubr.f32.mxu0 0.0
      %4900 = vmatmul.mubr.f32.gmra.mrb[0].mxu0 %v4340
      %v4901 = vpop.f32.mrb[0].mxu0
      %v4902 = vadd.f32 %v4169, %v4901
      %v4903 = vpop.f32.mrb[0].mxu0
      %4904 = vmatprep.mubr.f32.mxu0 0.0
      %4905 = vmatmul.mubr.f32.gmra.mrb[0].mxu0 %v4343
      %v4906 = vpop.f32.mrb[0].mxu0
      %v4907 = vadd.f32 %v4169, %v4906
      %v4908 = vpop.f32.mrb[0].mxu0
      %4909 = vmatprep.mubr.f32.mxu0 0.0
      %4910 = vmatmul.mubr.f32.gmra.mrb[0].mxu0 %v4346
      %v4911 = vpop.f32.mrb[0].mxu0
      %v4912 = vadd.f32 %v4169, %v4911
      %v4913 = vpop.f32.mrb[0].mxu0
      %4914 = vmatprep.mubr.f32.mxu0 0.0
      %4915 = vmatmul.mubr.f32.gmra.mrb[0].mxu0 %v4349
      %v4916 = vpop.f32.mrb[0].mxu0
      %v4917 = vadd.f32 %v4169, %v4916
      %v4918 = vpop.f32.mrb[0].mxu0
      %4919 = vmatprep.mubr.f32.mxu0 0.0
      %4920 = vmatmul.mubr.f32.gmra.mrb[0].mxu0 %v4352
      %v4921 = vpop.f32.mrb[0].mxu0
      %v4922 = vadd.f32 %v4169, %v4921
      %v4923 = vpop.f32.mrb[0].mxu0
      %4924 = vmatprep.mubr.f32.mxu0 0.0
      %4925 = vmatmul.mubr.f32.gmra.mrb[0].mxu0 %v4355
      %v4926 = vpop.f32.mrb[0].mxu0
      %v4927 = vadd.f32 %v4169, %v4926
      %v4928 = vpop.f32.mrb[0].mxu0
      %4929 = vmatprep.mubr.f32.mxu0 0.0
      %4930 = vmatmul.mubr.f32.gmra.mrb[0].mxu0 %v4358
      %v4931 = vpop.f32.mrb[0].mxu0
      %v4932 = vadd.f32 %v4169, %v4931
      %v4933 = vpop.f32.mrb[0].mxu0
      %4934 = vmatprep.mubr.f32.mxu0 0.0
      %4935 = vmatmul.mubr.f32.gmra.mrb[0].mxu0 %v4361
      %v4936 = vpop.f32.mrb[0].mxu0
      %v4937 = vadd.f32 %v4169, %v4936
      %v4938 = vpop.f32.mrb[0].mxu0
      %4939 = vmatprep.mubr.f32.mxu0 0.0
      %4940 = vmatmul.mubr.f32.gmra.mrb[0].mxu0 %v4364
      %v4941 = vpop.f32.mrb[0].mxu0
      %v4942 = vadd.f32 %v4169, %v4941
      %v4943 = vpop.f32.mrb[0].mxu0
      %4944 = vmatprep.mubr.f32.mxu0 0.0
      %4945 = vmatmul.mubr.f32.gmra.mrb[0].mxu0 %v4367
      %v4946 = vpop.f32.mrb[0].mxu0
      %v4947 = vadd.f32 %v4169, %v4946
      %v4948 = vpop.f32.mrb[0].mxu0
      %4949 = vmatprep.mubr.f32.mxu0 0.0
      %4950 = vmatmul.mubr.f32.gmra.mrb[0].mxu0 %v4370
      %v4951 = vpop.f32.mrb[0].mxu0
      %v4952 = vadd.f32 %v4169, %v4951
      %v4953 = vpop.f32.mrb[0].mxu0
      %4954 = vmatprep.mubr.f32.mxu0 0.0
      %4955 = vmatmul.mubr.f32.gmra.mrb[0].mxu0 %v4373
      %v4956 = vpop.f32.mrb[0].mxu0
      %v4957 = vadd.f32 %v4169, %v4956
      %v4958 = vpop.f32.mrb[0].mxu0
      %4959 = vmatprep.mubr.f32.mxu0 0.0
      %4960 = vmatmul.mubr.f32.gmra.mrb[0].mxu0 %v4376
      %v4961 = vpop.f32.mrb[0].mxu0
      %v4962 = vadd.f32 %v4169, %v4961
      %v4963 = vpop.f32.mrb[0].mxu0
      %4964 = vmatprep.mubr.f32.mxu0 0.0
      %4965 = vmatmul.mubr.f32.gmra.mrb[0].mxu0 %v4379
      %v4966 = vpop.f32.mrb[0].mxu0
      %v4967 = vadd.f32 %v4169, %v4966
      %v4968 = vpop.f32.mrb[0].mxu0
      %4969 = vmatprep.mubr.f32.mxu0 0.0
      %4970 = vmatmul.mubr.f32.gmra.mrb[0].mxu0 %v4382
      %v4971 = vpop.f32.mrb[0].mxu0
      %v4972 = vadd.f32 %v4169, %v4971
      %v4973 = vpop.f32.mrb[0].mxu0
      %4974 = vmatprep.mubr.f32.mxu0 0.0
      %4975 = vmatmul.mubr.f32.gmra.mrb[0].mxu0 %v4385
      %v4976 = vpop.f32.mrb[0].mxu0
      %v4977 = vadd.f32 %v4169, %v4976
      %v4978 = vpop.f32.mrb[0].mxu0
      %4979 = vmatprep.mubr.f32.mxu0 0.0
      %4980 = vmatmul.mubr.f32.gmra.mrb[0].mxu0 %v4388
      %v4981 = vpop.f32.mrb[0].mxu0
      %v4982 = vadd.f32 %v4169, %v4981
      %v4983 = vpop.f32.mrb[0].mxu0
      %4984 = vmatprep.mubr.f32.mxu0 0.0
      %4985 = vmatmul.mubr.f32.gmra.mrb[0].mxu0 %v4391
      %v4986 = vpop.f32.mrb[0].mxu0
      %v4987 = vadd.f32 %v4169, %v4986
      %v4988 = vpop.f32.mrb[0].mxu0
      %4989 = vmatprep.mubr.f32.mxu0 0.0
      %4990 = vmatmul.mubr.f32.gmra.mrb[0].mxu0 %v4394
      %v4991 = vpop.f32.mrb[0].mxu0
      %v4992 = vadd.f32 %v4169, %v4991
      %v4993 = vpop.f32.mrb[0].mxu0
      %4994 = vmatprep.mubr.f32.mxu0 0.0
      %4995 = vmatmul.mubr.f32.gmra.mrb[0].mxu0 %v4397
      %v4996 = vpop.f32.mrb[0].mxu0
      %v4997 = vadd.f32 %v4169, %v4996
      %v4998 = vpop.f32.mrb[0].mxu0
      %4999 = vmatprep.mubr.f32.mxu0 0.0
      %5000 = vmatmul.mubr.f32.gmra.mrb[0].mxu0 %v4400
      %v5001 = vpop.f32.mrb[0].mxu0
      %v5002 = vadd.f32 %v4169, %v5001
      %v5003 = vpop.f32.mrb[0].mxu0
      %5004 = vmatprep.mubr.f32.mxu0 0.0
      %5005 = vmatmul.mubr.f32.gmra.mrb[0].mxu0 %v4403
      %v5006 = vpop.f32.mrb[0].mxu0
      %v5007 = vadd.f32 %v4169, %v5006
      %v5008 = vpop.f32.mrb[0].mxu0
      %5009 = vmatprep.mubr.f32.mxu0 0.0
      %5010 = vmatmul.mubr.f32.gmra.mrb[0].mxu0 %v4406
      %v5011 = vpop.f32.mrb[0].mxu0
      %v5012 = vadd.f32 %v4169, %v5011
      %v5013 = vpop.f32.mrb[0].mxu0
      %5014 = vmatprep.mubr.f32.mxu0 0.0
      %5015 = vmatmul.mubr.f32.gmra.mrb[0].mxu0 %v4409
      %v5016 = vpop.f32.mrb[0].mxu0
      %v5017 = vadd.f32 %v4169, %v5016
      %v5018 = vpop.f32.mrb[0].mxu0
      %5019 = vmatprep.mubr.f32.mxu0 0.0
      %5020 = vmatmul.mubr.f32.gmra.mrb[0].mxu0 %v4412
      %v5021 = vpop.f32.mrb[0].mxu0
      %v5022 = vadd.f32 %v4169, %v5021
      %v5023 = vpop.f32.mrb[0].mxu0
      %5024 = vmatprep.mubr.f32.mxu0 0.0
      %5025 = vmatmul.mubr.f32.gmra.mrb[0].mxu0 %v4415
      %v5026 = vpop.f32.mrb[0].mxu0
      %v5027 = vadd.f32 %v4169, %v5026
      %v5028 = vpop.f32.mrb[0].mxu0
      %5029 = vmatprep.mubr.f32.mxu0 0.0
      %5030 = vmatmul.mubr.f32.gmra.mrb[0].mxu0 %v4418
      %v5031 = vpop.f32.mrb[0].mxu0
      %v5032 = vadd.f32 %v4169, %v5031
      %v5033 = vpop.f32.mrb[0].mxu0
      %5034 = vmatprep.mubr.f32.mxu0 0.0
      %5035 = vmatmul.mubr.f32.gmra.mrb[0].mxu0 %v4421
      %v5036 = vpop.f32.mrb[0].mxu0
      %v5037 = vadd.f32 %v4169, %v5036
      %v5038 = vpop.f32.mrb[0].mxu0
      %5039 = vmatprep.mubr.f32.mxu0 0.0
      %5040 = vmatmul.mubr.f32.gmra.mrb[0].mxu0 %v4424
      %v5041 = vpop.f32.mrb[0].mxu0
      %v5042 = vadd.f32 %v4169, %v5041
      %v5043 = vpop.f32.mrb[0].mxu0
      %5044 = vmatprep.mubr.f32.mxu0 0.0
      %5045 = vmatmul.mubr.f32.gmra.mrb[0].mxu0 %v4427
      %v5046 = vpop.f32.mrb[0].mxu0
      %v5047 = vadd.f32 %v4169, %v5046
      %v5048 = vpop.f32.mrb[0].mxu0
      %5049 = vmatprep.mubr.f32.mxu0 0.0
      %5050 = vmatmul.mubr.f32.gmra.mrb[0].mxu0 %v4430
      %v5051 = vpop.f32.mrb[0].mxu0
      %v5052 = vadd.f32 %v4169, %v5051
      %v5053 = vpop.f32.mrb[0].mxu0
      %5054 = vmatprep.mubr.f32.mxu0 0.0
      %5055 = vmatmul.mubr.f32.gmra.mrb[0].mxu0 %v4433
      %v5056 = vpop.f32.mrb[0].mxu0
      %v5057 = vadd.f32 %v4169, %v5056
      %v5058 = vpop.f32.mrb[0].mxu0
      %5059 = vmatprep.mubr.f32.mxu0 0.0
      %5060 = vmatmul.mubr.f32.gmra.mrb[0].mxu0 %v4436
      %v5061 = vpop.f32.mrb[0].mxu0
      %v5062 = vadd.f32 %v4169, %v5061
      %v5063 = vpop.f32.mrb[0].mxu0
      %5064 = vmatprep.mubr.f32.mxu0 0.0
      %5065 = vmatmul.mubr.f32.gmra.mrb[0].mxu0 %v4439
      %v5066 = vpop.f32.mrb[0].mxu0
      %v5067 = vadd.f32 %v4169, %v5066
      %v5068 = vpop.f32.mrb[0].mxu0
      %5069 = vmatprep.mubr.f32.mxu0 0.0
      %5070 = vmatmul.mubr.f32.gmra.mrb[0].mxu0 %v4442
      %v5071 = vpop.f32.mrb[0].mxu0
      %v5072 = vadd.f32 %v4169, %v5071
      %v5073 = vpop.f32.mrb[0].mxu0
      %5074 = vmatprep.mubr.f32.mxu0 0.0
      %5075 = vmatmul.mubr.f32.gmra.mrb[0].mxu0 %v4445
      %v5076 = vpop.f32.mrb[0].mxu0
      %v5077 = vadd.f32 %v4169, %v5076
      %v5078 = vpop.f32.mrb[0].mxu0
      %5079 = vmatprep.mubr.f32.mxu0 0.0
      %5080 = vmatmul.mubr.f32.gmra.mrb[0].mxu0 %v4448
      %v5081 = vpop.f32.mrb[0].mxu0
      %v5082 = vadd.f32 %v4169, %v5081
      %v5083 = vpop.f32.mrb[0].mxu0
      %5084 = vmatprep.mubr.f32.mxu0 0.0
      %5085 = vmatmul.mubr.f32.gmra.mrb[0].mxu0 %v4451
      %v5086 = vpop.f32.mrb[0].mxu0
      %v5087 = vadd.f32 %v4169, %v5086
      %v5088 = vpop.f32.mrb[0].mxu0
      %5089 = vmatprep.mubr.f32.mxu0 0.0
      %5090 = vmatmul.mubr.f32.gmra.mrb[0].mxu0 %v4454
      %v5091 = vpop.f32.mrb[0].mxu0
      %v5092 = vadd.f32 %v4169, %v5091
      %v5093 = vpop.f32.mrb[0].mxu0
      %5094 = vmatprep.mubr.f32.mxu0 0.0
      %5095 = vmatmul.mubr.f32.gmra.mrb[0].mxu0 %v4457
      %v5096 = vpop.f32.mrb[0].mxu0
      %v5097 = vadd.f32 %v4169, %v5096
      %v5098 = vpop.f32.mrb[0].mxu0
      %5099 = vmatprep.mubr.f32.mxu0 0.0
      %5100 = vmatmul.mubr.f32.gmra.mrb[0].mxu0 %v4460
      %v5101 = vpop.f32.mrb[0].mxu0
      %v5102 = vadd.f32 %v4169, %v5101
      %v5103 = vpop.f32.mrb[0].mxu0
      %5104 = vmatprep.mubr.f32.mxu0 0.0
      %5105 = vmatmul.mubr.f32.gmra.mrb[0].mxu0 %v4463
      %v5106 = vpop.f32.mrb[0].mxu0
      %v5107 = vadd.f32 %v4169, %v5106
      %v5108 = vpop.f32.mrb[0].mxu0
      %5109 = vmatprep.mubr.f32.mxu0 0.0
      %5110 = vmatmul.mubr.f32.gmra.mrb[0].mxu0 %v4466
      %v5111 = vpop.f32.mrb[0].mxu0
      %v5112 = vadd.f32 %v4169, %v5111
      %v5113 = vpop.f32.mrb[0].mxu0
      %5114 = vmatprep.mubr.f32.mxu0 0.0
      %5115 = vmatmul.mubr.f32.gmra.mrb[0].mxu0 %v4469
      %v5116 = vpop.f32.mrb[0].mxu0
      %v5117 = vadd.f32 %v4169, %v5116
      %v5118 = vpop.f32.mrb[0].mxu0
      %5119 = vmatprep.mubr.f32.mxu0 0.0
      %5120 = vmatmul.mubr.f32.gmra.mrb[0].mxu0 %v4472
      %v5121 = vpop.f32.mrb[0].mxu0
      %v5122 = vadd.f32 %v4169, %v5121
      %v5123 = vpop.f32.mrb[0].mxu0
      %5124 = vmatprep.mubr.f32.mxu0 0.0
      %5125 = vmatmul.mubr.f32.gmra.mrb[0].mxu0 %v4475
      %v5126 = vpop.f32.mrb[0].mxu0
      %v5127 = vadd.f32 %v4169, %v5126
      %v5128 = vpop.f32.mrb[0].mxu0
      %5129 = vmatprep.mubr.f32.mxu0 0.0
      %5130 = vmatmul.mubr.f32.gmra.mrb[0].mxu0 %v4478
      %v5131 = vpop.f32.mrb[0].mxu0
      %v5132 = vadd.f32 %v4169, %v5131
      %v5133 = vpop.f32.mrb[0].mxu0
      %5134 = vmatprep.mubr.f32.mxu0 0.0
      %5135 = vmatmul.mubr.f32.gmra.mrb[0].mxu0 %v4481
      %v5136 = vpop.f32.mrb[0].mxu0
      %v5137 = vadd.f32 %v4169, %v5136
      %v5138 = vpop.f32.mrb[0].mxu0
      %5139 = vmatprep.mubr.f32.mxu0 0.0
      %5140 = vmatmul.mubr.f32.gmra.mrb[0].mxu0 %v4484
      %v5141 = vpop.f32.mrb[0].mxu0
      %v5142 = vadd.f32 %v4169, %v5141
      %v5143 = vpop.f32.mrb[0].mxu0
      %5144 = vmatprep.mubr.f32.mxu0 0.0
      %5145 = vmatmul.mubr.f32.gmra.mrb[0].mxu0 %v4487
      %v5146 = vpop.f32.mrb[0].mxu0
      %v5147 = vadd.f32 %v4169, %v5146
      %v5148 = vpop.f32.mrb[0].mxu0
      %5149 = vmatprep.mubr.f32.mxu0 0.0
      %5150 = vmatmul.mubr.f32.gmra.mrb[0].mxu0 %v4490
      %v5151 = vpop.f32.mrb[0].mxu0
      %v5152 = vadd.f32 %v4169, %v5151
      %v5153 = vpop.f32.mrb[0].mxu0
      %5154 = vmatprep.mubr.f32.mxu0 0.0
      %5155 = vmatmul.mubr.f32.gmra.mrb[0].mxu0 %v4493
      %v5156 = vpop.f32.mrb[0].mxu0
      %v5157 = vadd.f32 %v4169, %v5156
      %v5158 = vpop.f32.mrb[0].mxu0
      %5159 = vmatprep.mubr.f32.mxu0 0.0
      %5160 = vmatmul.mubr.f32.gmra.mrb[0].mxu0 %v4496
      %v5161 = vpop.f32.mrb[0].mxu0
      %v5162 = vadd.f32 %v4169, %v5161
      %v5163 = vpop.f32.mrb[0].mxu0
      %5164 = vmatprep.mubr.f32.mxu0 0.0
      %5165 = vmatmul.mubr.f32.gmra.mrb[0].mxu0 %v4499
      %v5166 = vpop.f32.mrb[0].mxu0
      %v5167 = vadd.f32 %v4169, %v5166
      %v5168 = vpop.f32.mrb[0].mxu0
      %5169 = vmatprep.mubr.f32.mxu0 0.0
      %5170 = vmatmul.mubr.f32.gmra.mrb[0].mxu0 %v4502
      %v5171 = vpop.f32.mrb[0].mxu0
      %v5172 = vadd.f32 %v4169, %v5171
      %v5173 = vpop.f32.mrb[0].mxu0
      %5174 = vmatprep.mubr.f32.mxu0 0.0
      %5175 = vmatmul.mubr.f32.gmra.mrb[0].mxu0 %v4505
      %v5176 = vpop.f32.mrb[0].mxu0
      %v5177 = vadd.f32 %v4169, %v5176
      %v5178 = vpop.f32.mrb[0].mxu0
      %5179 = vmatprep.mubr.f32.mxu0 0.0
      %5180 = vmatmul.mubr.f32.gmra.mrb[0].mxu0 %v4508
      %v5181 = vpop.f32.mrb[0].mxu0
      %v5182 = vadd.f32 %v4169, %v5181
      %v5183 = vpop.f32.mrb[0].mxu0
      %5184 = vmatprep.mubr.f32.mxu0 0.0
      %5185 = vmatmul.mubr.f32.gmra.mrb[0].mxu0 %v4511
      %v5186 = vpop.f32.mrb[0].mxu0
      %v5187 = vadd.f32 %v4169, %v5186
      %v5188 = vpop.f32.mrb[0].mxu0
      %5189 = vmatprep.mubr.f32.mxu0 0.0
      %5190 = vmatmul.mubr.f32.gmra.mrb[0].mxu0 %v4514
      %v5191 = vpop.f32.mrb[0].mxu0
      %v5192 = vadd.f32 %v4169, %v5191
      %v5193 = vpop.f32.mrb[0].mxu0
      %5194 = vmatprep.mubr.f32.mxu0 0.0
      %5195 = vmatmul.mubr.f32.gmra.mrb[0].mxu0 %v4517
      %v5196 = vpop.f32.mrb[0].mxu0
      %v5197 = vadd.f32 %v4169, %v5196
      %v5198 = vpop.f32.mrb[0].mxu0
      %5199 = vmatprep.mubr.f32.mxu0 0.0
      %5200 = vmatmul.mubr.f32.gmra.mrb[0].mxu0 %v4520
      %v5201 = vpop.f32.mrb[0].mxu0
      %v5202 = vadd.f32 %v4169, %v5201
      %v5203 = vpop.f32.mrb[0].mxu0
      %5204 = vmatprep.mubr.f32.mxu0 0.0
      %5205 = vmatmul.mubr.f32.gmra.mrb[0].mxu0 %v4523
      %v5206 = vpop.f32.mrb[0].mxu0
      %v5207 = vadd.f32 %v4169, %v5206
      %v5208 = vpop.f32.mrb[0].mxu0
      %5209 = vmatprep.mubr.f32.mxu0 0.0
      %5210 = vmatmul.mubr.f32.gmra.mrb[0].mxu0 %v4526
      %v5211 = vpop.f32.mrb[0].mxu0
      %v5212 = vadd.f32 %v4169, %v5211
      %v5213 = vpop.f32.mrb[0].mxu0
      %5214 = vmatprep.mubr.f32.mxu0 0.0
      %5215 = vmatmul.mubr.f32.gmra.mrb[0].mxu0 %v4529
      %v5216 = vpop.f32.mrb[0].mxu0
      %v5217 = vadd.f32 %v4169, %v5216
      %v5218 = vpop.f32.mrb[0].mxu0
      %5219 = vmatprep.mubr.f32.mxu0 0.0
      %5220 = vmatmul.mubr.f32.gmra.mrb[0].mxu0 %v4532
      %v5221 = vpop.f32.mrb[0].mxu0
      %v5222 = vadd.f32 %v4169, %v5221
      %v5223 = vpop.f32.mrb[0].mxu0
      %5224 = vmatprep.mubr.f32.mxu0 0.0
      %5225 = vmatmul.mubr.f32.gmra.mrb[0].mxu0 %v4535
      %v5226 = vpop.f32.mrb[0].mxu0
      %v5227 = vadd.f32 %v4169, %v5226
      %v5228 = vpop.f32.mrb[0].mxu0
      %5229 = vmatprep.mubr.f32.mxu0 0.0
      %5230 = vmatmul.mubr.f32.gmra.mrb[0].mxu0 %v4538
      %v5231 = vpop.f32.mrb[0].mxu0
      %v5232 = vadd.f32 %v4169, %v5231
      %v5233 = vpop.f32.mrb[0].mxu0
      %5234 = vmatprep.mubr.f32.mxu0 0.0
      %5235 = vmatmul.mubr.f32.gmra.mrb[0].mxu0 %v4541
      %v5236 = vpop.f32.mrb[0].mxu0
      %v5237 = vadd.f32 %v4169, %v5236
      %v5238 = vpop.f32.mrb[0].mxu0
      %5239 = vmatprep.mubr.f32.mxu0 0.0
      %5240 = vmatmul.mubr.f32.gmra.mrb[0].mxu0 %v4544
      %v5241 = vpop.f32.mrb[0].mxu0
      %v5242 = vadd.f32 %v4169, %v5241
      %v5243 = vpop.f32.mrb[0].mxu0
      %5244 = vmatprep.mubr.f32.mxu0 0.0
      %5245 = vmatmul.mubr.f32.gmra.mrb[0].mxu0 %v4547
      %v5246 = vpop.f32.mrb[0].mxu0
      %v5247 = vadd.f32 %v4169, %v5246
      %v5248 = vpop.f32.mrb[0].mxu0
      %5249 = vmatprep.mubr.f32.mxu0 0.0
      %5250 = vmatmul.mubr.f32.gmra.mrb[0].mxu0 %v4550
      %v5251 = vpop.f32.mrb[0].mxu0
      %v5252 = vadd.f32 %v4169, %v5251
      %v5253 = vpop.f32.mrb[0].mxu0
      %5254 = vmatprep.mubr.f32.mxu0 0.0
      %5255 = vmatmul.mubr.f32.gmra.mrb[0].mxu0 %v4553
      %v5256 = vpop.f32.mrb[0].mxu0
      %v5257 = vadd.f32 %v4169, %v5256
      %v5258 = vpop.f32.mrb[0].mxu0
      %5259 = vdwg.mxu0
      %v5260 = vtanh.pop %v4622
      %v5261 = vtanh.pop %v4627
      %v5262 = vtanh.pop %v4632
      %v5263 = vtanh.pop %v4637
      %v5264 = vtanh.pop %v4642
      %v5265 = vtanh.pop %v4647
      %v5266 = vtanh.pop %v4652
      %v5267 = vtanh.pop %v4657
      %v5268 = vtanh.pop %v4662
      %v5269 = vtanh.pop %v4667
      %v5270 = vtanh.pop %v4672
      %v5271 = vtanh.pop %v4677
      %v5272 = vtanh.pop %v4682
      %v5273 = vtanh.pop %v4687
      %v5274 = vtanh.pop %v4692
      %v5275 = vtanh.pop %v4697
      %v5276 = vtanh.pop %v4702
      %v5277 = vtanh.pop %v4707
      %v5278 = vtanh.pop %v4712
      %v5279 = vtanh.pop %v4717
      %v5280 = vtanh.pop %v4722
      %v5281 = vtanh.pop %v4727
      %v5282 = vtanh.pop %v4732
      %v5283 = vtanh.pop %v4737
      %v5284 = vtanh.pop %v4742
      %v5285 = vtanh.pop %v4747
      %v5286 = vtanh.pop %v4752
      %v5287 = vtanh.pop %v4757
      %v5288 = vtanh.pop %v4762
      %v5289 = vtanh.pop %v4767
      %v5290 = vtanh.pop %v4772
      %v5291 = vtanh.pop %v4777
      %v5292 = vtanh.pop %v4782
      %v5293 = vtanh.pop %v4787
      %v5294 = vtanh.pop %v4792
      %v5295 = vtanh.pop %v4797
      %v5296 = vtanh.pop %v4802
      %v5297 = vtanh.pop %v4807
      %v5298 = vtanh.pop %v4812
      %v5299 = vtanh.pop %v4817
      %v5300 = vtanh.pop %v4822
      %v5301 = vtanh.pop %v4827
      %v5302 = vtanh.pop %v4832
      %v5303 = vtanh.pop %v4837
      %v5304 = vtanh.pop %v4842
      %v5305 = vtanh.pop %v4847
      %v5306 = vtanh.pop %v4852
      %v5307 = vtanh.pop %v4857
      %v5308 = vtanh.pop %v4862
      %v5309 = vtanh.pop %v4867
      %v5310 = vtanh.pop %v4872
      %v5311 = vtanh.pop %v4877
      %v5312 = vtanh.pop %v4882
      %v5313 = vtanh.pop %v4887
      %v5314 = vtanh.pop %v4892
      %v5315 = vtanh.pop %v4897
      %v5316 = vtanh.pop %v4902
      %v5317 = vtanh.pop %v4907
      %v5318 = vtanh.pop %v4912
      %v5319 = vtanh.pop %v4917
      %v5320 = vtanh.pop %v4922
      %v5321 = vtanh.pop %v4927
      %v5322 = vtanh.pop %v4932
      %v5323 = vtanh.pop %v4937
      %v5324 = vtanh.pop %v4942
      %v5325 = vtanh.pop %v4947
      %v5326 = vtanh.pop %v4952
      %v5327 = vtanh.pop %v4957
      %v5328 = vtanh.pop %v4962
      %v5329 = vtanh.pop %v4967
      %v5330 = vtanh.pop %v4972
      %v5331 = vtanh.pop %v4977
      %v5332 = vtanh.pop %v4982
      %v5333 = vtanh.pop %v4987
      %v5334 = vtanh.pop %v4992
      %v5335 = vtanh.pop %v4997
      %v5336 = vtanh.pop %v5002
      %v5337 = vtanh.pop %v5007
      %v5338 = vtanh.pop %v5012
      %v5339 = vtanh.pop %v5017
      %v5340 = vtanh.pop %v5022
      %v5341 = vtanh.pop %v5027
      %v5342 = vtanh.pop %v5032
      %v5343 = vtanh.pop %v5037
      %v5344 = vtanh.pop %v5042
      %v5345 = vtanh.pop %v5047
      %v5346 = vtanh.pop %v5052
      %v5347 = vtanh.pop %v5057
      %v5348 = vtanh.pop %v5062
      %v5349 = vtanh.pop %v5067
      %v5350 = vtanh.pop %v5072
      %v5351 = vtanh.pop %v5077
      %v5352 = vtanh.pop %v5082
      %v5353 = vtanh.pop %v5087
      %v5354 = vtanh.pop %v5092
      %v5355 = vtanh.pop %v5097
      %v5356 = vtanh.pop %v5102
      %v5357 = vtanh.pop %v5107
      %v5358 = vtanh.pop %v5112
      %v5359 = vtanh.pop %v5117
      %v5360 = vtanh.pop %v5122
      %v5361 = vtanh.pop %v5127
      %v5362 = vtanh.pop %v5132
      %v5363 = vtanh.pop %v5137
      %v5364 = vtanh.pop %v5142
      %v5365 = vtanh.pop %v5147
      %v5366 = vtanh.pop %v5152
      %v5367 = vtanh.pop %v5157
      %v5368 = vtanh.pop %v5162
      %v5369 = vtanh.pop %v5167
      %v5370 = vtanh.pop %v5172
      %v5371 = vtanh.pop %v5177
      %v5372 = vtanh.pop %v5182
      %v5373 = vtanh.pop %v5187
      %v5374 = vtanh.pop %v5192
      %v5375 = vtanh.pop %v5197
      %v5376 = vtanh.pop %v5202
      %v5377 = vtanh.pop %v5207
      %v5378 = vtanh.pop %v5212
      %v5379 = vtanh.pop %v5217
      %v5380 = vtanh.pop %v5222
      %v5381 = vtanh.pop %v5227
      %v5382 = vtanh.pop %v5232
      %v5383 = vtanh.pop %v5237
      %v5384 = vtanh.pop %v5242
      %v5385 = vtanh.pop %v5247
      %v5386 = vtanh.pop %v5252
      %v5387 = vtanh.pop %v5257
      %vm5388 = vcmask 31744
      %5389 = vst.msk [vmem:[%s334] sm:$0xff] %vm5388, %v5260
      %5390 = vst.msk [vmem:[%s334 + $0x8] sm:$0xff] %vm5388, %v5261
      %5391 = vst.msk [vmem:[%s334 + $0x10] sm:$0xff] %vm5388, %v5262
      %5392 = vst.msk [vmem:[%s334 + $0x18] sm:$0xff] %vm5388, %v5263
      %5393 = vst.msk [vmem:[%s334 + $0x20] sm:$0xff] %vm5388, %v5264
      %5394 = vst.msk [vmem:[%s334 + $0x28] sm:$0xff] %vm5388, %v5265
      %5395 = vst.msk [vmem:[%s334 + $0x30] sm:$0xff] %vm5388, %v5266
      %5396 = vst.msk [vmem:[%s334 + $0x38] sm:$0xff] %vm5388, %v5267
      %5397 = vst.msk [vmem:[%s334 + $0x40] sm:$0xff] %vm5388, %v5268
      %5398 = vst.msk [vmem:[%s334 + $0x48] sm:$0xff] %vm5388, %v5269
      %5399 = vst.msk [vmem:[%s334 + $0x50] sm:$0xff] %vm5388, %v5270
      %5400 = vst.msk [vmem:[%s334 + $0x58] sm:$0xff] %vm5388, %v5271
      %5401 = vst.msk [vmem:[%s334 + $0x60] sm:$0xff] %vm5388, %v5272
      %5402 = vst.msk [vmem:[%s334 + $0x68] sm:$0xff] %vm5388, %v5273
      %5403 = vst.msk [vmem:[%s334 + $0x70] sm:$0xff] %vm5388, %v5274
      %5404 = vst.msk [vmem:[%s334 + $0x78] sm:$0xff] %vm5388, %v5275
      %5405 = vst.msk [vmem:[%s334 + $0x80] sm:$0xff] %vm5388, %v5276
      %5406 = vst.msk [vmem:[%s334 + $0x88] sm:$0xff] %vm5388, %v5277
      %5407 = vst.msk [vmem:[%s334 + $0x90] sm:$0xff] %vm5388, %v5278
      %5408 = vst.msk [vmem:[%s334 + $0x98] sm:$0xff] %vm5388, %v5279
      %5409 = vst.msk [vmem:[%s334 + $0xa0] sm:$0xff] %vm5388, %v5280
      %5410 = vst.msk [vmem:[%s334 + $0xa8] sm:$0xff] %vm5388, %v5281
      %5411 = vst.msk [vmem:[%s334 + $0xb0] sm:$0xff] %vm5388, %v5282
      %5412 = vst.msk [vmem:[%s334 + $0xb8] sm:$0xff] %vm5388, %v5283
      %5413 = vst.msk [vmem:[%s334 + $0xc0] sm:$0xff] %vm5388, %v5284
      %5414 = vst.msk [vmem:[%s334 + $0xc8] sm:$0xff] %vm5388, %v5285
      %5415 = vst.msk [vmem:[%s334 + $0xd0] sm:$0xff] %vm5388, %v5286
      %5416 = vst.msk [vmem:[%s334 + $0xd8] sm:$0xff] %vm5388, %v5287
      %5417 = vst.msk [vmem:[%s334 + $0xe0] sm:$0xff] %vm5388, %v5288
      %5418 = vst.msk [vmem:[%s334 + $0xe8] sm:$0xff] %vm5388, %v5289
      %5419 = vst.msk [vmem:[%s334 + $0xf0] sm:$0xff] %vm5388, %v5290
      %5420 = vst.msk [vmem:[%s334 + $0xf8] sm:$0xff] %vm5388, %v5291
      %5421 = vst.msk [vmem:[%s334 + $0x100] sm:$0xff] %vm5388, %v5292
      %5422 = vst.msk [vmem:[%s334 + $0x108] sm:$0xff] %vm5388, %v5293
      %5423 = vst.msk [vmem:[%s334 + $0x110] sm:$0xff] %vm5388, %v5294
      %5424 = vst.msk [vmem:[%s334 + $0x118] sm:$0xff] %vm5388, %v5295
      %5425 = vst.msk [vmem:[%s334 + $0x120] sm:$0xff] %vm5388, %v5296
      %5426 = vst.msk [vmem:[%s334 + $0x128] sm:$0xff] %vm5388, %v5297
      %5427 = vst.msk [vmem:[%s334 + $0x130] sm:$0xff] %vm5388, %v5298
      %5428 = vst.msk [vmem:[%s334 + $0x138] sm:$0xff] %vm5388, %v5299
      %5429 = vst.msk [vmem:[%s334 + $0x140] sm:$0xff] %vm5388, %v5300
      %5430 = vst.msk [vmem:[%s334 + $0x148] sm:$0xff] %vm5388, %v5301
      %5431 = vst.msk [vmem:[%s334 + $0x150] sm:$0xff] %vm5388, %v5302
      %5432 = vst.msk [vmem:[%s334 + $0x158] sm:$0xff] %vm5388, %v5303
      %5433 = vst.msk [vmem:[%s334 + $0x160] sm:$0xff] %vm5388, %v5304
      %5434 = vst.msk [vmem:[%s334 + $0x168] sm:$0xff] %vm5388, %v5305
      %5435 = vst.msk [vmem:[%s334 + $0x170] sm:$0xff] %vm5388, %v5306
      %5436 = vst.msk [vmem:[%s334 + $0x178] sm:$0xff] %vm5388, %v5307
      %5437 = vst.msk [vmem:[%s334 + $0x180] sm:$0xff] %vm5388, %v5308
      %5438 = vst.msk [vmem:[%s334 + $0x188] sm:$0xff] %vm5388, %v5309
      %5439 = vst.msk [vmem:[%s334 + $0x190] sm:$0xff] %vm5388, %v5310
      %5440 = vst.msk [vmem:[%s334 + $0x198] sm:$0xff] %vm5388, %v5311
      %5441 = vst.msk [vmem:[%s334 + $0x1a0] sm:$0xff] %vm5388, %v5312
      %5442 = vst.msk [vmem:[%s334 + $0x1a8] sm:$0xff] %vm5388, %v5313
      %5443 = vst.msk [vmem:[%s334 + $0x1b0] sm:$0xff] %vm5388, %v5314
      %5444 = vst.msk [vmem:[%s334 + $0x1b8] sm:$0xff] %vm5388, %v5315
      %5445 = vst.msk [vmem:[%s334 + $0x1c0] sm:$0xff] %vm5388, %v5316
      %5446 = vst.msk [vmem:[%s334 + $0x1c8] sm:$0xff] %vm5388, %v5317
      %5447 = vst.msk [vmem:[%s334 + $0x1d0] sm:$0xff] %vm5388, %v5318
      %5448 = vst.msk [vmem:[%s334 + $0x1d8] sm:$0xff] %vm5388, %v5319
      %5449 = vst.msk [vmem:[%s334 + $0x1e0] sm:$0xff] %vm5388, %v5320
      %5450 = vst.msk [vmem:[%s334 + $0x1e8] sm:$0xff] %vm5388, %v5321
      %5451 = vst.msk [vmem:[%s334 + $0x1f0] sm:$0xff] %vm5388, %v5322
      %5452 = vst.msk [vmem:[%s334 + $0x1f8] sm:$0xff] %vm5388, %v5323
      %5453 = vst.msk [vmem:[%s334 + $0x200] sm:$0xff] %vm5388, %v5324
      %5454 = vst.msk [vmem:[%s334 + $0x208] sm:$0xff] %vm5388, %v5325
      %5455 = vst.msk [vmem:[%s334 + $0x210] sm:$0xff] %vm5388, %v5326
      %5456 = vst.msk [vmem:[%s334 + $0x218] sm:$0xff] %vm5388, %v5327
      %5457 = vst.msk [vmem:[%s334 + $0x220] sm:$0xff] %vm5388, %v5328
      %5458 = vst.msk [vmem:[%s334 + $0x228] sm:$0xff] %vm5388, %v5329
      %5459 = vst.msk [vmem:[%s334 + $0x230] sm:$0xff] %vm5388, %v5330
      %5460 = vst.msk [vmem:[%s334 + $0x238] sm:$0xff] %vm5388, %v5331
      %5461 = vst.msk [vmem:[%s334 + $0x240] sm:$0xff] %vm5388, %v5332
      %5462 = vst.msk [vmem:[%s334 + $0x248] sm:$0xff] %vm5388, %v5333
      %5463 = vst.msk [vmem:[%s334 + $0x250] sm:$0xff] %vm5388, %v5334
      %5464 = vst.msk [vmem:[%s334 + $0x258] sm:$0xff] %vm5388, %v5335
      %5465 = vst.msk [vmem:[%s334 + $0x260] sm:$0xff] %vm5388, %v5336
      %5466 = vst.msk [vmem:[%s334 + $0x268] sm:$0xff] %vm5388, %v5337
      %5467 = vst.msk [vmem:[%s334 + $0x270] sm:$0xff] %vm5388, %v5338
      %5468 = vst.msk [vmem:[%s334 + $0x278] sm:$0xff] %vm5388, %v5339
      %5469 = vst.msk [vmem:[%s334 + $0x280] sm:$0xff] %vm5388, %v5340
      %5470 = vst.msk [vmem:[%s334 + $0x288] sm:$0xff] %vm5388, %v5341
      %5471 = vst.msk [vmem:[%s334 + $0x290] sm:$0xff] %vm5388, %v5342
      %5472 = vst.msk [vmem:[%s334 + $0x298] sm:$0xff] %vm5388, %v5343
      %5473 = vst.msk [vmem:[%s334 + $0x2a0] sm:$0xff] %vm5388, %v5344
      %5474 = vst.msk [vmem:[%s334 + $0x2a8] sm:$0xff] %vm5388, %v5345
      %5475 = vst.msk [vmem:[%s334 + $0x2b0] sm:$0xff] %vm5388, %v5346
      %5476 = vst.msk [vmem:[%s334 + $0x2b8] sm:$0xff] %vm5388, %v5347
      %5477 = vst.msk [vmem:[%s334 + $0x2c0] sm:$0xff] %vm5388, %v5348
      %5478 = vst.msk [vmem:[%s334 + $0x2c8] sm:$0xff] %vm5388, %v5349
      %5479 = vst.msk [vmem:[%s334 + $0x2d0] sm:$0xff] %vm5388, %v5350
      %5480 = vst.msk [vmem:[%s334 + $0x2d8] sm:$0xff] %vm5388, %v5351
      %5481 = vst.msk [vmem:[%s334 + $0x2e0] sm:$0xff] %vm5388, %v5352
      %5482 = vst.msk [vmem:[%s334 + $0x2e8] sm:$0xff] %vm5388, %v5353
      %5483 = vst.msk [vmem:[%s334 + $0x2f0] sm:$0xff] %vm5388, %v5354
      %5484 = vst.msk [vmem:[%s334 + $0x2f8] sm:$0xff] %vm5388, %v5355
      %5485 = vst.msk [vmem:[%s334 + $0x300] sm:$0xff] %vm5388, %v5356
      %5486 = vst.msk [vmem:[%s334 + $0x308] sm:$0xff] %vm5388, %v5357
      %5487 = vst.msk [vmem:[%s334 + $0x310] sm:$0xff] %vm5388, %v5358
      %5488 = vst.msk [vmem:[%s334 + $0x318] sm:$0xff] %vm5388, %v5359
      %5489 = vst.msk [vmem:[%s334 + $0x320] sm:$0xff] %vm5388, %v5360
      %5490 = vst.msk [vmem:[%s334 + $0x328] sm:$0xff] %vm5388, %v5361
      %5491 = vst.msk [vmem:[%s334 + $0x330] sm:$0xff] %vm5388, %v5362
      %5492 = vst.msk [vmem:[%s334 + $0x338] sm:$0xff] %vm5388, %v5363
      %5493 = vst.msk [vmem:[%s334 + $0x340] sm:$0xff] %vm5388, %v5364
      %5494 = vst.msk [vmem:[%s334 + $0x348] sm:$0xff] %vm5388, %v5365
      %5495 = vst.msk [vmem:[%s334 + $0x350] sm:$0xff] %vm5388, %v5366
      %5496 = vst.msk [vmem:[%s334 + $0x358] sm:$0xff] %vm5388, %v5367
      %5497 = vst.msk [vmem:[%s334 + $0x360] sm:$0xff] %vm5388, %v5368
      %5498 = vst.msk [vmem:[%s334 + $0x368] sm:$0xff] %vm5388, %v5369
      %5499 = vst.msk [vmem:[%s334 + $0x370] sm:$0xff] %vm5388, %v5370
      %5500 = vst.msk [vmem:[%s334 + $0x378] sm:$0xff] %vm5388, %v5371
      %5501 = vst.msk [vmem:[%s334 + $0x380] sm:$0xff] %vm5388, %v5372
      %5502 = vst.msk [vmem:[%s334 + $0x388] sm:$0xff] %vm5388, %v5373
      %5503 = vst.msk [vmem:[%s334 + $0x390] sm:$0xff] %vm5388, %v5374
      %5504 = vst.msk [vmem:[%s334 + $0x398] sm:$0xff] %vm5388, %v5375
      %5505 = vst.msk [vmem:[%s334 + $0x3a0] sm:$0xff] %vm5388, %v5376
      %5506 = vst.msk [vmem:[%s334 + $0x3a8] sm:$0xff] %vm5388, %v5377
      %5507 = vst.msk [vmem:[%s334 + $0x3b0] sm:$0xff] %vm5388, %v5378
      %5508 = vst.msk [vmem:[%s334 + $0x3b8] sm:$0xff] %vm5388, %v5379
      %5509 = vst.msk [vmem:[%s334 + $0x3c0] sm:$0xff] %vm5388, %v5380
      %5510 = vst.msk [vmem:[%s334 + $0x3c8] sm:$0xff] %vm5388, %v5381
      %5511 = vst.msk [vmem:[%s334 + $0x3d0] sm:$0xff] %vm5388, %v5382
      %5512 = vst.msk [vmem:[%s334 + $0x3d8] sm:$0xff] %vm5388, %v5383
      %5513 = vst.msk [vmem:[%s334 + $0x3e0] sm:$0xff] %vm5388, %v5384
      %5514 = vst.msk [vmem:[%s334 + $0x3e8] sm:$0xff] %vm5388, %v5385
      %5515 = vst.msk [vmem:[%s334 + $0x3f0] sm:$0xff] %vm5388, %v5386
      %5516 = vst.msk [vmem:[%s334 + $0x3f8] sm:$0xff] %vm5388, %v5387
      %s5517 = smul.u32 128, %s20
      %p5518 = scmp.lt.s32.totalorder %s5517, 255
      %s5519 = scalar_select %p5518, %s5517, 255
      %s5520 = smul.addr %s5519, 8
      %s5521 = scalar_lea.vmem %s9, %s5520
      // Predicated region
      $region57: #{actor_forward.1} parent=55 // pred_check
        %p5522 = pneg %p232
      $region58: #{actor_forward.1} parent=55 // pred_check_branch
        %5524 = sbr.rel (%p5522) target = $region60
      $region59: #{actor_forward.1} parent=55 // pred_region
        %s5525 = smul.u32 128, %s20
      $region60: #{actor_forward.1} parent=55 // pred_fallthru
        _
    $region56: #{actor_forward.1} parent=5 // pred_fallthru
      _
    %p5526 = scmp.le.s32.totalorder 2, %s15
    // Predicated region
    $region61: #{actor_forward.1} parent=5 // pred_check
      %p5527 = pneg %p5526
    $region62: #{actor_forward.1} parent=5 // pred_check_branch
      %5529 = sbr.rel (%p5527) target = $region64
    $region63: #{actor_forward.1} parent=5 // pred_region
      %s5530 = ssub.s32 %s15, 2
      // Predicated region
      $region65: #{actor_forward.1} parent=63 // pred_check
        %p5531 = pneg %p238
      $region66: #{actor_forward.1} parent=63 // pred_check_branch
        %5533 = sbr.rel (%p5531) target = $region68
      $region67: #{actor_forward.1} parent=63 // pred_region
        %s5534 = smul.u32 128, %s21
        %p5535 = scmp.lt.s32.totalorder %s5534, 255
        %s5536 = scalar_select %p5535, %s5534, 255
        %s5537 = smul.addr %s5536, 8
        %s5538 = scalar_lea.vmem %s9, %s5537
      $region68: #{actor_forward.1} parent=63 // pred_fallthru
        _
    $region64: #{actor_forward.1} parent=5 // pred_fallthru
      _
  $region6: #{actor_forward.1} parent=0 // loop_footer
    %s19 = sadd.s32 1, %s15
  $region7: #{actor_forward.1} parent=0 // loop_footer_branch
    %14 = sbr.rel target = $region3
  $region8: #{actor_forward.1} parent=0 // loop_exit
    _

</llo_original>
